<compile_context>
chip_gen: v6e
topology: v6e:2x2x1
jax: 0.10.0
libtpu: 0.0.40
codegen_flags: <defaults>
</compile_context>

<pallas_src>
import math

import jax
import jax.numpy as jnp
from jax import lax
from jax.experimental import pallas as pl
from jax.experimental.pallas import tpu as pltpu

N_BATCH = 2
N_PAD = 8                      # pad batch to one full sublane group
C_IN = 28
C_OUT = 28
L_IN = 50                      # chosen so flatten size == 308 (linear1 in_features)
K = 7
L_CONV = L_IN - K + 1          # 44
POOL = 4
L_POOL = L_CONV // POOL        # 11
FLAT = C_OUT * L_POOL          # 308
HID = 308
N_CLASSES = 2
OUT_PAD = 128                  # lane-dense output block width


def convnet2_kernel(x_ref, wc_ref, w1_ref, w2_ref, b_ref, out_ref):
    """Whole forward pass, single grid point, all operands resident in VMEM.

    x_ref  : (L_IN*N_PAD, C_IN)      bf16   row = t*N_PAD + n  (x[n, :, t])
    wc_ref : (K, C_IN, C_OUT)        bf16   wc[k, ci, co] = Wc[co, ci, k]
    w1_ref : (L_POOL, C_OUT, HID)    bf16   w1[a, c, o]  = W1[o, c*L_POOL + a]
    w2_ref : (HID, OUT_PAD)          bf16   lanes >= N_CLASSES are zero
    b_ref  : (3, HID)                f32    row0[:28]=bc, row1=b1, row2[:2]=b2
    out_ref: (N_PAD, OUT_PAD)        f32
    """
    x2d = x_ref[...]                                            # (400, 28) bf16

    # ---- Conv1d (valid, stride 1): K accumulating dots, contraction C_IN=28 each ----
    # Shift by k in time == row offset 8*k (sublane-group aligned).
    conv = jnp.dot(x2d[0:L_CONV * N_PAD], wc_ref[0],
                   preferred_element_type=jnp.float32)          # (352, 28) f32
    for k in range(1, K):
        off = k * N_PAD
        conv = conv + jnp.dot(x2d[off:off + L_CONV * N_PAD], wc_ref[k],
                              preferred_element_type=jnp.float32)

    # ---- MaxPool1d(4): tile-compatible reshape + 3 whole-tile elementwise maxima ----
    # (bias add + ReLU are monotone, so they are applied after the max.)
    c4 = conv.reshape(L_POOL, POOL, N_PAD, C_OUT)               # (11, 4, 8, 28)
    pooled = jnp.maximum(jnp.maximum(c4[:, 0], c4[:, 1]),
                         jnp.maximum(c4[:, 2], c4[:, 3]))       # (11, 8, 28) f32

    bc = b_ref[0:1, :C_OUT]                                     # (1, 28)
    b1 = b_ref[1:2, :]                                          # (1, 308)
    b2 = b_ref[2:3, :OUT_PAD]                                   # (1, 128)

    # ---- flatten + Linear(308->308) fused: L_POOL accumulating dots, no relayout ----
    h = None
    for a in range(L_POOL):
        blk = jnp.maximum(pooled[a] + bc, 0.0).astype(jnp.bfloat16)    # (8, 28)
        d = jnp.dot(blk, w1_ref[a], preferred_element_type=jnp.float32)
        h = d if h is None else h + d                                   # (8, 308) f32

    # F.dropout(p=0.6, training=mode) with the default mode=False is the identity.
    # TODO(synk): training-mode dropout (pltpu.prng_seed/prng_random_bits + 1/(1-p) scale).
    h = jnp.maximum(h + b1, 0.0).astype(jnp.bfloat16)           # (8, 308)

    # ---- Linear(308->2), written into a lane-dense (8, 128) block ----
    out_ref[...] = jnp.dot(h, w2_ref[...],
                           preferred_element_type=jnp.float32) + b2


def prepare_params(params):
    """One-time parameter re-layout + bf16 cast (hoisted out of the per-call path)."""
    Wc, bc, W1, b1, W2, b2 = params
    # Conv weight: Wc[co, ci, k] -> (K, C_IN, C_OUT)
    wc3 = jnp.transpose(Wc, (2, 1, 0)).astype(jnp.bfloat16)
    # Linear1: W1[o, c*L_POOL + a] -> (L_POOL, C_OUT, HID), slot a matches pool window a.
    w1_3d = jnp.transpose(W1.reshape(HID, C_OUT, L_POOL), (2, 1, 0)).astype(jnp.bfloat16)
    # Output weight zero-padded to 128 lanes for a lane-dense output block.
    w2_pad = jnp.zeros((HID, OUT_PAD), jnp.float32).at[:, :N_CLASSES].set(W2.T)
    w2_pad = w2_pad.astype(jnp.bfloat16)
    # All biases merged into one f32 buffer (fewer input DMAs).
    bmat = jnp.zeros((3, HID), jnp.float32)
    bmat = bmat.at[0, :C_OUT].set(bc)
    bmat = bmat.at[1, :].set(b1)
    bmat = bmat.at[2, :N_CLASSES].set(b2)
    return wc3, w1_3d, w2_pad, bmat


@jax.jit
def convnet2_forward(x_ncl, prepared):
    """x_ncl: (N, C_IN, L_IN) float32, PyTorch NCL convention (N <= N_PAD)."""
    wc3, w1_3d, w2_pad, bmat = prepared
    n = x_ncl.shape[0]
    assert n <= N_PAD
    # NCL -> (L, N_pad, C_in) -> (L*N_pad, C_in): batch fills one sublane group, so every
    # shifted conv block / pool window inside the kernel is whole-vreg aligned.
    x_lnc = jnp.transpose(x_ncl, (2, 0, 1))                     # (L_IN, N, C_IN)
    x_lnc = jnp.pad(x_lnc, ((0, 0), (0, N_PAD - n), (0, 0)))    # (L_IN, N_PAD, C_IN)
    x2d = x_lnc.reshape(L_IN * N_PAD, C_IN).astype(jnp.bfloat16)

    out = pl.pallas_call(
        convnet2_kernel,
        out_shape=jax.ShapeDtypeStruct((N_PAD, OUT_PAD), jnp.float32),
        in_specs=[pl.BlockSpec(memory_space=pltpu.MemorySpace.VMEM)] * 5,
        out_specs=pl.BlockSpec(memory_space=pltpu.MemorySpace.VMEM),
    )(x2d, wc3, w1_3d, w2_pad, bmat)
    # Padded batch rows / lanes >= 2 are garbage (bias-only / zero) -> slice them off.
    return out[:n, :N_CLASSES]


def convnet2_reference(x_ncl, params):
    """Pure-JAX f32 reference mirroring the PyTorch forward (mode=False)."""
    Wc, bc, W1, b1, W2, b2 = params
    y = lax.conv_general_dilated(x_ncl, Wc, window_strides=(1,), padding="VALID",
                                 dimension_numbers=("NCH", "OIH", "NCH"))
    y = jnp.maximum(y + bc[None, :, None], 0.0)
    n, c, l = y.shape
    y = jnp.max(y[:, :, : (l // POOL) * POOL].reshape(n, c, l // POOL, POOL), axis=-1)
    flat = y.reshape(n, -1)
    h = jnp.maximum(flat @ W1.T + b1, 0.0)
    return h @ W2.T + b2


if __name__ == "__main__":
    key = jax.random.PRNGKey(0)
    ks = jax.random.split(key, 7)

    def uinit(k, shape, fan_in):
        bound = 1.0 / math.sqrt(fan_in)
        return jax.random.uniform(k, shape, jnp.float32, -bound, bound)

    x = jax.random.normal(ks[0], (N_BATCH, C_IN, L_IN), jnp.float32)
    params = (
        uinit(ks[1], (C_OUT, C_IN, K), C_IN * K),        # conv1.weight
        uinit(ks[2], (C_OUT,), C_IN * K),                # conv1.bias
        uinit(ks[3], (HID, FLAT), FLAT),                 # linear1.weight
        uinit(ks[4], (HID,), FLAT),                      # linear1.bias
        uinit(ks[5], (N_CLASSES, HID), HID),             # output.weight
        uinit(ks[6], (N_CLASSES,), HID),                 # output.bias
    )

    prepared = jax.block_until_ready(prepare_params(params))   # one-time weight re-layout
    out = jax.block_until_ready(convnet2_forward(x, prepared))
    ref = convnet2_reference(x, params)

    assert out.shape == (N_BATCH, N_CLASSES)
    # bf16 matmul operands (f32 accumulation) -> slightly looser tolerance vs the f32 reference.
    assert jnp.allclose(out, ref, atol=3e-2, rtol=3e-2), (out, ref)
    print("KERNEL_OK")
</pallas_src>

<mosaic_0001>
module attributes {stable_mosaic.version = 11 : i64} {
  func.func @convnet2_kernel(%arg0: memref<400x28xbf16, #tpu.memory_space<vmem>>, %arg1: memref<7x28x28xbf16, #tpu.memory_space<vmem>>, %arg2: memref<11x28x308xbf16, #tpu.memory_space<vmem>>, %arg3: memref<308x128xbf16, #tpu.memory_space<vmem>>, %arg4: memref<3x308xf32, #tpu.memory_space<vmem>>, %arg5: memref<8x128xf32, #tpu.memory_space<vmem>>) attributes {dimension_semantics = [], scalar_prefetch = 0 : i64, scratch_operands = 0 : i64, tpu.core_type = #tpu.core_type<tc>} {
    %c0 = arith.constant 0 : index
    %c0_0 = arith.constant 0 : index
    %0 = vector.load %arg0[%c0, %c0_0] : memref<400x28xbf16, #tpu.memory_space<vmem>>, vector<400x28xbf16>
    %1 = vector.extract_strided_slice %0 {offsets = [0, 0], sizes = [352, 28], strides = [1, 1]} : vector<400x28xbf16> to vector<352x28xbf16>
    %c0_1 = arith.constant 0 : index
    %c0_2 = arith.constant 0 : index
    %c0_3 = arith.constant 0 : index
    %2 = vector.load %arg1[%c0_1, %c0_2, %c0_3] : memref<7x28x28xbf16, #tpu.memory_space<vmem>>, vector<1x28x28xbf16>
    %3 = vector.shape_cast %2 : vector<1x28x28xbf16> to vector<28x28xbf16>
    %cst = arith.constant dense<0.000000e+00> : vector<352x28xf32>
    %4 = tpu.matmul %1, %3, %cst {dimension_numbers = #tpu.dot_dimension_numbers<[1], [0], [0], [1], [0, 0, 1, 1], [], []>} : vector<352x28xbf16>, vector<28x28xbf16>, vector<352x28xf32> -> vector<352x28xf32>
    %5 = vector.extract_strided_slice %0 {offsets = [8, 0], sizes = [352, 28], strides = [1, 1]} : vector<400x28xbf16> to vector<352x28xbf16>
    %c1 = arith.constant 1 : index
    %c0_4 = arith.constant 0 : index
    %c0_5 = arith.constant 0 : index
    %6 = vector.load %arg1[%c1, %c0_4, %c0_5] : memref<7x28x28xbf16, #tpu.memory_space<vmem>>, vector<1x28x28xbf16>
    %7 = vector.shape_cast %6 : vector<1x28x28xbf16> to vector<28x28xbf16>
    %cst_6 = arith.constant dense<0.000000e+00> : vector<352x28xf32>
    %8 = tpu.matmul %5, %7, %cst_6 {dimension_numbers = #tpu.dot_dimension_numbers<[1], [0], [0], [1], [0, 0, 1, 1], [], []>} : vector<352x28xbf16>, vector<28x28xbf16>, vector<352x28xf32> -> vector<352x28xf32>
    %9 = arith.addf %4, %8 : vector<352x28xf32>
    %10 = vector.extract_strided_slice %0 {offsets = [16, 0], sizes = [352, 28], strides = [1, 1]} : vector<400x28xbf16> to vector<352x28xbf16>
    %c2 = arith.constant 2 : index
    %c0_7 = arith.constant 0 : index
    %c0_8 = arith.constant 0 : index
    %11 = vector.load %arg1[%c2, %c0_7, %c0_8] : memref<7x28x28xbf16, #tpu.memory_space<vmem>>, vector<1x28x28xbf16>
    %12 = vector.shape_cast %11 : vector<1x28x28xbf16> to vector<28x28xbf16>
    %cst_9 = arith.constant dense<0.000000e+00> : vector<352x28xf32>
    %13 = tpu.matmul %10, %12, %cst_9 {dimension_numbers = #tpu.dot_dimension_numbers<[1], [0], [0], [1], [0, 0, 1, 1], [], []>} : vector<352x28xbf16>, vector<28x28xbf16>, vector<352x28xf32> -> vector<352x28xf32>
    %14 = arith.addf %9, %13 : vector<352x28xf32>
    %15 = vector.extract_strided_slice %0 {offsets = [24, 0], sizes = [352, 28], strides = [1, 1]} : vector<400x28xbf16> to vector<352x28xbf16>
    %c3 = arith.constant 3 : index
    %c0_10 = arith.constant 0 : index
    %c0_11 = arith.constant 0 : index
    %16 = vector.load %arg1[%c3, %c0_10, %c0_11] : memref<7x28x28xbf16, #tpu.memory_space<vmem>>, vector<1x28x28xbf16>
    %17 = vector.shape_cast %16 : vector<1x28x28xbf16> to vector<28x28xbf16>
    %cst_12 = arith.constant dense<0.000000e+00> : vector<352x28xf32>
    %18 = tpu.matmul %15, %17, %cst_12 {dimension_numbers = #tpu.dot_dimension_numbers<[1], [0], [0], [1], [0, 0, 1, 1], [], []>} : vector<352x28xbf16>, vector<28x28xbf16>, vector<352x28xf32> -> vector<352x28xf32>
    %19 = arith.addf %14, %18 : vector<352x28xf32>
    %20 = vector.extract_strided_slice %0 {offsets = [32, 0], sizes = [352, 28], strides = [1, 1]} : vector<400x28xbf16> to vector<352x28xbf16>
    %c4 = arith.constant 4 : index
    %c0_13 = arith.constant 0 : index
    %c0_14 = arith.constant 0 : index
    %21 = vector.load %arg1[%c4, %c0_13, %c0_14] : memref<7x28x28xbf16, #tpu.memory_space<vmem>>, vector<1x28x28xbf16>
    %22 = vector.shape_cast %21 : vector<1x28x28xbf16> to vector<28x28xbf16>
    %cst_15 = arith.constant dense<0.000000e+00> : vector<352x28xf32>
    %23 = tpu.matmul %20, %22, %cst_15 {dimension_numbers = #tpu.dot_dimension_numbers<[1], [0], [0], [1], [0, 0, 1, 1], [], []>} : vector<352x28xbf16>, vector<28x28xbf16>, vector<352x28xf32> -> vector<352x28xf32>
    %24 = arith.addf %19, %23 : vector<352x28xf32>
    %25 = vector.extract_strided_slice %0 {offsets = [40, 0], sizes = [352, 28], strides = [1, 1]} : vector<400x28xbf16> to vector<352x28xbf16>
    %c5 = arith.constant 5 : index
    %c0_16 = arith.constant 0 : index
    %c0_17 = arith.constant 0 : index
    %26 = vector.load %arg1[%c5, %c0_16, %c0_17] : memref<7x28x28xbf16, #tpu.memory_space<vmem>>, vector<1x28x28xbf16>
    %27 = vector.shape_cast %26 : vector<1x28x28xbf16> to vector<28x28xbf16>
    %cst_18 = arith.constant dense<0.000000e+00> : vector<352x28xf32>
    %28 = tpu.matmul %25, %27, %cst_18 {dimension_numbers = #tpu.dot_dimension_numbers<[1], [0], [0], [1], [0, 0, 1, 1], [], []>} : vector<352x28xbf16>, vector<28x28xbf16>, vector<352x28xf32> -> vector<352x28xf32>
    %29 = arith.addf %24, %28 : vector<352x28xf32>
    %30 = vector.extract_strided_slice %0 {offsets = [48, 0], sizes = [352, 28], strides = [1, 1]} : vector<400x28xbf16> to vector<352x28xbf16>
    %c6 = arith.constant 6 : index
    %c0_19 = arith.constant 0 : index
    %c0_20 = arith.constant 0 : index
    %31 = vector.load %arg1[%c6, %c0_19, %c0_20] : memref<7x28x28xbf16, #tpu.memory_space<vmem>>, vector<1x28x28xbf16>
    %32 = vector.shape_cast %31 : vector<1x28x28xbf16> to vector<28x28xbf16>
    %cst_21 = arith.constant dense<0.000000e+00> : vector<352x28xf32>
    %33 = tpu.matmul %30, %32, %cst_21 {dimension_numbers = #tpu.dot_dimension_numbers<[1], [0], [0], [1], [0, 0, 1, 1], [], []>} : vector<352x28xbf16>, vector<28x28xbf16>, vector<352x28xf32> -> vector<352x28xf32>
    %34 = arith.addf %29, %33 : vector<352x28xf32>
    %35 = vector.shape_cast %34 : vector<352x28xf32> to vector<11x4x8x28xf32>
    %36 = vector.extract_strided_slice %35 {offsets = [0, 0, 0, 0], sizes = [11, 1, 8, 28], strides = [1, 1, 1, 1]} : vector<11x4x8x28xf32> to vector<11x1x8x28xf32>
    %37 = vector.shape_cast %36 : vector<11x1x8x28xf32> to vector<11x8x28xf32>
    %38 = vector.extract_strided_slice %35 {offsets = [0, 1, 0, 0], sizes = [11, 1, 8, 28], strides = [1, 1, 1, 1]} : vector<11x4x8x28xf32> to vector<11x1x8x28xf32>
    %39 = vector.shape_cast %38 : vector<11x1x8x28xf32> to vector<11x8x28xf32>
    %40 = arith.maximumf %37, %39 : vector<11x8x28xf32>
    %41 = vector.extract_strided_slice %35 {offsets = [0, 2, 0, 0], sizes = [11, 1, 8, 28], strides = [1, 1, 1, 1]} : vector<11x4x8x28xf32> to vector<11x1x8x28xf32>
    %42 = vector.shape_cast %41 : vector<11x1x8x28xf32> to vector<11x8x28xf32>
    %43 = vector.extract_strided_slice %35 {offsets = [0, 3, 0, 0], sizes = [11, 1, 8, 28], strides = [1, 1, 1, 1]} : vector<11x4x8x28xf32> to vector<11x1x8x28xf32>
    %44 = vector.shape_cast %43 : vector<11x1x8x28xf32> to vector<11x8x28xf32>
    %45 = arith.maximumf %42, %44 : vector<11x8x28xf32>
    %46 = arith.maximumf %40, %45 : vector<11x8x28xf32>
    %c0_22 = arith.constant 0 : index
    %c0_23 = arith.constant 0 : index
    %47 = vector.load %arg4[%c0_22, %c0_23] : memref<3x308xf32, #tpu.memory_space<vmem>>, vector<1x28xf32>
    %c1_24 = arith.constant 1 : index
    %c0_25 = arith.constant 0 : index
    %48 = vector.load %arg4[%c1_24, %c0_25] : memref<3x308xf32, #tpu.memory_space<vmem>>, vector<1x308xf32>
    %c2_26 = arith.constant 2 : index
    %c0_27 = arith.constant 0 : index
    %49 = vector.load %arg4[%c2_26, %c0_27] : memref<3x308xf32, #tpu.memory_space<vmem>>, vector<1x128xf32>
    %50 = vector.extract_strided_slice %46 {offsets = [0, 0, 0], sizes = [1, 8, 28], strides = [1, 1, 1]} : vector<11x8x28xf32> to vector<1x8x28xf32>
    %51 = vector.shape_cast %50 : vector<1x8x28xf32> to vector<8x28xf32>
    %52 = vector.broadcast %47 : vector<1x28xf32> to vector<8x28xf32>
    %53 = arith.addf %51, %52 : vector<8x28xf32>
    %cst_28 = arith.constant 0.000000e+00 : f32
    %54 = vector.broadcast %cst_28 : f32 to vector<8x28xf32>
    %55 = arith.maximumf %53, %54 : vector<8x28xf32>
    %56 = arith.truncf %55 : vector<8x28xf32> to vector<8x28xbf16>
    %c0_29 = arith.constant 0 : index
    %c0_30 = arith.constant 0 : index
    %c0_31 = arith.constant 0 : index
    %57 = vector.load %arg2[%c0_29, %c0_30, %c0_31] : memref<11x28x308xbf16, #tpu.memory_space<vmem>>, vector<1x28x308xbf16>
    %58 = vector.shape_cast %57 : vector<1x28x308xbf16> to vector<28x308xbf16>
    %cst_32 = arith.constant dense<0.000000e+00> : vector<8x308xf32>
    %59 = tpu.matmul %56, %58, %cst_32 {dimension_numbers = #tpu.dot_dimension_numbers<[1], [0], [0], [1], [0, 0, 1, 1], [], []>} : vector<8x28xbf16>, vector<28x308xbf16>, vector<8x308xf32> -> vector<8x308xf32>
    %60 = vector.extract_strided_slice %46 {offsets = [1, 0, 0], sizes = [1, 8, 28], strides = [1, 1, 1]} : vector<11x8x28xf32> to vector<1x8x28xf32>
    %61 = vector.shape_cast %60 : vector<1x8x28xf32> to vector<8x28xf32>
    %62 = vector.broadcast %47 : vector<1x28xf32> to vector<8x28xf32>
    %63 = arith.addf %61, %62 : vector<8x28xf32>
    %cst_33 = arith.constant 0.000000e+00 : f32
    %64 = vector.broadcast %cst_33 : f32 to vector<8x28xf32>
    %65 = arith.maximumf %63, %64 : vector<8x28xf32>
    %66 = arith.truncf %65 : vector<8x28xf32> to vector<8x28xbf16>
    %c1_34 = arith.constant 1 : index
    %c0_35 = arith.constant 0 : index
    %c0_36 = arith.constant 0 : index
    %67 = vector.load %arg2[%c1_34, %c0_35, %c0_36] : memref<11x28x308xbf16, #tpu.memory_space<vmem>>, vector<1x28x308xbf16>
    %68 = vector.shape_cast %67 : vector<1x28x308xbf16> to vector<28x308xbf16>
    %cst_37 = arith.constant dense<0.000000e+00> : vector<8x308xf32>
    %69 = tpu.matmul %66, %68, %cst_37 {dimension_numbers = #tpu.dot_dimension_numbers<[1], [0], [0], [1], [0, 0, 1, 1], [], []>} : vector<8x28xbf16>, vector<28x308xbf16>, vector<8x308xf32> -> vector<8x308xf32>
    %70 = arith.addf %59, %69 : vector<8x308xf32>
    %71 = vector.extract_strided_slice %46 {offsets = [2, 0, 0], sizes = [1, 8, 28], strides = [1, 1, 1]} : vector<11x8x28xf32> to vector<1x8x28xf32>
    %72 = vector.shape_cast %71 : vector<1x8x28xf32> to vector<8x28xf32>
    %73 = vector.broadcast %47 : vector<1x28xf32> to vector<8x28xf32>
    %74 = arith.addf %72, %73 : vector<8x28xf32>
    %cst_38 = arith.constant 0.000000e+00 : f32
    %75 = vector.broadcast %cst_38 : f32 to vector<8x28xf32>
    %76 = arith.maximumf %74, %75 : vector<8x28xf32>
    %77 = arith.truncf %76 : vector<8x28xf32> to vector<8x28xbf16>
    %c2_39 = arith.constant 2 : index
    %c0_40 = arith.constant 0 : index
    %c0_41 = arith.constant 0 : index
    %78 = vector.load %arg2[%c2_39, %c0_40, %c0_41] : memref<11x28x308xbf16, #tpu.memory_space<vmem>>, vector<1x28x308xbf16>
    %79 = vector.shape_cast %78 : vector<1x28x308xbf16> to vector<28x308xbf16>
    %cst_42 = arith.constant dense<0.000000e+00> : vector<8x308xf32>
    %80 = tpu.matmul %77, %79, %cst_42 {dimension_numbers = #tpu.dot_dimension_numbers<[1], [0], [0], [1], [0, 0, 1, 1], [], []>} : vector<8x28xbf16>, vector<28x308xbf16>, vector<8x308xf32> -> vector<8x308xf32>
    %81 = arith.addf %70, %80 : vector<8x308xf32>
    %82 = vector.extract_strided_slice %46 {offsets = [3, 0, 0], sizes = [1, 8, 28], strides = [1, 1, 1]} : vector<11x8x28xf32> to vector<1x8x28xf32>
    %83 = vector.shape_cast %82 : vector<1x8x28xf32> to vector<8x28xf32>
    %84 = vector.broadcast %47 : vector<1x28xf32> to vector<8x28xf32>
    %85 = arith.addf %83, %84 : vector<8x28xf32>
    %cst_43 = arith.constant 0.000000e+00 : f32
    %86 = vector.broadcast %cst_43 : f32 to vector<8x28xf32>
    %87 = arith.maximumf %85, %86 : vector<8x28xf32>
    %88 = arith.truncf %87 : vector<8x28xf32> to vector<8x28xbf16>
    %c3_44 = arith.constant 3 : index
    %c0_45 = arith.constant 0 : index
    %c0_46 = arith.constant 0 : index
    %89 = vector.load %arg2[%c3_44, %c0_45, %c0_46] : memref<11x28x308xbf16, #tpu.memory_space<vmem>>, vector<1x28x308xbf16>
    %90 = vector.shape_cast %89 : vector<1x28x308xbf16> to vector<28x308xbf16>
    %cst_47 = arith.constant dense<0.000000e+00> : vector<8x308xf32>
    %91 = tpu.matmul %88, %90, %cst_47 {dimension_numbers = #tpu.dot_dimension_numbers<[1], [0], [0], [1], [0, 0, 1, 1], [], []>} : vector<8x28xbf16>, vector<28x308xbf16>, vector<8x308xf32> -> vector<8x308xf32>
    %92 = arith.addf %81, %91 : vector<8x308xf32>
    %93 = vector.extract_strided_slice %46 {offsets = [4, 0, 0], sizes = [1, 8, 28], strides = [1, 1, 1]} : vector<11x8x28xf32> to vector<1x8x28xf32>
    %94 = vector.shape_cast %93 : vector<1x8x28xf32> to vector<8x28xf32>
    %95 = vector.broadcast %47 : vector<1x28xf32> to vector<8x28xf32>
    %96 = arith.addf %94, %95 : vector<8x28xf32>
    %cst_48 = arith.constant 0.000000e+00 : f32
    %97 = vector.broadcast %cst_48 : f32 to vector<8x28xf32>
    %98 = arith.maximumf %96, %97 : vector<8x28xf32>
    %99 = arith.truncf %98 : vector<8x28xf32> to vector<8x28xbf16>
    %c4_49 = arith.constant 4 : index
    %c0_50 = arith.constant 0 : index
    %c0_51 = arith.constant 0 : index
    %100 = vector.load %arg2[%c4_49, %c0_50, %c0_51] : memref<11x28x308xbf16, #tpu.memory_space<vmem>>, vector<1x28x308xbf16>
    %101 = vector.shape_cast %100 : vector<1x28x308xbf16> to vector<28x308xbf16>
    %cst_52 = arith.constant dense<0.000000e+00> : vector<8x308xf32>
    %102 = tpu.matmul %99, %101, %cst_52 {dimension_numbers = #tpu.dot_dimension_numbers<[1], [0], [0], [1], [0, 0, 1, 1], [], []>} : vector<8x28xbf16>, vector<28x308xbf16>, vector<8x308xf32> -> vector<8x308xf32>
    %103 = arith.addf %92, %102 : vector<8x308xf32>
    %104 = vector.extract_strided_slice %46 {offsets = [5, 0, 0], sizes = [1, 8, 28], strides = [1, 1, 1]} : vector<11x8x28xf32> to vector<1x8x28xf32>
    %105 = vector.shape_cast %104 : vector<1x8x28xf32> to vector<8x28xf32>
    %106 = vector.broadcast %47 : vector<1x28xf32> to vector<8x28xf32>
    %107 = arith.addf %105, %106 : vector<8x28xf32>
    %cst_53 = arith.constant 0.000000e+00 : f32
    %108 = vector.broadcast %cst_53 : f32 to vector<8x28xf32>
    %109 = arith.maximumf %107, %108 : vector<8x28xf32>
    %110 = arith.truncf %109 : vector<8x28xf32> to vector<8x28xbf16>
    %c5_54 = arith.constant 5 : index
    %c0_55 = arith.constant 0 : index
    %c0_56 = arith.constant 0 : index
    %111 = vector.load %arg2[%c5_54, %c0_55, %c0_56] : memref<11x28x308xbf16, #tpu.memory_space<vmem>>, vector<1x28x308xbf16>
    %112 = vector.shape_cast %111 : vector<1x28x308xbf16> to vector<28x308xbf16>
    %cst_57 = arith.constant dense<0.000000e+00> : vector<8x308xf32>
    %113 = tpu.matmul %110, %112, %cst_57 {dimension_numbers = #tpu.dot_dimension_numbers<[1], [0], [0], [1], [0, 0, 1, 1], [], []>} : vector<8x28xbf16>, vector<28x308xbf16>, vector<8x308xf32> -> vector<8x308xf32>
    %114 = arith.addf %103, %113 : vector<8x308xf32>
    %115 = vector.extract_strided_slice %46 {offsets = [6, 0, 0], sizes = [1, 8, 28], strides = [1, 1, 1]} : vector<11x8x28xf32> to vector<1x8x28xf32>
    %116 = vector.shape_cast %115 : vector<1x8x28xf32> to vector<8x28xf32>
    %117 = vector.broadcast %47 : vector<1x28xf32> to vector<8x28xf32>
    %118 = arith.addf %116, %117 : vector<8x28xf32>
    %cst_58 = arith.constant 0.000000e+00 : f32
    %119 = vector.broadcast %cst_58 : f32 to vector<8x28xf32>
    %120 = arith.maximumf %118, %119 : vector<8x28xf32>
    %121 = arith.truncf %120 : vector<8x28xf32> to vector<8x28xbf16>
    %c6_59 = arith.constant 6 : index
    %c0_60 = arith.constant 0 : index
    %c0_61 = arith.constant 0 : index
    %122 = vector.load %arg2[%c6_59, %c0_60, %c0_61] : memref<11x28x308xbf16, #tpu.memory_space<vmem>>, vector<1x28x308xbf16>
    %123 = vector.shape_cast %122 : vector<1x28x308xbf16> to vector<28x308xbf16>
    %cst_62 = arith.constant dense<0.000000e+00> : vector<8x308xf32>
    %124 = tpu.matmul %121, %123, %cst_62 {dimension_numbers = #tpu.dot_dimension_numbers<[1], [0], [0], [1], [0, 0, 1, 1], [], []>} : vector<8x28xbf16>, vector<28x308xbf16>, vector<8x308xf32> -> vector<8x308xf32>
    %125 = arith.addf %114, %124 : vector<8x308xf32>
    %126 = vector.extract_strided_slice %46 {offsets = [7, 0, 0], sizes = [1, 8, 28], strides = [1, 1, 1]} : vector<11x8x28xf32> to vector<1x8x28xf32>
    %127 = vector.shape_cast %126 : vector<1x8x28xf32> to vector<8x28xf32>
    %128 = vector.broadcast %47 : vector<1x28xf32> to vector<8x28xf32>
    %129 = arith.addf %127, %128 : vector<8x28xf32>
    %cst_63 = arith.constant 0.000000e+00 : f32
    %130 = vector.broadcast %cst_63 : f32 to vector<8x28xf32>
    %131 = arith.maximumf %129, %130 : vector<8x28xf32>
    %132 = arith.truncf %131 : vector<8x28xf32> to vector<8x28xbf16>
    %c7 = arith.constant 7 : index
    %c0_64 = arith.constant 0 : index
    %c0_65 = arith.constant 0 : index
    %133 = vector.load %arg2[%c7, %c0_64, %c0_65] : memref<11x28x308xbf16, #tpu.memory_space<vmem>>, vector<1x28x308xbf16>
    %134 = vector.shape_cast %133 : vector<1x28x308xbf16> to vector<28x308xbf16>
    %cst_66 = arith.constant dense<0.000000e+00> : vector<8x308xf32>
    %135 = tpu.matmul %132, %134, %cst_66 {dimension_numbers = #tpu.dot_dimension_numbers<[1], [0], [0], [1], [0, 0, 1, 1], [], []>} : vector<8x28xbf16>, vector<28x308xbf16>, vector<8x308xf32> -> vector<8x308xf32>
    %136 = arith.addf %125, %135 : vector<8x308xf32>
    %137 = vector.extract_strided_slice %46 {offsets = [8, 0, 0], sizes = [1, 8, 28], strides = [1, 1, 1]} : vector<11x8x28xf32> to vector<1x8x28xf32>
    %138 = vector.shape_cast %137 : vector<1x8x28xf32> to vector<8x28xf32>
    %139 = vector.broadcast %47 : vector<1x28xf32> to vector<8x28xf32>
    %140 = arith.addf %138, %139 : vector<8x28xf32>
    %cst_67 = arith.constant 0.000000e+00 : f32
    %141 = vector.broadcast %cst_67 : f32 to vector<8x28xf32>
    %142 = arith.maximumf %140, %141 : vector<8x28xf32>
    %143 = arith.truncf %142 : vector<8x28xf32> to vector<8x28xbf16>
    %c8 = arith.constant 8 : index
    %c0_68 = arith.constant 0 : index
    %c0_69 = arith.constant 0 : index
    %144 = vector.load %arg2[%c8, %c0_68, %c0_69] : memref<11x28x308xbf16, #tpu.memory_space<vmem>>, vector<1x28x308xbf16>
    %145 = vector.shape_cast %144 : vector<1x28x308xbf16> to vector<28x308xbf16>
    %cst_70 = arith.constant dense<0.000000e+00> : vector<8x308xf32>
    %146 = tpu.matmul %143, %145, %cst_70 {dimension_numbers = #tpu.dot_dimension_numbers<[1], [0], [0], [1], [0, 0, 1, 1], [], []>} : vector<8x28xbf16>, vector<28x308xbf16>, vector<8x308xf32> -> vector<8x308xf32>
    %147 = arith.addf %136, %146 : vector<8x308xf32>
    %148 = vector.extract_strided_slice %46 {offsets = [9, 0, 0], sizes = [1, 8, 28], strides = [1, 1, 1]} : vector<11x8x28xf32> to vector<1x8x28xf32>
    %149 = vector.shape_cast %148 : vector<1x8x28xf32> to vector<8x28xf32>
    %150 = vector.broadcast %47 : vector<1x28xf32> to vector<8x28xf32>
    %151 = arith.addf %149, %150 : vector<8x28xf32>
    %cst_71 = arith.constant 0.000000e+00 : f32
    %152 = vector.broadcast %cst_71 : f32 to vector<8x28xf32>
    %153 = arith.maximumf %151, %152 : vector<8x28xf32>
    %154 = arith.truncf %153 : vector<8x28xf32> to vector<8x28xbf16>
    %c9 = arith.constant 9 : index
    %c0_72 = arith.constant 0 : index
    %c0_73 = arith.constant 0 : index
    %155 = vector.load %arg2[%c9, %c0_72, %c0_73] : memref<11x28x308xbf16, #tpu.memory_space<vmem>>, vector<1x28x308xbf16>
    %156 = vector.shape_cast %155 : vector<1x28x308xbf16> to vector<28x308xbf16>
    %cst_74 = arith.constant dense<0.000000e+00> : vector<8x308xf32>
    %157 = tpu.matmul %154, %156, %cst_74 {dimension_numbers = #tpu.dot_dimension_numbers<[1], [0], [0], [1], [0, 0, 1, 1], [], []>} : vector<8x28xbf16>, vector<28x308xbf16>, vector<8x308xf32> -> vector<8x308xf32>
    %158 = arith.addf %147, %157 : vector<8x308xf32>
    %159 = vector.extract_strided_slice %46 {offsets = [10, 0, 0], sizes = [1, 8, 28], strides = [1, 1, 1]} : vector<11x8x28xf32> to vector<1x8x28xf32>
    %160 = vector.shape_cast %159 : vector<1x8x28xf32> to vector<8x28xf32>
    %161 = vector.broadcast %47 : vector<1x28xf32> to vector<8x28xf32>
    %162 = arith.addf %160, %161 : vector<8x28xf32>
    %cst_75 = arith.constant 0.000000e+00 : f32
    %163 = vector.broadcast %cst_75 : f32 to vector<8x28xf32>
    %164 = arith.maximumf %162, %163 : vector<8x28xf32>
    %165 = arith.truncf %164 : vector<8x28xf32> to vector<8x28xbf16>
    %c10 = arith.constant 10 : index
    %c0_76 = arith.constant 0 : index
    %c0_77 = arith.constant 0 : index
    %166 = vector.load %arg2[%c10, %c0_76, %c0_77] : memref<11x28x308xbf16, #tpu.memory_space<vmem>>, vector<1x28x308xbf16>
    %167 = vector.shape_cast %166 : vector<1x28x308xbf16> to vector<28x308xbf16>
    %cst_78 = arith.constant dense<0.000000e+00> : vector<8x308xf32>
    %168 = tpu.matmul %165, %167, %cst_78 {dimension_numbers = #tpu.dot_dimension_numbers<[1], [0], [0], [1], [0, 0, 1, 1], [], []>} : vector<8x28xbf16>, vector<28x308xbf16>, vector<8x308xf32> -> vector<8x308xf32>
    %169 = arith.addf %158, %168 : vector<8x308xf32>
    %170 = vector.broadcast %48 : vector<1x308xf32> to vector<8x308xf32>
    %171 = arith.addf %169, %170 : vector<8x308xf32>
    %cst_79 = arith.constant 0.000000e+00 : f32
    %172 = vector.broadcast %cst_79 : f32 to vector<8x308xf32>
    %173 = arith.maximumf %171, %172 : vector<8x308xf32>
    %174 = arith.truncf %173 : vector<8x308xf32> to vector<8x308xbf16>
    %c0_80 = arith.constant 0 : index
    %c0_81 = arith.constant 0 : index
    %175 = vector.load %arg3[%c0_80, %c0_81] : memref<308x128xbf16, #tpu.memory_space<vmem>>, vector<308x128xbf16>
    %cst_82 = arith.constant dense<0.000000e+00> : vector<8x128xf32>
    %176 = tpu.matmul %174, %175, %cst_82 {dimension_numbers = #tpu.dot_dimension_numbers<[1], [0], [0], [1], [0, 0, 1, 1], [], []>} : vector<8x308xbf16>, vector<308x128xbf16>, vector<8x128xf32> -> vector<8x128xf32>
    %177 = vector.broadcast %49 : vector<1x128xf32> to vector<8x128xf32>
    %178 = arith.addf %176, %177 : vector<8x128xf32>
    %c0_83 = arith.constant 0 : index
    %c0_84 = arith.constant 0 : index
    %179 = vector.load %arg5[%c0_83, %c0_84] : memref<8x128xf32, #tpu.memory_space<vmem>>, vector<8x128xf32>
    tpu.vector_store %arg5[%c0_83, %c0_84], %178 {strides = array<i32>} : memref<8x128xf32, #tpu.memory_space<vmem>>, vector<8x128xf32>,
    return
  }
}

</mosaic_0001>

<llo_original>
// kernel: convnet2_forward.1
$region0: #{convnet2_forward.1}
  #allocation0 [shape = 'u32[]', space=smem, size = 0x4, offset = 0x4, fixed_abs, tag = 'smem constant byte address 0x4 - core index']
  #allocation1 [shape = 'u32[144,128]{1,0:T(1,128)}', space=vmem, size = 0x12000, scoped, tag = 'internal scratch']
  %s0 = inlined_call_operand.vmem [shape: bf16[400,28], index: 0, kind: input, shape index: {}]
  %s1 = inlined_call_operand.vmem [shape: bf16[7,28,28], index: 1, kind: input, shape index: {}]
  %s2 = inlined_call_operand.hbm [shape: bf16[11,28,308], index: 2, kind: input, shape index: {}]
  %s3 = inlined_call_operand.vmem [shape: bf16[308,128], index: 3, kind: input, shape index: {}]
  %s4 = inlined_call_operand.vmem [shape: f32[3,308], index: 4, kind: input, shape index: {}]
  %s5 = inlined_call_operand.vmem [shape: f32[8,128], index: 5, kind: output, shape index: {}]
  %s6 = sld [smem:[#allocation0]]
  $region34: #{convnet2_forward.1} parent=0
    _
  %s8 = ssub.s32 1, %s6
  %s9 = scalar_select 0, %s8, %s6
  $region1: #{convnet2_forward.1} parent=0
    #allocation2 [shape = 'u8[270336]{0}', space=vmem, size = 0x42000, scoped, tag = 'input window, operand 2, single buffered']
    #allocation3 [shape = 's32[1]{0}', space=sflag, size = 0x4, scoped, tag = 'scoped memory for convnet2_forward.1']
    %10 = vsyncpa [#allocation3], 0
    // Predicated region
    $region2: #{convnet2_forward.1} parent=1 // pred_check
      _
    $region3: #{convnet2_forward.1} parent=1 // pred_check_branch
      %12 = sbr.rel (0) target = $region5
    $region4: #{convnet2_forward.1} parent=1 // pred_region
      _
    $region5: #{convnet2_forward.1} parent=1 // pred_fallthru
      _
    // Predicated region
    $region6: #{convnet2_forward.1} parent=1 // pred_check
      _
    $region7: #{convnet2_forward.1} parent=1 // pred_check_branch
      %14 = sbr.rel (0) target = $region9
    $region8: #{convnet2_forward.1} parent=1 // pred_region
      _
    $region9: #{convnet2_forward.1} parent=1 // pred_fallthru
      _
    // Predicated region
    $region10: #{convnet2_forward.1} parent=1 // pred_check
      _
    $region11: #{convnet2_forward.1} parent=1 // pred_check_branch
      %16 = sbr.rel (0) target = $region13
    $region12: #{convnet2_forward.1} parent=1 // pred_region
      %s18 = ssub.s32 8448, 8448
      %19 = vsyncadd [#allocation3], %s18
      %s20 = sshll.u32 [#allocation2], 4
      %s21 = int_to_ptr.vmem [resolvable:$true] %s20
      %26 = dma.hbm_to_vmem [thread:$0]  %s2, 8448, %s21, [#allocation3], 192, 192, 12
    $region13: #{convnet2_forward.1} parent=1 // pred_fallthru
      _
    // Predicated region
    $region14: #{convnet2_forward.1} parent=1 // pred_check
      _
    $region15: #{convnet2_forward.1} parent=1 // pred_check_branch
      %28 = sbr.rel (0) target = $region17
    $region16: #{convnet2_forward.1} parent=1 // pred_region
      _
    $region17: #{convnet2_forward.1} parent=1 // pred_fallthru
      _
    // Predicated region
    $region18: #{convnet2_forward.1} parent=1 // pred_check
      _
    $region19: #{convnet2_forward.1} parent=1 // pred_check_branch
      %30 = sbr.rel (0) target = $region21
    $region20: #{convnet2_forward.1} parent=1 // pred_region
      _
    $region21: #{convnet2_forward.1} parent=1 // pred_fallthru
      _
    // Predicated region
    $region22: #{convnet2_forward.1} parent=1 // pred_check
      _
    $region23: #{convnet2_forward.1} parent=1 // pred_check_branch
      %32 = sbr.rel (0) target = $region25
    $region24: #{convnet2_forward.1} parent=1 // pred_region
      %33 = dma.done [#allocation3], 8448
    $region25: #{convnet2_forward.1} parent=1 // pred_fallthru
      _
    %v35 = vld [vmem:[%s0] sm:$0xf]
    %v36 = vld [vmem:[%s0 + $0x4] sm:$0xf]
    %v37 = vld [vmem:[%s0 + $0x8] sm:$0xf]
    %v38 = vld [vmem:[%s0 + $0xc] sm:$0xf]
    %v39 = vld [vmem:[%s0 + $0x10] sm:$0xf]
    %v40 = vld [vmem:[%s0 + $0x14] sm:$0xf]
    %v41 = vld [vmem:[%s0 + $0x18] sm:$0xf]
    %v42 = vld [vmem:[%s0 + $0x1c] sm:$0xf]
    %v43 = vld [vmem:[%s0 + $0x20] sm:$0xf]
    %v44 = vld [vmem:[%s0 + $0x24] sm:$0xf]
    %v45 = vld [vmem:[%s0 + $0x28] sm:$0xf]
    %v46 = vld [vmem:[%s0 + $0x2c] sm:$0xf]
    %v47 = vld [vmem:[%s0 + $0x30] sm:$0xf]
    %v48 = vld [vmem:[%s0 + $0x34] sm:$0xf]
    %v49 = vld [vmem:[%s0 + $0x38] sm:$0xf]
    %v50 = vld [vmem:[%s0 + $0x3c] sm:$0xf]
    %v51 = vld [vmem:[%s0 + $0x40] sm:$0xf]
    %v52 = vld [vmem:[%s0 + $0x44] sm:$0xf]
    %v53 = vld [vmem:[%s0 + $0x48] sm:$0xf]
    %v54 = vld [vmem:[%s0 + $0x4c] sm:$0xf]
    %v55 = vld [vmem:[%s0 + $0x50] sm:$0xf]
    %v56 = vld [vmem:[%s0 + $0x54] sm:$0xf]
    %v57 = vld [vmem:[%s0 + $0x58] sm:$0xf]
    %v58 = vld [vmem:[%s0 + $0x5c] sm:$0xf]
    %v59 = vld [vmem:[%s0 + $0x60] sm:$0xf]
    %v60 = vld [vmem:[%s0 + $0x64] sm:$0xf]
    %v61 = vld [vmem:[%s0 + $0x68] sm:$0xf]
    %v62 = vld [vmem:[%s0 + $0x6c] sm:$0xf]
    %v63 = vld [vmem:[%s0 + $0x70] sm:$0xf]
    %v64 = vld [vmem:[%s0 + $0x74] sm:$0xf]
    %v65 = vld [vmem:[%s0 + $0x78] sm:$0xf]
    %v66 = vld [vmem:[%s0 + $0x7c] sm:$0xf]
    %v67 = vld [vmem:[%s0 + $0x80] sm:$0xf]
    %v68 = vld [vmem:[%s0 + $0x84] sm:$0xf]
    %v69 = vld [vmem:[%s0 + $0x88] sm:$0xf]
    %v70 = vld [vmem:[%s0 + $0x8c] sm:$0xf]
    %v71 = vld [vmem:[%s0 + $0x90] sm:$0xf]
    %v72 = vld [vmem:[%s0 + $0x94] sm:$0xf]
    %v73 = vld [vmem:[%s0 + $0x98] sm:$0xf]
    %v74 = vld [vmem:[%s0 + $0x9c] sm:$0xf]
    %v75 = vld [vmem:[%s0 + $0xa0] sm:$0xf]
    %v76 = vld [vmem:[%s0 + $0xa4] sm:$0xf]
    %v77 = vld [vmem:[%s0 + $0xa8] sm:$0xf]
    %v78 = vld [vmem:[%s0 + $0xac] sm:$0xf]
    %v79 = vld [vmem:[%s0 + $0xb0] sm:$0xf]
    %v80 = vld [vmem:[%s0 + $0xb4] sm:$0xf]
    %v81 = vld [vmem:[%s0 + $0xb8] sm:$0xf]
    %v82 = vld [vmem:[%s0 + $0xbc] sm:$0xf]
    %v83 = vld [vmem:[%s0 + $0xc0] sm:$0xf]
    %v84 = vld [vmem:[%s0 + $0xc4] sm:$0xf]
    %v85 = vld [vmem:[%s1] sm:$0xf]
    %v86 = vld [vmem:[%s1 + $0x4] sm:$0xf]
    %v87 = vld [vmem:[%s1 + $0x8] sm:$0xf]
    %v88 = vld [vmem:[%s1 + $0xc] sm:$0x3]
    %s89 = scalar_lea.vmem %s1, 16
    %v90 = vld [vmem:[%s89] sm:$0xf]
    %v91 = vld [vmem:[%s89 + $0x4] sm:$0xf]
    %v92 = vld [vmem:[%s89 + $0x8] sm:$0xf]
    %v93 = vld [vmem:[%s89 + $0xc] sm:$0x3]
    %v138 = vunpack.c.l.b16 %v36
    %v139 = vunpack.c.l.b16 %v37
    %v140 = vunpack.c.l.b16 %v38
    %v141 = vunpack.c.l.b16 %v39
    %v142 = vunpack.c.l.b16 %v40
    %v143 = vunpack.c.l.b16 %v41
    %v144 = vunpack.c.l.b16 %v42
    %v145 = vunpack.c.l.b16 %v43
    %v146 = vunpack.c.l.b16 %v44
    %v147 = vunpack.c.l.b16 %v45
    %v148 = vunpack.c.l.b16 %v46
    %v149 = vunpack.c.l.b16 %v47
    %v150 = vunpack.c.l.b16 %v48
    %v151 = vunpack.c.l.b16 %v49
    %v152 = vunpack.c.l.b16 %v50
    %v153 = vunpack.c.l.b16 %v51
    %v154 = vunpack.c.l.b16 %v52
    %v155 = vunpack.c.l.b16 %v53
    %v156 = vunpack.c.l.b16 %v54
    %v157 = vunpack.c.l.b16 %v55
    %v158 = vunpack.c.l.b16 %v56
    %v159 = vunpack.c.l.b16 %v57
    %v160 = vunpack.c.l.b16 %v58
    %v161 = vunpack.c.l.b16 %v59
    %v162 = vunpack.c.l.b16 %v60
    %v163 = vunpack.c.l.b16 %v61
    %v164 = vunpack.c.l.b16 %v62
    %v165 = vunpack.c.l.b16 %v63
    %v166 = vunpack.c.l.b16 %v64
    %v167 = vunpack.c.l.b16 %v65
    %v168 = vunpack.c.l.b16 %v66
    %v169 = vunpack.c.l.b16 %v67
    %v170 = vunpack.c.l.b16 %v68
    %v171 = vunpack.c.l.b16 %v69
    %v172 = vunpack.c.l.b16 %v70
    %v173 = vunpack.c.l.b16 %v71
    %v174 = vunpack.c.l.b16 %v72
    %v175 = vunpack.c.l.b16 %v73
    %v176 = vunpack.c.l.b16 %v74
    %v177 = vunpack.c.l.b16 %v75
    %v178 = vunpack.c.l.b16 %v76
    %v179 = vunpack.c.l.b16 %v77
    %v180 = vunpack.c.l.b16 %v78
    %v181 = vunpack.c.l.b16 %v79
    %v182 = vpack.c.b16 %v139, %v138
    %v183 = vpack.c.b16 %v141, %v140
    %v184 = vpack.c.b16 %v143, %v142
    %v185 = vpack.c.b16 %v145, %v144
    %v186 = vpack.c.b16 %v147, %v146
    %v187 = vpack.c.b16 %v149, %v148
    %v188 = vpack.c.b16 %v151, %v150
    %v189 = vpack.c.b16 %v153, %v152
    %v190 = vpack.c.b16 %v155, %v154
    %v191 = vpack.c.b16 %v157, %v156
    %v192 = vpack.c.b16 %v159, %v158
    %v193 = vpack.c.b16 %v161, %v160
    %v194 = vpack.c.b16 %v163, %v162
    %v195 = vpack.c.b16 %v165, %v164
    %v196 = vpack.c.b16 %v167, %v166
    %v197 = vpack.c.b16 %v169, %v168
    %v198 = vpack.c.b16 %v171, %v170
    %v199 = vpack.c.b16 %v173, %v172
    %v200 = vpack.c.b16 %v175, %v174
    %v201 = vpack.c.b16 %v177, %v176
    %v202 = vpack.c.b16 %v179, %v178
    %v203 = vpack.c.b16 %v181, %v180
    %v208 = vunpack.c.l.b16 %v90
    %v209 = vunpack.c.l.b16 %v91
    %v210 = vunpack.c.l.b16 %v92
    %v211 = vunpack.c.l.b16 %v93
    %v212 = vpack.c.b16 %v209, %v208
    %v213 = vpack.c.b16 %v211, %v210
    %vm215 = vcmask 228352
    %v217 = vsel %vm215, %v182, 0
    %v220 = vsel %vm215, %v183, 0
    %v223 = vsel %vm215, %v184, 0
    %v226 = vsel %vm215, %v185, 0
    %v229 = vsel %vm215, %v186, 0
    %v232 = vsel %vm215, %v187, 0
    %v235 = vsel %vm215, %v188, 0
    %v238 = vsel %vm215, %v189, 0
    %v241 = vsel %vm215, %v190, 0
    %v244 = vsel %vm215, %v191, 0
    %v247 = vsel %vm215, %v192, 0
    %v250 = vsel %vm215, %v193, 0
    %v253 = vsel %vm215, %v194, 0
    %v256 = vsel %vm215, %v195, 0
    %v259 = vsel %vm215, %v196, 0
    %v262 = vsel %vm215, %v197, 0
    %v265 = vsel %vm215, %v198, 0
    %v268 = vsel %vm215, %v199, 0
    %v271 = vsel %vm215, %v200, 0
    %v274 = vsel %vm215, %v201, 0
    %v277 = vsel %vm215, %v202, 0
    %v280 = vsel %vm215, %v203, 0
    %vm282 = vcmask 1045504
    %v284 = vsel %vm282, %v213, 0
    %286 = vmatprep.subr.bf16.mxu0 0
    %287 = vmatpush1.bf16.msra.mxu0 0
    %288 = vmatprep.subr.bf16.mxu0 0
    %289 = vmatpush1.bf16.msra.mxu0 0
    %290 = vmatprep.subr.bf16.mxu0 0
    %291 = vmatpush1.bf16.msra.mxu0 0
    %292 = vmatprep.subr.bf16.mxu0 0
    %293 = vmatpush1.bf16.msra.mxu0 0
    %294 = vmatprep.subr.bf16.mxu0 0
    %295 = vmatpush1.bf16.msra.mxu0 0
    %296 = vmatprep.subr.bf16.mxu0 0
    %297 = vmatpush1.bf16.msra.mxu0 0
    %298 = vmatprep.subr.bf16.mxu0 0
    %299 = vmatpush1.bf16.msra.mxu0 %v284
    %300 = vmatprep.subr.bf16.mxu0 0
    %301 = vmatpush1.bf16.msra.mxu0 %v212
    %302 = vmatprep.subr.bf16.mxu0 0
    %303 = vmatpush2.bf16.msra.mxu0 0
    %304 = vmatprep.subr.bf16.mxu0 0
    %305 = vmatpush2.bf16.msra.mxu0 0
    %306 = vmatprep.subr.bf16.mxu0 0
    %307 = vmatpush2.bf16.msra.mxu0 0
    %308 = vmatprep.subr.bf16.mxu0 0
    %309 = vmatpush2.bf16.msra.mxu0 0
    %310 = vmatprep.subr.bf16.mxu0 0
    %311 = vmatpush2.bf16.msra.mxu0 0
    %312 = vmatprep.subr.bf16.mxu0 0
    %313 = vmatpush2.bf16.msra.mxu0 0
    %314 = vmatprep.subr.bf16.mxu0 0
    %315 = vmatpush2.bf16.msra.mxu0 0
    %316 = vmatprep.subr.bf16.mxu0 0
    %317 = vmatpush2.bf16.msra.mxu0 0
    %318 = vmatprep.mubr.bf16.mxu0 0
    %319 = vmatmul.mubr.bf16.gmra.mxu0 %v217
    %v320 = vpop.f32.mrf.mxu0
    %v321 = vadd.f32 0.0, %v320
    %v322 = vpop.f32.mrf.mxu0
    %v323 = vpop.f32.mrf.mxu0
    %v324 = vadd.f32 0.0, %v323
    %v325 = vpop.f32.mrf.mxu0
    %326 = vmatprep.mubr.bf16.mxu0 0
    %327 = vmatmul.mubr.bf16.gmra.mxu0 %v220
    %v328 = vpop.f32.mrf.mxu0
    %v329 = vadd.f32 0.0, %v328
    %v330 = vpop.f32.mrf.mxu0
    %v331 = vpop.f32.mrf.mxu0
    %v332 = vadd.f32 0.0, %v331
    %v333 = vpop.f32.mrf.mxu0
    %334 = vmatprep.mubr.bf16.mxu0 0
    %335 = vmatmul.mubr.bf16.gmra.mxu0 %v223
    %v336 = vpop.f32.mrf.mxu0
    %v337 = vadd.f32 0.0, %v336
    %v338 = vpop.f32.mrf.mxu0
    %v339 = vpop.f32.mrf.mxu0
    %v340 = vadd.f32 0.0, %v339
    %v341 = vpop.f32.mrf.mxu0
    %342 = vmatprep.mubr.bf16.mxu0 0
    %343 = vmatmul.mubr.bf16.gmra.mxu0 %v226
    %v344 = vpop.f32.mrf.mxu0
    %v345 = vadd.f32 0.0, %v344
    %v346 = vpop.f32.mrf.mxu0
    %v347 = vpop.f32.mrf.mxu0
    %v348 = vadd.f32 0.0, %v347
    %v349 = vpop.f32.mrf.mxu0
    %350 = vmatprep.mubr.bf16.mxu0 0
    %351 = vmatmul.mubr.bf16.gmra.mxu0 %v229
    %v352 = vpop.f32.mrf.mxu0
    %v353 = vadd.f32 0.0, %v352
    %v354 = vpop.f32.mrf.mxu0
    %v355 = vpop.f32.mrf.mxu0
    %v356 = vadd.f32 0.0, %v355
    %v357 = vpop.f32.mrf.mxu0
    %358 = vmatprep.mubr.bf16.mxu0 0
    %359 = vmatmul.mubr.bf16.gmra.mxu0 %v232
    %v360 = vpop.f32.mrf.mxu0
    %v361 = vadd.f32 0.0, %v360
    %v362 = vpop.f32.mrf.mxu0
    %v363 = vpop.f32.mrf.mxu0
    %v364 = vadd.f32 0.0, %v363
    %v365 = vpop.f32.mrf.mxu0
    %366 = vmatprep.mubr.bf16.mxu0 0
    %367 = vmatmul.mubr.bf16.gmra.mxu0 %v235
    %v368 = vpop.f32.mrf.mxu0
    %v369 = vadd.f32 0.0, %v368
    %v370 = vpop.f32.mrf.mxu0
    %v371 = vpop.f32.mrf.mxu0
    %v372 = vadd.f32 0.0, %v371
    %v373 = vpop.f32.mrf.mxu0
    %374 = vmatprep.mubr.bf16.mxu0 0
    %375 = vmatmul.mubr.bf16.gmra.mxu0 %v238
    %v376 = vpop.f32.mrf.mxu0
    %v377 = vadd.f32 0.0, %v376
    %v378 = vpop.f32.mrf.mxu0
    %v379 = vpop.f32.mrf.mxu0
    %v380 = vadd.f32 0.0, %v379
    %v381 = vpop.f32.mrf.mxu0
    %382 = vmatprep.mubr.bf16.mxu0 0
    %383 = vmatmul.mubr.bf16.gmra.mxu0 %v241
    %v384 = vpop.f32.mrf.mxu0
    %v385 = vadd.f32 0.0, %v384
    %v386 = vpop.f32.mrf.mxu0
    %v387 = vpop.f32.mrf.mxu0
    %v388 = vadd.f32 0.0, %v387
    %v389 = vpop.f32.mrf.mxu0
    %390 = vmatprep.mubr.bf16.mxu0 0
    %391 = vmatmul.mubr.bf16.gmra.mxu0 %v244
    %v392 = vpop.f32.mrf.mxu0
    %v393 = vadd.f32 0.0, %v392
    %v394 = vpop.f32.mrf.mxu0
    %v395 = vpop.f32.mrf.mxu0
    %v396 = vadd.f32 0.0, %v395
    %v397 = vpop.f32.mrf.mxu0
    %398 = vmatprep.mubr.bf16.mxu0 0
    %399 = vmatmul.mubr.bf16.gmra.mxu0 %v247
    %v400 = vpop.f32.mrf.mxu0
    %v401 = vadd.f32 0.0, %v400
    %v402 = vpop.f32.mrf.mxu0
    %v403 = vpop.f32.mrf.mxu0
    %v404 = vadd.f32 0.0, %v403
    %v405 = vpop.f32.mrf.mxu0
    %406 = vmatprep.mubr.bf16.mxu0 0
    %407 = vmatmul.mubr.bf16.gmra.mxu0 %v250
    %v408 = vpop.f32.mrf.mxu0
    %v409 = vadd.f32 0.0, %v408
    %v410 = vpop.f32.mrf.mxu0
    %v411 = vpop.f32.mrf.mxu0
    %v412 = vadd.f32 0.0, %v411
    %v413 = vpop.f32.mrf.mxu0
    %414 = vmatprep.mubr.bf16.mxu0 0
    %415 = vmatmul.mubr.bf16.gmra.mxu0 %v253
    %v416 = vpop.f32.mrf.mxu0
    %v417 = vadd.f32 0.0, %v416
    %v418 = vpop.f32.mrf.mxu0
    %v419 = vpop.f32.mrf.mxu0
    %v420 = vadd.f32 0.0, %v419
    %v421 = vpop.f32.mrf.mxu0
    %422 = vmatprep.mubr.bf16.mxu0 0
    %423 = vmatmul.mubr.bf16.gmra.mxu0 %v256
    %v424 = vpop.f32.mrf.mxu0
    %v425 = vadd.f32 0.0, %v424
    %v426 = vpop.f32.mrf.mxu0
    %v427 = vpop.f32.mrf.mxu0
    %v428 = vadd.f32 0.0, %v427
    %v429 = vpop.f32.mrf.mxu0
    %430 = vmatprep.mubr.bf16.mxu0 0
    %431 = vmatmul.mubr.bf16.gmra.mxu0 %v259
    %v432 = vpop.f32.mrf.mxu0
    %v433 = vadd.f32 0.0, %v432
    %v434 = vpop.f32.mrf.mxu0
    %v435 = vpop.f32.mrf.mxu0
    %v436 = vadd.f32 0.0, %v435
    %v437 = vpop.f32.mrf.mxu0
    %438 = vmatprep.mubr.bf16.mxu0 0
    %439 = vmatmul.mubr.bf16.gmra.mxu0 %v262
    %v440 = vpop.f32.mrf.mxu0
    %v441 = vadd.f32 0.0, %v440
    %v442 = vpop.f32.mrf.mxu0
    %v443 = vpop.f32.mrf.mxu0
    %v444 = vadd.f32 0.0, %v443
    %v445 = vpop.f32.mrf.mxu0
    %446 = vmatprep.mubr.bf16.mxu0 0
    %447 = vmatmul.mubr.bf16.gmra.mxu0 %v265
    %v448 = vpop.f32.mrf.mxu0
    %v449 = vadd.f32 0.0, %v448
    %v450 = vpop.f32.mrf.mxu0
    %v451 = vpop.f32.mrf.mxu0
    %v452 = vadd.f32 0.0, %v451
    %v453 = vpop.f32.mrf.mxu0
    %454 = vmatprep.mubr.bf16.mxu0 0
    %455 = vmatmul.mubr.bf16.gmra.mxu0 %v268
    %v456 = vpop.f32.mrf.mxu0
    %v457 = vadd.f32 0.0, %v456
    %v458 = vpop.f32.mrf.mxu0
    %v459 = vpop.f32.mrf.mxu0
    %v460 = vadd.f32 0.0, %v459
    %v461 = vpop.f32.mrf.mxu0
    %462 = vmatprep.mubr.bf16.mxu0 0
    %463 = vmatmul.mubr.bf16.gmra.mxu0 %v271
    %v464 = vpop.f32.mrf.mxu0
    %v465 = vadd.f32 0.0, %v464
    %v466 = vpop.f32.mrf.mxu0
    %v467 = vpop.f32.mrf.mxu0
    %v468 = vadd.f32 0.0, %v467
    %v469 = vpop.f32.mrf.mxu0
    %470 = vmatprep.mubr.bf16.mxu0 0
    %471 = vmatmul.mubr.bf16.gmra.mxu0 %v274
    %v472 = vpop.f32.mrf.mxu0
    %v473 = vadd.f32 0.0, %v472
    %v474 = vpop.f32.mrf.mxu0
    %v475 = vpop.f32.mrf.mxu0
    %v476 = vadd.f32 0.0, %v475
    %v477 = vpop.f32.mrf.mxu0
    %478 = vmatprep.mubr.bf16.mxu0 0
    %479 = vmatmul.mubr.bf16.gmra.mxu0 %v277
    %v480 = vpop.f32.mrf.mxu0
    %v481 = vadd.f32 0.0, %v480
    %v482 = vpop.f32.mrf.mxu0
    %v483 = vpop.f32.mrf.mxu0
    %v484 = vadd.f32 0.0, %v483
    %v485 = vpop.f32.mrf.mxu0
    %486 = vmatprep.mubr.bf16.mxu0 0
    %487 = vmatmul.mubr.bf16.gmra.mxu0 %v280
    %v488 = vpop.f32.mrf.mxu0
    %v489 = vadd.f32 0.0, %v488
    %v490 = vpop.f32.mrf.mxu0
    %v491 = vpop.f32.mrf.mxu0
    %v492 = vadd.f32 0.0, %v491
    %v493 = vpop.f32.mrf.mxu0
    %494 = vdwg.mxu0
    %v496 = vunpack.c.l.b16 %v35
    %v497 = vpack.c.b16 %v138, %v496
    %v498 = vpack.c.b16 %v140, %v139
    %v499 = vpack.c.b16 %v142, %v141
    %v500 = vpack.c.b16 %v144, %v143
    %v501 = vpack.c.b16 %v146, %v145
    %v502 = vpack.c.b16 %v148, %v147
    %v503 = vpack.c.b16 %v150, %v149
    %v504 = vpack.c.b16 %v152, %v151
    %v505 = vpack.c.b16 %v154, %v153
    %v506 = vpack.c.b16 %v156, %v155
    %v507 = vpack.c.b16 %v158, %v157
    %v508 = vpack.c.b16 %v160, %v159
    %v509 = vpack.c.b16 %v162, %v161
    %v510 = vpack.c.b16 %v164, %v163
    %v511 = vpack.c.b16 %v166, %v165
    %v512 = vpack.c.b16 %v168, %v167
    %v513 = vpack.c.b16 %v170, %v169
    %v514 = vpack.c.b16 %v172, %v171
    %v515 = vpack.c.b16 %v174, %v173
    %v516 = vpack.c.b16 %v176, %v175
    %v517 = vpack.c.b16 %v178, %v177
    %v518 = vpack.c.b16 %v180, %v179
    %v523 = vunpack.c.l.b16 %v85
    %v524 = vunpack.c.l.b16 %v86
    %v525 = vunpack.c.l.b16 %v87
    %v526 = vunpack.c.l.b16 %v88
    %v527 = vpack.c.b16 %v524, %v523
    %v528 = vpack.c.b16 %v526, %v525
    %v531 = vsel %vm215, %v497, 0
    %v534 = vsel %vm215, %v498, 0
    %v537 = vsel %vm215, %v499, 0
    %v540 = vsel %vm215, %v500, 0
    %v543 = vsel %vm215, %v501, 0
    %v546 = vsel %vm215, %v502, 0
    %v549 = vsel %vm215, %v503, 0
    %v552 = vsel %vm215, %v504, 0
    %v555 = vsel %vm215, %v505, 0
    %v558 = vsel %vm215, %v506, 0
    %v561 = vsel %vm215, %v507, 0
    %v564 = vsel %vm215, %v508, 0
    %v567 = vsel %vm215, %v509, 0
    %v570 = vsel %vm215, %v510, 0
    %v573 = vsel %vm215, %v511, 0
    %v576 = vsel %vm215, %v512, 0
    %v579 = vsel %vm215, %v513, 0
    %v582 = vsel %vm215, %v514, 0
    %v585 = vsel %vm215, %v515, 0
    %v588 = vsel %vm215, %v516, 0
    %v591 = vsel %vm215, %v517, 0
    %v594 = vsel %vm215, %v518, 0
    %v597 = vsel %vm282, %v528, 0
    %599 = vmatprep.subr.bf16.mxu0 0
    %600 = vmatpush1.bf16.msra.mxu0 0
    %601 = vmatprep.subr.bf16.mxu0 0
    %602 = vmatpush1.bf16.msra.mxu0 0
    %603 = vmatprep.subr.bf16.mxu0 0
    %604 = vmatpush1.bf16.msra.mxu0 0
    %605 = vmatprep.subr.bf16.mxu0 0
    %606 = vmatpush1.bf16.msra.mxu0 0
    %607 = vmatprep.subr.bf16.mxu0 0
    %608 = vmatpush1.bf16.msra.mxu0 0
    %609 = vmatprep.subr.bf16.mxu0 0
    %610 = vmatpush1.bf16.msra.mxu0 0
    %611 = vmatprep.subr.bf16.mxu0 0
    %612 = vmatpush1.bf16.msra.mxu0 %v597
    %613 = vmatprep.subr.bf16.mxu0 0
    %614 = vmatpush1.bf16.msra.mxu0 %v527
    %615 = vmatprep.subr.bf16.mxu0 0
    %616 = vmatpush2.bf16.msra.mxu0 0
    %617 = vmatprep.subr.bf16.mxu0 0
    %618 = vmatpush2.bf16.msra.mxu0 0
    %619 = vmatprep.subr.bf16.mxu0 0
    %620 = vmatpush2.bf16.msra.mxu0 0
    %621 = vmatprep.subr.bf16.mxu0 0
    %622 = vmatpush2.bf16.msra.mxu0 0
    %623 = vmatprep.subr.bf16.mxu0 0
    %624 = vmatpush2.bf16.msra.mxu0 0
    %625 = vmatprep.subr.bf16.mxu0 0
    %626 = vmatpush2.bf16.msra.mxu0 0
    %627 = vmatprep.subr.bf16.mxu0 0
    %628 = vmatpush2.bf16.msra.mxu0 0
    %629 = vmatprep.subr.bf16.mxu0 0
    %630 = vmatpush2.bf16.msra.mxu0 0
    %631 = vmatprep.mubr.bf16.mxu0 0
    %632 = vmatmul.mubr.bf16.gmra.mxu0 %v531
    %v633 = vpop.f32.mrf.mxu0
    %v634 = vadd.f32 %v321, %v633
    %v635 = vpop.f32.mrf.mxu0
    %v636 = vpop.f32.mrf.mxu0
    %v637 = vadd.f32 %v324, %v636
    %v638 = vpop.f32.mrf.mxu0
    %639 = vmatprep.mubr.bf16.mxu0 0
    %640 = vmatmul.mubr.bf16.gmra.mxu0 %v534
    %v641 = vpop.f32.mrf.mxu0
    %v642 = vadd.f32 %v329, %v641
    %v643 = vpop.f32.mrf.mxu0
    %v644 = vpop.f32.mrf.mxu0
    %v645 = vadd.f32 %v332, %v644
    %v646 = vpop.f32.mrf.mxu0
    %647 = vmatprep.mubr.bf16.mxu0 0
    %648 = vmatmul.mubr.bf16.gmra.mxu0 %v537
    %v649 = vpop.f32.mrf.mxu0
    %v650 = vadd.f32 %v337, %v649
    %v651 = vpop.f32.mrf.mxu0
    %v652 = vpop.f32.mrf.mxu0
    %v653 = vadd.f32 %v340, %v652
    %v654 = vpop.f32.mrf.mxu0
    %655 = vmatprep.mubr.bf16.mxu0 0
    %656 = vmatmul.mubr.bf16.gmra.mxu0 %v540
    %v657 = vpop.f32.mrf.mxu0
    %v658 = vadd.f32 %v345, %v657
    %v659 = vpop.f32.mrf.mxu0
    %v660 = vpop.f32.mrf.mxu0
    %v661 = vadd.f32 %v348, %v660
    %v662 = vpop.f32.mrf.mxu0
    %663 = vmatprep.mubr.bf16.mxu0 0
    %664 = vmatmul.mubr.bf16.gmra.mxu0 %v543
    %v665 = vpop.f32.mrf.mxu0
    %v666 = vadd.f32 %v353, %v665
    %v667 = vpop.f32.mrf.mxu0
    %v668 = vpop.f32.mrf.mxu0
    %v669 = vadd.f32 %v356, %v668
    %v670 = vpop.f32.mrf.mxu0
    %671 = vmatprep.mubr.bf16.mxu0 0
    %672 = vmatmul.mubr.bf16.gmra.mxu0 %v546
    %v673 = vpop.f32.mrf.mxu0
    %v674 = vadd.f32 %v361, %v673
    %v675 = vpop.f32.mrf.mxu0
    %v676 = vpop.f32.mrf.mxu0
    %v677 = vadd.f32 %v364, %v676
    %v678 = vpop.f32.mrf.mxu0
    %679 = vmatprep.mubr.bf16.mxu0 0
    %680 = vmatmul.mubr.bf16.gmra.mxu0 %v549
    %v681 = vpop.f32.mrf.mxu0
    %v682 = vadd.f32 %v369, %v681
    %v683 = vpop.f32.mrf.mxu0
    %v684 = vpop.f32.mrf.mxu0
    %v685 = vadd.f32 %v372, %v684
    %v686 = vpop.f32.mrf.mxu0
    %687 = vmatprep.mubr.bf16.mxu0 0
    %688 = vmatmul.mubr.bf16.gmra.mxu0 %v552
    %v689 = vpop.f32.mrf.mxu0
    %v690 = vadd.f32 %v377, %v689
    %v691 = vpop.f32.mrf.mxu0
    %v692 = vpop.f32.mrf.mxu0
    %v693 = vadd.f32 %v380, %v692
    %v694 = vpop.f32.mrf.mxu0
    %695 = vmatprep.mubr.bf16.mxu0 0
    %696 = vmatmul.mubr.bf16.gmra.mxu0 %v555
    %v697 = vpop.f32.mrf.mxu0
    %v698 = vadd.f32 %v385, %v697
    %v699 = vpop.f32.mrf.mxu0
    %v700 = vpop.f32.mrf.mxu0
    %v701 = vadd.f32 %v388, %v700
    %v702 = vpop.f32.mrf.mxu0
    %703 = vmatprep.mubr.bf16.mxu0 0
    %704 = vmatmul.mubr.bf16.gmra.mxu0 %v558
    %v705 = vpop.f32.mrf.mxu0
    %v706 = vadd.f32 %v393, %v705
    %v707 = vpop.f32.mrf.mxu0
    %v708 = vpop.f32.mrf.mxu0
    %v709 = vadd.f32 %v396, %v708
    %v710 = vpop.f32.mrf.mxu0
    %711 = vmatprep.mubr.bf16.mxu0 0
    %712 = vmatmul.mubr.bf16.gmra.mxu0 %v561
    %v713 = vpop.f32.mrf.mxu0
    %v714 = vadd.f32 %v401, %v713
    %v715 = vpop.f32.mrf.mxu0
    %v716 = vpop.f32.mrf.mxu0
    %v717 = vadd.f32 %v404, %v716
    %v718 = vpop.f32.mrf.mxu0
    %719 = vmatprep.mubr.bf16.mxu0 0
    %720 = vmatmul.mubr.bf16.gmra.mxu0 %v564
    %v721 = vpop.f32.mrf.mxu0
    %v722 = vadd.f32 %v409, %v721
    %v723 = vpop.f32.mrf.mxu0
    %v724 = vpop.f32.mrf.mxu0
    %v725 = vadd.f32 %v412, %v724
    %v726 = vpop.f32.mrf.mxu0
    %727 = vmatprep.mubr.bf16.mxu0 0
    %728 = vmatmul.mubr.bf16.gmra.mxu0 %v567
    %v729 = vpop.f32.mrf.mxu0
    %v730 = vadd.f32 %v417, %v729
    %v731 = vpop.f32.mrf.mxu0
    %v732 = vpop.f32.mrf.mxu0
    %v733 = vadd.f32 %v420, %v732
    %v734 = vpop.f32.mrf.mxu0
    %735 = vmatprep.mubr.bf16.mxu0 0
    %736 = vmatmul.mubr.bf16.gmra.mxu0 %v570
    %v737 = vpop.f32.mrf.mxu0
    %v738 = vadd.f32 %v425, %v737
    %v739 = vpop.f32.mrf.mxu0
    %v740 = vpop.f32.mrf.mxu0
    %v741 = vadd.f32 %v428, %v740
    %v742 = vpop.f32.mrf.mxu0
    %743 = vmatprep.mubr.bf16.mxu0 0
    %744 = vmatmul.mubr.bf16.gmra.mxu0 %v573
    %v745 = vpop.f32.mrf.mxu0
    %v746 = vadd.f32 %v433, %v745
    %v747 = vpop.f32.mrf.mxu0
    %v748 = vpop.f32.mrf.mxu0
    %v749 = vadd.f32 %v436, %v748
    %v750 = vpop.f32.mrf.mxu0
    %751 = vmatprep.mubr.bf16.mxu0 0
    %752 = vmatmul.mubr.bf16.gmra.mxu0 %v576
    %v753 = vpop.f32.mrf.mxu0
    %v754 = vadd.f32 %v441, %v753
    %v755 = vpop.f32.mrf.mxu0
    %v756 = vpop.f32.mrf.mxu0
    %v757 = vadd.f32 %v444, %v756
    %v758 = vpop.f32.mrf.mxu0
    %759 = vmatprep.mubr.bf16.mxu0 0
    %760 = vmatmul.mubr.bf16.gmra.mxu0 %v579
    %v761 = vpop.f32.mrf.mxu0
    %v762 = vadd.f32 %v449, %v761
    %v763 = vpop.f32.mrf.mxu0
    %v764 = vpop.f32.mrf.mxu0
    %v765 = vadd.f32 %v452, %v764
    %v766 = vpop.f32.mrf.mxu0
    %767 = vmatprep.mubr.bf16.mxu0 0
    %768 = vmatmul.mubr.bf16.gmra.mxu0 %v582
    %v769 = vpop.f32.mrf.mxu0
    %v770 = vadd.f32 %v457, %v769
    %v771 = vpop.f32.mrf.mxu0
    %v772 = vpop.f32.mrf.mxu0
    %v773 = vadd.f32 %v460, %v772
    %v774 = vpop.f32.mrf.mxu0
    %775 = vmatprep.mubr.bf16.mxu0 0
    %776 = vmatmul.mubr.bf16.gmra.mxu0 %v585
    %v777 = vpop.f32.mrf.mxu0
    %v778 = vadd.f32 %v465, %v777
    %v779 = vpop.f32.mrf.mxu0
    %v780 = vpop.f32.mrf.mxu0
    %v781 = vadd.f32 %v468, %v780
    %v782 = vpop.f32.mrf.mxu0
    %783 = vmatprep.mubr.bf16.mxu0 0
    %784 = vmatmul.mubr.bf16.gmra.mxu0 %v588
    %v785 = vpop.f32.mrf.mxu0
    %v786 = vadd.f32 %v473, %v785
    %v787 = vpop.f32.mrf.mxu0
    %v788 = vpop.f32.mrf.mxu0
    %v789 = vadd.f32 %v476, %v788
    %v790 = vpop.f32.mrf.mxu0
    %791 = vmatprep.mubr.bf16.mxu0 0
    %792 = vmatmul.mubr.bf16.gmra.mxu0 %v591
    %v793 = vpop.f32.mrf.mxu0
    %v794 = vadd.f32 %v481, %v793
    %v795 = vpop.f32.mrf.mxu0
    %v796 = vpop.f32.mrf.mxu0
    %v797 = vadd.f32 %v484, %v796
    %v798 = vpop.f32.mrf.mxu0
    %799 = vmatprep.mubr.bf16.mxu0 0
    %800 = vmatmul.mubr.bf16.gmra.mxu0 %v594
    %v801 = vpop.f32.mrf.mxu0
    %v802 = vadd.f32 %v489, %v801
    %v803 = vpop.f32.mrf.mxu0
    %v804 = vpop.f32.mrf.mxu0
    %v805 = vadd.f32 %v492, %v804
    %v806 = vpop.f32.mrf.mxu0
    %807 = vdwg.mxu0
    %s808 = scalar_lea.vmem %s1, 32
    %v809 = vld [vmem:[%s808] sm:$0xf]
    %v810 = vld [vmem:[%s808 + $0x4] sm:$0xf]
    %v811 = vld [vmem:[%s808 + $0x8] sm:$0xf]
    %v812 = vld [vmem:[%s808 + $0xc] sm:$0x3]
    %v814 = vunpack.c.l.b16 %v80
    %v815 = vpack.c.b16 %v814, %v181
    %v820 = vunpack.c.l.b16 %v809
    %v821 = vunpack.c.l.b16 %v810
    %v822 = vunpack.c.l.b16 %v811
    %v823 = vunpack.c.l.b16 %v812
    %v824 = vpack.c.b16 %v821, %v820
    %v825 = vpack.c.b16 %v823, %v822
    %v828 = vsel %vm215, %v815, 0
    %v831 = vsel %vm282, %v825, 0
    %833 = vmatprep.subr.bf16.mxu0 0
    %834 = vmatpush1.bf16.msra.mxu0 0
    %835 = vmatprep.subr.bf16.mxu0 0
    %836 = vmatpush1.bf16.msra.mxu0 0
    %837 = vmatprep.subr.bf16.mxu0 0
    %838 = vmatpush1.bf16.msra.mxu0 0
    %839 = vmatprep.subr.bf16.mxu0 0
    %840 = vmatpush1.bf16.msra.mxu0 0
    %841 = vmatprep.subr.bf16.mxu0 0
    %842 = vmatpush1.bf16.msra.mxu0 0
    %843 = vmatprep.subr.bf16.mxu0 0
    %844 = vmatpush1.bf16.msra.mxu0 0
    %845 = vmatprep.subr.bf16.mxu0 0
    %846 = vmatpush1.bf16.msra.mxu0 %v831
    %847 = vmatprep.subr.bf16.mxu0 0
    %848 = vmatpush1.bf16.msra.mxu0 %v824
    %849 = vmatprep.subr.bf16.mxu0 0
    %850 = vmatpush2.bf16.msra.mxu0 0
    %851 = vmatprep.subr.bf16.mxu0 0
    %852 = vmatpush2.bf16.msra.mxu0 0
    %853 = vmatprep.subr.bf16.mxu0 0
    %854 = vmatpush2.bf16.msra.mxu0 0
    %855 = vmatprep.subr.bf16.mxu0 0
    %856 = vmatpush2.bf16.msra.mxu0 0
    %857 = vmatprep.subr.bf16.mxu0 0
    %858 = vmatpush2.bf16.msra.mxu0 0
    %859 = vmatprep.subr.bf16.mxu0 0
    %860 = vmatpush2.bf16.msra.mxu0 0
    %861 = vmatprep.subr.bf16.mxu0 0
    %862 = vmatpush2.bf16.msra.mxu0 0
    %863 = vmatprep.subr.bf16.mxu0 0
    %864 = vmatpush2.bf16.msra.mxu0 0
    %865 = vmatprep.mubr.bf16.mxu0 0
    %866 = vmatmul.mubr.bf16.gmra.mxu0 %v534
    %v867 = vpop.f32.mrf.mxu0
    %v868 = vadd.f32 0.0, %v867
    %v869 = vpop.f32.mrf.mxu0
    %v870 = vpop.f32.mrf.mxu0
    %v871 = vadd.f32 0.0, %v870
    %v872 = vpop.f32.mrf.mxu0
    %873 = vmatprep.mubr.bf16.mxu0 0
    %874 = vmatmul.mubr.bf16.gmra.mxu0 %v537
    %v875 = vpop.f32.mrf.mxu0
    %v876 = vadd.f32 0.0, %v875
    %v877 = vpop.f32.mrf.mxu0
    %v878 = vpop.f32.mrf.mxu0
    %v879 = vadd.f32 0.0, %v878
    %v880 = vpop.f32.mrf.mxu0
    %881 = vmatprep.mubr.bf16.mxu0 0
    %882 = vmatmul.mubr.bf16.gmra.mxu0 %v540
    %v883 = vpop.f32.mrf.mxu0
    %v884 = vadd.f32 0.0, %v883
    %v885 = vpop.f32.mrf.mxu0
    %v886 = vpop.f32.mrf.mxu0
    %v887 = vadd.f32 0.0, %v886
    %v888 = vpop.f32.mrf.mxu0
    %889 = vmatprep.mubr.bf16.mxu0 0
    %890 = vmatmul.mubr.bf16.gmra.mxu0 %v543
    %v891 = vpop.f32.mrf.mxu0
    %v892 = vadd.f32 0.0, %v891
    %v893 = vpop.f32.mrf.mxu0
    %v894 = vpop.f32.mrf.mxu0
    %v895 = vadd.f32 0.0, %v894
    %v896 = vpop.f32.mrf.mxu0
    %897 = vmatprep.mubr.bf16.mxu0 0
    %898 = vmatmul.mubr.bf16.gmra.mxu0 %v546
    %v899 = vpop.f32.mrf.mxu0
    %v900 = vadd.f32 0.0, %v899
    %v901 = vpop.f32.mrf.mxu0
    %v902 = vpop.f32.mrf.mxu0
    %v903 = vadd.f32 0.0, %v902
    %v904 = vpop.f32.mrf.mxu0
    %905 = vmatprep.mubr.bf16.mxu0 0
    %906 = vmatmul.mubr.bf16.gmra.mxu0 %v549
    %v907 = vpop.f32.mrf.mxu0
    %v908 = vadd.f32 0.0, %v907
    %v909 = vpop.f32.mrf.mxu0
    %v910 = vpop.f32.mrf.mxu0
    %v911 = vadd.f32 0.0, %v910
    %v912 = vpop.f32.mrf.mxu0
    %913 = vmatprep.mubr.bf16.mxu0 0
    %914 = vmatmul.mubr.bf16.gmra.mxu0 %v552
    %v915 = vpop.f32.mrf.mxu0
    %v916 = vadd.f32 0.0, %v915
    %v917 = vpop.f32.mrf.mxu0
    %v918 = vpop.f32.mrf.mxu0
    %v919 = vadd.f32 0.0, %v918
    %v920 = vpop.f32.mrf.mxu0
    %921 = vmatprep.mubr.bf16.mxu0 0
    %922 = vmatmul.mubr.bf16.gmra.mxu0 %v555
    %v923 = vpop.f32.mrf.mxu0
    %v924 = vadd.f32 0.0, %v923
    %v925 = vpop.f32.mrf.mxu0
    %v926 = vpop.f32.mrf.mxu0
    %v927 = vadd.f32 0.0, %v926
    %v928 = vpop.f32.mrf.mxu0
    %929 = vmatprep.mubr.bf16.mxu0 0
    %930 = vmatmul.mubr.bf16.gmra.mxu0 %v558
    %v931 = vpop.f32.mrf.mxu0
    %v932 = vadd.f32 0.0, %v931
    %v933 = vpop.f32.mrf.mxu0
    %v934 = vpop.f32.mrf.mxu0
    %v935 = vadd.f32 0.0, %v934
    %v936 = vpop.f32.mrf.mxu0
    %937 = vmatprep.mubr.bf16.mxu0 0
    %938 = vmatmul.mubr.bf16.gmra.mxu0 %v561
    %v939 = vpop.f32.mrf.mxu0
    %v940 = vadd.f32 0.0, %v939
    %v941 = vpop.f32.mrf.mxu0
    %v942 = vpop.f32.mrf.mxu0
    %v943 = vadd.f32 0.0, %v942
    %v944 = vpop.f32.mrf.mxu0
    %945 = vmatprep.mubr.bf16.mxu0 0
    %946 = vmatmul.mubr.bf16.gmra.mxu0 %v564
    %v947 = vpop.f32.mrf.mxu0
    %v948 = vadd.f32 0.0, %v947
    %v949 = vpop.f32.mrf.mxu0
    %v950 = vpop.f32.mrf.mxu0
    %v951 = vadd.f32 0.0, %v950
    %v952 = vpop.f32.mrf.mxu0
    %953 = vmatprep.mubr.bf16.mxu0 0
    %954 = vmatmul.mubr.bf16.gmra.mxu0 %v567
    %v955 = vpop.f32.mrf.mxu0
    %v956 = vadd.f32 0.0, %v955
    %v957 = vpop.f32.mrf.mxu0
    %v958 = vpop.f32.mrf.mxu0
    %v959 = vadd.f32 0.0, %v958
    %v960 = vpop.f32.mrf.mxu0
    %961 = vmatprep.mubr.bf16.mxu0 0
    %962 = vmatmul.mubr.bf16.gmra.mxu0 %v570
    %v963 = vpop.f32.mrf.mxu0
    %v964 = vadd.f32 0.0, %v963
    %v965 = vpop.f32.mrf.mxu0
    %v966 = vpop.f32.mrf.mxu0
    %v967 = vadd.f32 0.0, %v966
    %v968 = vpop.f32.mrf.mxu0
    %969 = vmatprep.mubr.bf16.mxu0 0
    %970 = vmatmul.mubr.bf16.gmra.mxu0 %v573
    %v971 = vpop.f32.mrf.mxu0
    %v972 = vadd.f32 0.0, %v971
    %v973 = vpop.f32.mrf.mxu0
    %v974 = vpop.f32.mrf.mxu0
    %v975 = vadd.f32 0.0, %v974
    %v976 = vpop.f32.mrf.mxu0
    %977 = vmatprep.mubr.bf16.mxu0 0
    %978 = vmatmul.mubr.bf16.gmra.mxu0 %v576
    %v979 = vpop.f32.mrf.mxu0
    %v980 = vadd.f32 0.0, %v979
    %v981 = vpop.f32.mrf.mxu0
    %v982 = vpop.f32.mrf.mxu0
    %v983 = vadd.f32 0.0, %v982
    %v984 = vpop.f32.mrf.mxu0
    %985 = vmatprep.mubr.bf16.mxu0 0
    %986 = vmatmul.mubr.bf16.gmra.mxu0 %v579
    %v987 = vpop.f32.mrf.mxu0
    %v988 = vadd.f32 0.0, %v987
    %v989 = vpop.f32.mrf.mxu0
    %v990 = vpop.f32.mrf.mxu0
    %v991 = vadd.f32 0.0, %v990
    %v992 = vpop.f32.mrf.mxu0
    %993 = vmatprep.mubr.bf16.mxu0 0
    %994 = vmatmul.mubr.bf16.gmra.mxu0 %v582
    %v995 = vpop.f32.mrf.mxu0
    %v996 = vadd.f32 0.0, %v995
    %v997 = vpop.f32.mrf.mxu0
    %v998 = vpop.f32.mrf.mxu0
    %v999 = vadd.f32 0.0, %v998
    %v1000 = vpop.f32.mrf.mxu0
    %1001 = vmatprep.mubr.bf16.mxu0 0
    %1002 = vmatmul.mubr.bf16.gmra.mxu0 %v585
    %v1003 = vpop.f32.mrf.mxu0
    %v1004 = vadd.f32 0.0, %v1003
    %v1005 = vpop.f32.mrf.mxu0
    %v1006 = vpop.f32.mrf.mxu0
    %v1007 = vadd.f32 0.0, %v1006
    %v1008 = vpop.f32.mrf.mxu0
    %1009 = vmatprep.mubr.bf16.mxu0 0
    %1010 = vmatmul.mubr.bf16.gmra.mxu0 %v588
    %v1011 = vpop.f32.mrf.mxu0
    %v1012 = vadd.f32 0.0, %v1011
    %v1013 = vpop.f32.mrf.mxu0
    %v1014 = vpop.f32.mrf.mxu0
    %v1015 = vadd.f32 0.0, %v1014
    %v1016 = vpop.f32.mrf.mxu0
    %1017 = vmatprep.mubr.bf16.mxu0 0
    %1018 = vmatmul.mubr.bf16.gmra.mxu0 %v591
    %v1019 = vpop.f32.mrf.mxu0
    %v1020 = vadd.f32 0.0, %v1019
    %v1021 = vpop.f32.mrf.mxu0
    %v1022 = vpop.f32.mrf.mxu0
    %v1023 = vadd.f32 0.0, %v1022
    %v1024 = vpop.f32.mrf.mxu0
    %1025 = vmatprep.mubr.bf16.mxu0 0
    %1026 = vmatmul.mubr.bf16.gmra.mxu0 %v594
    %v1027 = vpop.f32.mrf.mxu0
    %v1028 = vadd.f32 0.0, %v1027
    %v1029 = vpop.f32.mrf.mxu0
    %v1030 = vpop.f32.mrf.mxu0
    %v1031 = vadd.f32 0.0, %v1030
    %v1032 = vpop.f32.mrf.mxu0
    %1033 = vmatprep.mubr.bf16.mxu0 0
    %1034 = vmatmul.mubr.bf16.gmra.mxu0 %v828
    %v1035 = vpop.f32.mrf.mxu0
    %v1036 = vadd.f32 0.0, %v1035
    %v1037 = vpop.f32.mrf.mxu0
    %v1038 = vpop.f32.mrf.mxu0
    %v1039 = vadd.f32 0.0, %v1038
    %v1040 = vpop.f32.mrf.mxu0
    %1041 = vdwg.mxu0
    %v1042 = vadd.f32 %v634, %v868
    %v1043 = vadd.f32 %v637, %v871
    %v1044 = vadd.f32 %v642, %v876
    %v1045 = vadd.f32 %v645, %v879
    %v1046 = vadd.f32 %v650, %v884
    %v1047 = vadd.f32 %v653, %v887
    %v1048 = vadd.f32 %v658, %v892
    %v1049 = vadd.f32 %v661, %v895
    %v1050 = vadd.f32 %v666, %v900
    %v1051 = vadd.f32 %v669, %v903
    %v1052 = vadd.f32 %v674, %v908
    %v1053 = vadd.f32 %v677, %v911
    %v1054 = vadd.f32 %v682, %v916
    %v1055 = vadd.f32 %v685, %v919
    %v1056 = vadd.f32 %v690, %v924
    %v1057 = vadd.f32 %v693, %v927
    %v1058 = vadd.f32 %v698, %v932
    %v1059 = vadd.f32 %v701, %v935
    %v1060 = vadd.f32 %v706, %v940
    %v1061 = vadd.f32 %v709, %v943
    %v1062 = vadd.f32 %v714, %v948
    %v1063 = vadd.f32 %v717, %v951
    %v1064 = vadd.f32 %v722, %v956
    %v1065 = vadd.f32 %v725, %v959
    %v1066 = vadd.f32 %v730, %v964
    %v1067 = vadd.f32 %v733, %v967
    %v1068 = vadd.f32 %v738, %v972
    %v1069 = vadd.f32 %v741, %v975
    %v1070 = vadd.f32 %v746, %v980
    %v1071 = vadd.f32 %v749, %v983
    %v1072 = vadd.f32 %v754, %v988
    %v1073 = vadd.f32 %v757, %v991
    %v1074 = vadd.f32 %v762, %v996
    %v1075 = vadd.f32 %v765, %v999
    %v1076 = vadd.f32 %v770, %v1004
    %v1077 = vadd.f32 %v773, %v1007
    %v1078 = vadd.f32 %v778, %v1012
    %v1079 = vadd.f32 %v781, %v1015
    %v1080 = vadd.f32 %v786, %v1020
    %v1081 = vadd.f32 %v789, %v1023
    %v1082 = vadd.f32 %v794, %v1028
    %v1083 = vadd.f32 %v797, %v1031
    %v1084 = vadd.f32 %v802, %v1036
    %v1085 = vadd.f32 %v805, %v1039
    %s1086 = scalar_lea.vmem %s1, 48
    %v1087 = vld [vmem:[%s1086] sm:$0xf]
    %v1088 = vld [vmem:[%s1086 + $0x4] sm:$0xf]
    %v1089 = vld [vmem:[%s1086 + $0x8] sm:$0xf]
    %v1090 = vld [vmem:[%s1086 + $0xc] sm:$0x3]
    %v1092 = vunpack.c.l.b16 %v81
    %v1093 = vpack.c.b16 %v1092, %v814
    %v1098 = vunpack.c.l.b16 %v1087
    %v1099 = vunpack.c.l.b16 %v1088
    %v1100 = vunpack.c.l.b16 %v1089
    %v1101 = vunpack.c.l.b16 %v1090
    %v1102 = vpack.c.b16 %v1099, %v1098
    %v1103 = vpack.c.b16 %v1101, %v1100
    %v1106 = vsel %vm215, %v1093, 0
    %v1109 = vsel %vm282, %v1103, 0
    %1111 = vmatprep.subr.bf16.mxu0 0
    %1112 = vmatpush1.bf16.msra.mxu0 0
    %1113 = vmatprep.subr.bf16.mxu0 0
    %1114 = vmatpush1.bf16.msra.mxu0 0
    %1115 = vmatprep.subr.bf16.mxu0 0
    %1116 = vmatpush1.bf16.msra.mxu0 0
    %1117 = vmatprep.subr.bf16.mxu0 0
    %1118 = vmatpush1.bf16.msra.mxu0 0
    %1119 = vmatprep.subr.bf16.mxu0 0
    %1120 = vmatpush1.bf16.msra.mxu0 0
    %1121 = vmatprep.subr.bf16.mxu0 0
    %1122 = vmatpush1.bf16.msra.mxu0 0
    %1123 = vmatprep.subr.bf16.mxu0 0
    %1124 = vmatpush1.bf16.msra.mxu0 %v1109
    %1125 = vmatprep.subr.bf16.mxu0 0
    %1126 = vmatpush1.bf16.msra.mxu0 %v1102
    %1127 = vmatprep.subr.bf16.mxu0 0
    %1128 = vmatpush2.bf16.msra.mxu0 0
    %1129 = vmatprep.subr.bf16.mxu0 0
    %1130 = vmatpush2.bf16.msra.mxu0 0
    %1131 = vmatprep.subr.bf16.mxu0 0
    %1132 = vmatpush2.bf16.msra.mxu0 0
    %1133 = vmatprep.subr.bf16.mxu0 0
    %1134 = vmatpush2.bf16.msra.mxu0 0
    %1135 = vmatprep.subr.bf16.mxu0 0
    %1136 = vmatpush2.bf16.msra.mxu0 0
    %1137 = vmatprep.subr.bf16.mxu0 0
    %1138 = vmatpush2.bf16.msra.mxu0 0
    %1139 = vmatprep.subr.bf16.mxu0 0
    %1140 = vmatpush2.bf16.msra.mxu0 0
    %1141 = vmatprep.subr.bf16.mxu0 0
    %1142 = vmatpush2.bf16.msra.mxu0 0
    %1143 = vmatprep.mubr.bf16.mxu0 0
    %1144 = vmatmul.mubr.bf16.gmra.mxu0 %v220
    %v1145 = vpop.f32.mrf.mxu0
    %v1146 = vadd.f32 0.0, %v1145
    %v1147 = vpop.f32.mrf.mxu0
    %v1148 = vpop.f32.mrf.mxu0
    %v1149 = vadd.f32 0.0, %v1148
    %v1150 = vpop.f32.mrf.mxu0
    %1151 = vmatprep.mubr.bf16.mxu0 0
    %1152 = vmatmul.mubr.bf16.gmra.mxu0 %v223
    %v1153 = vpop.f32.mrf.mxu0
    %v1154 = vadd.f32 0.0, %v1153
    %v1155 = vpop.f32.mrf.mxu0
    %v1156 = vpop.f32.mrf.mxu0
    %v1157 = vadd.f32 0.0, %v1156
    %v1158 = vpop.f32.mrf.mxu0
    %1159 = vmatprep.mubr.bf16.mxu0 0
    %1160 = vmatmul.mubr.bf16.gmra.mxu0 %v226
    %v1161 = vpop.f32.mrf.mxu0
    %v1162 = vadd.f32 0.0, %v1161
    %v1163 = vpop.f32.mrf.mxu0
    %v1164 = vpop.f32.mrf.mxu0
    %v1165 = vadd.f32 0.0, %v1164
    %v1166 = vpop.f32.mrf.mxu0
    %1167 = vmatprep.mubr.bf16.mxu0 0
    %1168 = vmatmul.mubr.bf16.gmra.mxu0 %v229
    %v1169 = vpop.f32.mrf.mxu0
    %v1170 = vadd.f32 0.0, %v1169
    %v1171 = vpop.f32.mrf.mxu0
    %v1172 = vpop.f32.mrf.mxu0
    %v1173 = vadd.f32 0.0, %v1172
    %v1174 = vpop.f32.mrf.mxu0
    %1175 = vmatprep.mubr.bf16.mxu0 0
    %1176 = vmatmul.mubr.bf16.gmra.mxu0 %v232
    %v1177 = vpop.f32.mrf.mxu0
    %v1178 = vadd.f32 0.0, %v1177
    %v1179 = vpop.f32.mrf.mxu0
    %v1180 = vpop.f32.mrf.mxu0
    %v1181 = vadd.f32 0.0, %v1180
    %v1182 = vpop.f32.mrf.mxu0
    %1183 = vmatprep.mubr.bf16.mxu0 0
    %1184 = vmatmul.mubr.bf16.gmra.mxu0 %v235
    %v1185 = vpop.f32.mrf.mxu0
    %v1186 = vadd.f32 0.0, %v1185
    %v1187 = vpop.f32.mrf.mxu0
    %v1188 = vpop.f32.mrf.mxu0
    %v1189 = vadd.f32 0.0, %v1188
    %v1190 = vpop.f32.mrf.mxu0
    %1191 = vmatprep.mubr.bf16.mxu0 0
    %1192 = vmatmul.mubr.bf16.gmra.mxu0 %v238
    %v1193 = vpop.f32.mrf.mxu0
    %v1194 = vadd.f32 0.0, %v1193
    %v1195 = vpop.f32.mrf.mxu0
    %v1196 = vpop.f32.mrf.mxu0
    %v1197 = vadd.f32 0.0, %v1196
    %v1198 = vpop.f32.mrf.mxu0
    %1199 = vmatprep.mubr.bf16.mxu0 0
    %1200 = vmatmul.mubr.bf16.gmra.mxu0 %v241
    %v1201 = vpop.f32.mrf.mxu0
    %v1202 = vadd.f32 0.0, %v1201
    %v1203 = vpop.f32.mrf.mxu0
    %v1204 = vpop.f32.mrf.mxu0
    %v1205 = vadd.f32 0.0, %v1204
    %v1206 = vpop.f32.mrf.mxu0
    %1207 = vmatprep.mubr.bf16.mxu0 0
    %1208 = vmatmul.mubr.bf16.gmra.mxu0 %v244
    %v1209 = vpop.f32.mrf.mxu0
    %v1210 = vadd.f32 0.0, %v1209
    %v1211 = vpop.f32.mrf.mxu0
    %v1212 = vpop.f32.mrf.mxu0
    %v1213 = vadd.f32 0.0, %v1212
    %v1214 = vpop.f32.mrf.mxu0
    %1215 = vmatprep.mubr.bf16.mxu0 0
    %1216 = vmatmul.mubr.bf16.gmra.mxu0 %v247
    %v1217 = vpop.f32.mrf.mxu0
    %v1218 = vadd.f32 0.0, %v1217
    %v1219 = vpop.f32.mrf.mxu0
    %v1220 = vpop.f32.mrf.mxu0
    %v1221 = vadd.f32 0.0, %v1220
    %v1222 = vpop.f32.mrf.mxu0
    %1223 = vmatprep.mubr.bf16.mxu0 0
    %1224 = vmatmul.mubr.bf16.gmra.mxu0 %v250
    %v1225 = vpop.f32.mrf.mxu0
    %v1226 = vadd.f32 0.0, %v1225
    %v1227 = vpop.f32.mrf.mxu0
    %v1228 = vpop.f32.mrf.mxu0
    %v1229 = vadd.f32 0.0, %v1228
    %v1230 = vpop.f32.mrf.mxu0
    %1231 = vmatprep.mubr.bf16.mxu0 0
    %1232 = vmatmul.mubr.bf16.gmra.mxu0 %v253
    %v1233 = vpop.f32.mrf.mxu0
    %v1234 = vadd.f32 0.0, %v1233
    %v1235 = vpop.f32.mrf.mxu0
    %v1236 = vpop.f32.mrf.mxu0
    %v1237 = vadd.f32 0.0, %v1236
    %v1238 = vpop.f32.mrf.mxu0
    %1239 = vmatprep.mubr.bf16.mxu0 0
    %1240 = vmatmul.mubr.bf16.gmra.mxu0 %v256
    %v1241 = vpop.f32.mrf.mxu0
    %v1242 = vadd.f32 0.0, %v1241
    %v1243 = vpop.f32.mrf.mxu0
    %v1244 = vpop.f32.mrf.mxu0
    %v1245 = vadd.f32 0.0, %v1244
    %v1246 = vpop.f32.mrf.mxu0
    %1247 = vmatprep.mubr.bf16.mxu0 0
    %1248 = vmatmul.mubr.bf16.gmra.mxu0 %v259
    %v1249 = vpop.f32.mrf.mxu0
    %v1250 = vadd.f32 0.0, %v1249
    %v1251 = vpop.f32.mrf.mxu0
    %v1252 = vpop.f32.mrf.mxu0
    %v1253 = vadd.f32 0.0, %v1252
    %v1254 = vpop.f32.mrf.mxu0
    %1255 = vmatprep.mubr.bf16.mxu0 0
    %1256 = vmatmul.mubr.bf16.gmra.mxu0 %v262
    %v1257 = vpop.f32.mrf.mxu0
    %v1258 = vadd.f32 0.0, %v1257
    %v1259 = vpop.f32.mrf.mxu0
    %v1260 = vpop.f32.mrf.mxu0
    %v1261 = vadd.f32 0.0, %v1260
    %v1262 = vpop.f32.mrf.mxu0
    %1263 = vmatprep.mubr.bf16.mxu0 0
    %1264 = vmatmul.mubr.bf16.gmra.mxu0 %v265
    %v1265 = vpop.f32.mrf.mxu0
    %v1266 = vadd.f32 0.0, %v1265
    %v1267 = vpop.f32.mrf.mxu0
    %v1268 = vpop.f32.mrf.mxu0
    %v1269 = vadd.f32 0.0, %v1268
    %v1270 = vpop.f32.mrf.mxu0
    %1271 = vmatprep.mubr.bf16.mxu0 0
    %1272 = vmatmul.mubr.bf16.gmra.mxu0 %v268
    %v1273 = vpop.f32.mrf.mxu0
    %v1274 = vadd.f32 0.0, %v1273
    %v1275 = vpop.f32.mrf.mxu0
    %v1276 = vpop.f32.mrf.mxu0
    %v1277 = vadd.f32 0.0, %v1276
    %v1278 = vpop.f32.mrf.mxu0
    %1279 = vmatprep.mubr.bf16.mxu0 0
    %1280 = vmatmul.mubr.bf16.gmra.mxu0 %v271
    %v1281 = vpop.f32.mrf.mxu0
    %v1282 = vadd.f32 0.0, %v1281
    %v1283 = vpop.f32.mrf.mxu0
    %v1284 = vpop.f32.mrf.mxu0
    %v1285 = vadd.f32 0.0, %v1284
    %v1286 = vpop.f32.mrf.mxu0
    %1287 = vmatprep.mubr.bf16.mxu0 0
    %1288 = vmatmul.mubr.bf16.gmra.mxu0 %v274
    %v1289 = vpop.f32.mrf.mxu0
    %v1290 = vadd.f32 0.0, %v1289
    %v1291 = vpop.f32.mrf.mxu0
    %v1292 = vpop.f32.mrf.mxu0
    %v1293 = vadd.f32 0.0, %v1292
    %v1294 = vpop.f32.mrf.mxu0
    %1295 = vmatprep.mubr.bf16.mxu0 0
    %1296 = vmatmul.mubr.bf16.gmra.mxu0 %v277
    %v1297 = vpop.f32.mrf.mxu0
    %v1298 = vadd.f32 0.0, %v1297
    %v1299 = vpop.f32.mrf.mxu0
    %v1300 = vpop.f32.mrf.mxu0
    %v1301 = vadd.f32 0.0, %v1300
    %v1302 = vpop.f32.mrf.mxu0
    %1303 = vmatprep.mubr.bf16.mxu0 0
    %1304 = vmatmul.mubr.bf16.gmra.mxu0 %v280
    %v1305 = vpop.f32.mrf.mxu0
    %v1306 = vadd.f32 0.0, %v1305
    %v1307 = vpop.f32.mrf.mxu0
    %v1308 = vpop.f32.mrf.mxu0
    %v1309 = vadd.f32 0.0, %v1308
    %v1310 = vpop.f32.mrf.mxu0
    %1311 = vmatprep.mubr.bf16.mxu0 0
    %1312 = vmatmul.mubr.bf16.gmra.mxu0 %v1106
    %v1313 = vpop.f32.mrf.mxu0
    %v1314 = vadd.f32 0.0, %v1313
    %v1315 = vpop.f32.mrf.mxu0
    %v1316 = vpop.f32.mrf.mxu0
    %v1317 = vadd.f32 0.0, %v1316
    %v1318 = vpop.f32.mrf.mxu0
    %1319 = vdwg.mxu0
    %v1320 = vadd.f32 %v1042, %v1146
    %v1321 = vadd.f32 %v1043, %v1149
    %v1322 = vadd.f32 %v1044, %v1154
    %v1323 = vadd.f32 %v1045, %v1157
    %v1324 = vadd.f32 %v1046, %v1162
    %v1325 = vadd.f32 %v1047, %v1165
    %v1326 = vadd.f32 %v1048, %v1170
    %v1327 = vadd.f32 %v1049, %v1173
    %v1328 = vadd.f32 %v1050, %v1178
    %v1329 = vadd.f32 %v1051, %v1181
    %v1330 = vadd.f32 %v1052, %v1186
    %v1331 = vadd.f32 %v1053, %v1189
    %v1332 = vadd.f32 %v1054, %v1194
    %v1333 = vadd.f32 %v1055, %v1197
    %v1334 = vadd.f32 %v1056, %v1202
    %v1335 = vadd.f32 %v1057, %v1205
    %v1336 = vadd.f32 %v1058, %v1210
    %v1337 = vadd.f32 %v1059, %v1213
    %v1338 = vadd.f32 %v1060, %v1218
    %v1339 = vadd.f32 %v1061, %v1221
    %v1340 = vadd.f32 %v1062, %v1226
    %v1341 = vadd.f32 %v1063, %v1229
    %v1342 = vadd.f32 %v1064, %v1234
    %v1343 = vadd.f32 %v1065, %v1237
    %v1344 = vadd.f32 %v1066, %v1242
    %v1345 = vadd.f32 %v1067, %v1245
    %v1346 = vadd.f32 %v1068, %v1250
    %v1347 = vadd.f32 %v1069, %v1253
    %v1348 = vadd.f32 %v1070, %v1258
    %v1349 = vadd.f32 %v1071, %v1261
    %v1350 = vadd.f32 %v1072, %v1266
    %v1351 = vadd.f32 %v1073, %v1269
    %v1352 = vadd.f32 %v1074, %v1274
    %v1353 = vadd.f32 %v1075, %v1277
    %v1354 = vadd.f32 %v1076, %v1282
    %v1355 = vadd.f32 %v1077, %v1285
    %v1356 = vadd.f32 %v1078, %v1290
    %v1357 = vadd.f32 %v1079, %v1293
    %v1358 = vadd.f32 %v1080, %v1298
    %v1359 = vadd.f32 %v1081, %v1301
    %v1360 = vadd.f32 %v1082, %v1306
    %v1361 = vadd.f32 %v1083, %v1309
    %v1362 = vadd.f32 %v1084, %v1314
    %v1363 = vadd.f32 %v1085, %v1317
    %s1364 = scalar_lea.vmem %s1, 64
    %v1365 = vld [vmem:[%s1364] sm:$0xf]
    %v1366 = vld [vmem:[%s1364 + $0x4] sm:$0xf]
    %v1367 = vld [vmem:[%s1364 + $0x8] sm:$0xf]
    %v1368 = vld [vmem:[%s1364 + $0xc] sm:$0x3]
    %v1370 = vunpack.c.l.b16 %v82
    %v1371 = vpack.c.b16 %v1370, %v1092
    %v1376 = vunpack.c.l.b16 %v1365
    %v1377 = vunpack.c.l.b16 %v1366
    %v1378 = vunpack.c.l.b16 %v1367
    %v1379 = vunpack.c.l.b16 %v1368
    %v1380 = vpack.c.b16 %v1377, %v1376
    %v1381 = vpack.c.b16 %v1379, %v1378
    %v1384 = vsel %vm215, %v1371, 0
    %v1387 = vsel %vm282, %v1381, 0
    %1389 = vmatprep.subr.bf16.mxu0 0
    %1390 = vmatpush1.bf16.msra.mxu0 0
    %1391 = vmatprep.subr.bf16.mxu0 0
    %1392 = vmatpush1.bf16.msra.mxu0 0
    %1393 = vmatprep.subr.bf16.mxu0 0
    %1394 = vmatpush1.bf16.msra.mxu0 0
    %1395 = vmatprep.subr.bf16.mxu0 0
    %1396 = vmatpush1.bf16.msra.mxu0 0
    %1397 = vmatprep.subr.bf16.mxu0 0
    %1398 = vmatpush1.bf16.msra.mxu0 0
    %1399 = vmatprep.subr.bf16.mxu0 0
    %1400 = vmatpush1.bf16.msra.mxu0 0
    %1401 = vmatprep.subr.bf16.mxu0 0
    %1402 = vmatpush1.bf16.msra.mxu0 %v1387
    %1403 = vmatprep.subr.bf16.mxu0 0
    %1404 = vmatpush1.bf16.msra.mxu0 %v1380
    %1405 = vmatprep.subr.bf16.mxu0 0
    %1406 = vmatpush2.bf16.msra.mxu0 0
    %1407 = vmatprep.subr.bf16.mxu0 0
    %1408 = vmatpush2.bf16.msra.mxu0 0
    %1409 = vmatprep.subr.bf16.mxu0 0
    %1410 = vmatpush2.bf16.msra.mxu0 0
    %1411 = vmatprep.subr.bf16.mxu0 0
    %1412 = vmatpush2.bf16.msra.mxu0 0
    %1413 = vmatprep.subr.bf16.mxu0 0
    %1414 = vmatpush2.bf16.msra.mxu0 0
    %1415 = vmatprep.subr.bf16.mxu0 0
    %1416 = vmatpush2.bf16.msra.mxu0 0
    %1417 = vmatprep.subr.bf16.mxu0 0
    %1418 = vmatpush2.bf16.msra.mxu0 0
    %1419 = vmatprep.subr.bf16.mxu0 0
    %1420 = vmatpush2.bf16.msra.mxu0 0
    %1421 = vmatprep.mubr.bf16.mxu0 0
    %1422 = vmatmul.mubr.bf16.gmra.mxu0 %v537
    %v1423 = vpop.f32.mrf.mxu0
    %v1424 = vadd.f32 0.0, %v1423
    %v1425 = vpop.f32.mrf.mxu0
    %v1426 = vpop.f32.mrf.mxu0
    %v1427 = vadd.f32 0.0, %v1426
    %v1428 = vpop.f32.mrf.mxu0
    %1429 = vmatprep.mubr.bf16.mxu0 0
    %1430 = vmatmul.mubr.bf16.gmra.mxu0 %v540
    %v1431 = vpop.f32.mrf.mxu0
    %v1432 = vadd.f32 0.0, %v1431
    %v1433 = vpop.f32.mrf.mxu0
    %v1434 = vpop.f32.mrf.mxu0
    %v1435 = vadd.f32 0.0, %v1434
    %v1436 = vpop.f32.mrf.mxu0
    %1437 = vmatprep.mubr.bf16.mxu0 0
    %1438 = vmatmul.mubr.bf16.gmra.mxu0 %v543
    %v1439 = vpop.f32.mrf.mxu0
    %v1440 = vadd.f32 0.0, %v1439
    %v1441 = vpop.f32.mrf.mxu0
    %v1442 = vpop.f32.mrf.mxu0
    %v1443 = vadd.f32 0.0, %v1442
    %v1444 = vpop.f32.mrf.mxu0
    %1445 = vmatprep.mubr.bf16.mxu0 0
    %1446 = vmatmul.mubr.bf16.gmra.mxu0 %v546
    %v1447 = vpop.f32.mrf.mxu0
    %v1448 = vadd.f32 0.0, %v1447
    %v1449 = vpop.f32.mrf.mxu0
    %v1450 = vpop.f32.mrf.mxu0
    %v1451 = vadd.f32 0.0, %v1450
    %v1452 = vpop.f32.mrf.mxu0
    %1453 = vmatprep.mubr.bf16.mxu0 0
    %1454 = vmatmul.mubr.bf16.gmra.mxu0 %v549
    %v1455 = vpop.f32.mrf.mxu0
    %v1456 = vadd.f32 0.0, %v1455
    %v1457 = vpop.f32.mrf.mxu0
    %v1458 = vpop.f32.mrf.mxu0
    %v1459 = vadd.f32 0.0, %v1458
    %v1460 = vpop.f32.mrf.mxu0
    %1461 = vmatprep.mubr.bf16.mxu0 0
    %1462 = vmatmul.mubr.bf16.gmra.mxu0 %v552
    %v1463 = vpop.f32.mrf.mxu0
    %v1464 = vadd.f32 0.0, %v1463
    %v1465 = vpop.f32.mrf.mxu0
    %v1466 = vpop.f32.mrf.mxu0
    %v1467 = vadd.f32 0.0, %v1466
    %v1468 = vpop.f32.mrf.mxu0
    %1469 = vmatprep.mubr.bf16.mxu0 0
    %1470 = vmatmul.mubr.bf16.gmra.mxu0 %v555
    %v1471 = vpop.f32.mrf.mxu0
    %v1472 = vadd.f32 0.0, %v1471
    %v1473 = vpop.f32.mrf.mxu0
    %v1474 = vpop.f32.mrf.mxu0
    %v1475 = vadd.f32 0.0, %v1474
    %v1476 = vpop.f32.mrf.mxu0
    %1477 = vmatprep.mubr.bf16.mxu0 0
    %1478 = vmatmul.mubr.bf16.gmra.mxu0 %v558
    %v1479 = vpop.f32.mrf.mxu0
    %v1480 = vadd.f32 0.0, %v1479
    %v1481 = vpop.f32.mrf.mxu0
    %v1482 = vpop.f32.mrf.mxu0
    %v1483 = vadd.f32 0.0, %v1482
    %v1484 = vpop.f32.mrf.mxu0
    %1485 = vmatprep.mubr.bf16.mxu0 0
    %1486 = vmatmul.mubr.bf16.gmra.mxu0 %v561
    %v1487 = vpop.f32.mrf.mxu0
    %v1488 = vadd.f32 0.0, %v1487
    %v1489 = vpop.f32.mrf.mxu0
    %v1490 = vpop.f32.mrf.mxu0
    %v1491 = vadd.f32 0.0, %v1490
    %v1492 = vpop.f32.mrf.mxu0
    %1493 = vmatprep.mubr.bf16.mxu0 0
    %1494 = vmatmul.mubr.bf16.gmra.mxu0 %v564
    %v1495 = vpop.f32.mrf.mxu0
    %v1496 = vadd.f32 0.0, %v1495
    %v1497 = vpop.f32.mrf.mxu0
    %v1498 = vpop.f32.mrf.mxu0
    %v1499 = vadd.f32 0.0, %v1498
    %v1500 = vpop.f32.mrf.mxu0
    %1501 = vmatprep.mubr.bf16.mxu0 0
    %1502 = vmatmul.mubr.bf16.gmra.mxu0 %v567
    %v1503 = vpop.f32.mrf.mxu0
    %v1504 = vadd.f32 0.0, %v1503
    %v1505 = vpop.f32.mrf.mxu0
    %v1506 = vpop.f32.mrf.mxu0
    %v1507 = vadd.f32 0.0, %v1506
    %v1508 = vpop.f32.mrf.mxu0
    %1509 = vmatprep.mubr.bf16.mxu0 0
    %1510 = vmatmul.mubr.bf16.gmra.mxu0 %v570
    %v1511 = vpop.f32.mrf.mxu0
    %v1512 = vadd.f32 0.0, %v1511
    %v1513 = vpop.f32.mrf.mxu0
    %v1514 = vpop.f32.mrf.mxu0
    %v1515 = vadd.f32 0.0, %v1514
    %v1516 = vpop.f32.mrf.mxu0
    %1517 = vmatprep.mubr.bf16.mxu0 0
    %1518 = vmatmul.mubr.bf16.gmra.mxu0 %v573
    %v1519 = vpop.f32.mrf.mxu0
    %v1520 = vadd.f32 0.0, %v1519
    %v1521 = vpop.f32.mrf.mxu0
    %v1522 = vpop.f32.mrf.mxu0
    %v1523 = vadd.f32 0.0, %v1522
    %v1524 = vpop.f32.mrf.mxu0
    %1525 = vmatprep.mubr.bf16.mxu0 0
    %1526 = vmatmul.mubr.bf16.gmra.mxu0 %v576
    %v1527 = vpop.f32.mrf.mxu0
    %v1528 = vadd.f32 0.0, %v1527
    %v1529 = vpop.f32.mrf.mxu0
    %v1530 = vpop.f32.mrf.mxu0
    %v1531 = vadd.f32 0.0, %v1530
    %v1532 = vpop.f32.mrf.mxu0
    %1533 = vmatprep.mubr.bf16.mxu0 0
    %1534 = vmatmul.mubr.bf16.gmra.mxu0 %v579
    %v1535 = vpop.f32.mrf.mxu0
    %v1536 = vadd.f32 0.0, %v1535
    %v1537 = vpop.f32.mrf.mxu0
    %v1538 = vpop.f32.mrf.mxu0
    %v1539 = vadd.f32 0.0, %v1538
    %v1540 = vpop.f32.mrf.mxu0
    %1541 = vmatprep.mubr.bf16.mxu0 0
    %1542 = vmatmul.mubr.bf16.gmra.mxu0 %v582
    %v1543 = vpop.f32.mrf.mxu0
    %v1544 = vadd.f32 0.0, %v1543
    %v1545 = vpop.f32.mrf.mxu0
    %v1546 = vpop.f32.mrf.mxu0
    %v1547 = vadd.f32 0.0, %v1546
    %v1548 = vpop.f32.mrf.mxu0
    %1549 = vmatprep.mubr.bf16.mxu0 0
    %1550 = vmatmul.mubr.bf16.gmra.mxu0 %v585
    %v1551 = vpop.f32.mrf.mxu0
    %v1552 = vadd.f32 0.0, %v1551
    %v1553 = vpop.f32.mrf.mxu0
    %v1554 = vpop.f32.mrf.mxu0
    %v1555 = vadd.f32 0.0, %v1554
    %v1556 = vpop.f32.mrf.mxu0
    %1557 = vmatprep.mubr.bf16.mxu0 0
    %1558 = vmatmul.mubr.bf16.gmra.mxu0 %v588
    %v1559 = vpop.f32.mrf.mxu0
    %v1560 = vadd.f32 0.0, %v1559
    %v1561 = vpop.f32.mrf.mxu0
    %v1562 = vpop.f32.mrf.mxu0
    %v1563 = vadd.f32 0.0, %v1562
    %v1564 = vpop.f32.mrf.mxu0
    %1565 = vmatprep.mubr.bf16.mxu0 0
    %1566 = vmatmul.mubr.bf16.gmra.mxu0 %v591
    %v1567 = vpop.f32.mrf.mxu0
    %v1568 = vadd.f32 0.0, %v1567
    %v1569 = vpop.f32.mrf.mxu0
    %v1570 = vpop.f32.mrf.mxu0
    %v1571 = vadd.f32 0.0, %v1570
    %v1572 = vpop.f32.mrf.mxu0
    %1573 = vmatprep.mubr.bf16.mxu0 0
    %1574 = vmatmul.mubr.bf16.gmra.mxu0 %v594
    %v1575 = vpop.f32.mrf.mxu0
    %v1576 = vadd.f32 0.0, %v1575
    %v1577 = vpop.f32.mrf.mxu0
    %v1578 = vpop.f32.mrf.mxu0
    %v1579 = vadd.f32 0.0, %v1578
    %v1580 = vpop.f32.mrf.mxu0
    %1581 = vmatprep.mubr.bf16.mxu0 0
    %1582 = vmatmul.mubr.bf16.gmra.mxu0 %v828
    %v1583 = vpop.f32.mrf.mxu0
    %v1584 = vadd.f32 0.0, %v1583
    %v1585 = vpop.f32.mrf.mxu0
    %v1586 = vpop.f32.mrf.mxu0
    %v1587 = vadd.f32 0.0, %v1586
    %v1588 = vpop.f32.mrf.mxu0
    %1589 = vmatprep.mubr.bf16.mxu0 0
    %1590 = vmatmul.mubr.bf16.gmra.mxu0 %v1384
    %v1591 = vpop.f32.mrf.mxu0
    %v1592 = vadd.f32 0.0, %v1591
    %v1593 = vpop.f32.mrf.mxu0
    %v1594 = vpop.f32.mrf.mxu0
    %v1595 = vadd.f32 0.0, %v1594
    %v1596 = vpop.f32.mrf.mxu0
    %1597 = vdwg.mxu0
    %v1598 = vadd.f32 %v1320, %v1424
    %v1599 = vadd.f32 %v1321, %v1427
    %v1600 = vadd.f32 %v1322, %v1432
    %v1601 = vadd.f32 %v1323, %v1435
    %v1602 = vadd.f32 %v1324, %v1440
    %v1603 = vadd.f32 %v1325, %v1443
    %v1604 = vadd.f32 %v1326, %v1448
    %v1605 = vadd.f32 %v1327, %v1451
    %v1606 = vadd.f32 %v1328, %v1456
    %v1607 = vadd.f32 %v1329, %v1459
    %v1608 = vadd.f32 %v1330, %v1464
    %v1609 = vadd.f32 %v1331, %v1467
    %v1610 = vadd.f32 %v1332, %v1472
    %v1611 = vadd.f32 %v1333, %v1475
    %v1612 = vadd.f32 %v1334, %v1480
    %v1613 = vadd.f32 %v1335, %v1483
    %v1614 = vadd.f32 %v1336, %v1488
    %v1615 = vadd.f32 %v1337, %v1491
    %v1616 = vadd.f32 %v1338, %v1496
    %v1617 = vadd.f32 %v1339, %v1499
    %v1618 = vadd.f32 %v1340, %v1504
    %v1619 = vadd.f32 %v1341, %v1507
    %v1620 = vadd.f32 %v1342, %v1512
    %v1621 = vadd.f32 %v1343, %v1515
    %v1622 = vadd.f32 %v1344, %v1520
    %v1623 = vadd.f32 %v1345, %v1523
    %v1624 = vadd.f32 %v1346, %v1528
    %v1625 = vadd.f32 %v1347, %v1531
    %v1626 = vadd.f32 %v1348, %v1536
    %v1627 = vadd.f32 %v1349, %v1539
    %v1628 = vadd.f32 %v1350, %v1544
    %v1629 = vadd.f32 %v1351, %v1547
    %v1630 = vadd.f32 %v1352, %v1552
    %v1631 = vadd.f32 %v1353, %v1555
    %v1632 = vadd.f32 %v1354, %v1560
    %v1633 = vadd.f32 %v1355, %v1563
    %v1634 = vadd.f32 %v1356, %v1568
    %v1635 = vadd.f32 %v1357, %v1571
    %v1636 = vadd.f32 %v1358, %v1576
    %v1637 = vadd.f32 %v1359, %v1579
    %v1638 = vadd.f32 %v1360, %v1584
    %v1639 = vadd.f32 %v1361, %v1587
    %v1640 = vadd.f32 %v1362, %v1592
    %v1641 = vadd.f32 %v1363, %v1595
    %s1642 = scalar_lea.vmem %s1, 80
    %v1643 = vld [vmem:[%s1642] sm:$0xf]
    %v1644 = vld [vmem:[%s1642 + $0x4] sm:$0xf]
    %v1645 = vld [vmem:[%s1642 + $0x8] sm:$0xf]
    %v1646 = vld [vmem:[%s1642 + $0xc] sm:$0x3]
    %v1648 = vunpack.c.l.b16 %v83
    %v1649 = vpack.c.b16 %v1648, %v1370
    %v1654 = vunpack.c.l.b16 %v1643
    %v1655 = vunpack.c.l.b16 %v1644
    %v1656 = vunpack.c.l.b16 %v1645
    %v1657 = vunpack.c.l.b16 %v1646
    %v1658 = vpack.c.b16 %v1655, %v1654
    %v1659 = vpack.c.b16 %v1657, %v1656
    %v1662 = vsel %vm215, %v1649, 0
    %v1665 = vsel %vm282, %v1659, 0
    %1667 = vmatprep.subr.bf16.mxu0 0
    %1668 = vmatpush1.bf16.msra.mxu0 0
    %1669 = vmatprep.subr.bf16.mxu0 0
    %1670 = vmatpush1.bf16.msra.mxu0 0
    %1671 = vmatprep.subr.bf16.mxu0 0
    %1672 = vmatpush1.bf16.msra.mxu0 0
    %1673 = vmatprep.subr.bf16.mxu0 0
    %1674 = vmatpush1.bf16.msra.mxu0 0
    %1675 = vmatprep.subr.bf16.mxu0 0
    %1676 = vmatpush1.bf16.msra.mxu0 0
    %1677 = vmatprep.subr.bf16.mxu0 0
    %1678 = vmatpush1.bf16.msra.mxu0 0
    %1679 = vmatprep.subr.bf16.mxu0 0
    %1680 = vmatpush1.bf16.msra.mxu0 %v1665
    %1681 = vmatprep.subr.bf16.mxu0 0
    %1682 = vmatpush1.bf16.msra.mxu0 %v1658
    %1683 = vmatprep.subr.bf16.mxu0 0
    %1684 = vmatpush2.bf16.msra.mxu0 0
    %1685 = vmatprep.subr.bf16.mxu0 0
    %1686 = vmatpush2.bf16.msra.mxu0 0
    %1687 = vmatprep.subr.bf16.mxu0 0
    %1688 = vmatpush2.bf16.msra.mxu0 0
    %1689 = vmatprep.subr.bf16.mxu0 0
    %1690 = vmatpush2.bf16.msra.mxu0 0
    %1691 = vmatprep.subr.bf16.mxu0 0
    %1692 = vmatpush2.bf16.msra.mxu0 0
    %1693 = vmatprep.subr.bf16.mxu0 0
    %1694 = vmatpush2.bf16.msra.mxu0 0
    %1695 = vmatprep.subr.bf16.mxu0 0
    %1696 = vmatpush2.bf16.msra.mxu0 0
    %1697 = vmatprep.subr.bf16.mxu0 0
    %1698 = vmatpush2.bf16.msra.mxu0 0
    %1699 = vmatprep.mubr.bf16.mxu0 0
    %1700 = vmatmul.mubr.bf16.gmra.mxu0 %v223
    %v1701 = vpop.f32.mrf.mxu0
    %v1702 = vadd.f32 0.0, %v1701
    %v1703 = vpop.f32.mrf.mxu0
    %v1704 = vpop.f32.mrf.mxu0
    %v1705 = vadd.f32 0.0, %v1704
    %v1706 = vpop.f32.mrf.mxu0
    %1707 = vmatprep.mubr.bf16.mxu0 0
    %1708 = vmatmul.mubr.bf16.gmra.mxu0 %v226
    %v1709 = vpop.f32.mrf.mxu0
    %v1710 = vadd.f32 0.0, %v1709
    %v1711 = vpop.f32.mrf.mxu0
    %v1712 = vpop.f32.mrf.mxu0
    %v1713 = vadd.f32 0.0, %v1712
    %v1714 = vpop.f32.mrf.mxu0
    %1715 = vmatprep.mubr.bf16.mxu0 0
    %1716 = vmatmul.mubr.bf16.gmra.mxu0 %v229
    %v1717 = vpop.f32.mrf.mxu0
    %v1718 = vadd.f32 0.0, %v1717
    %v1719 = vpop.f32.mrf.mxu0
    %v1720 = vpop.f32.mrf.mxu0
    %v1721 = vadd.f32 0.0, %v1720
    %v1722 = vpop.f32.mrf.mxu0
    %1723 = vmatprep.mubr.bf16.mxu0 0
    %1724 = vmatmul.mubr.bf16.gmra.mxu0 %v232
    %v1725 = vpop.f32.mrf.mxu0
    %v1726 = vadd.f32 0.0, %v1725
    %v1727 = vpop.f32.mrf.mxu0
    %v1728 = vpop.f32.mrf.mxu0
    %v1729 = vadd.f32 0.0, %v1728
    %v1730 = vpop.f32.mrf.mxu0
    %1731 = vmatprep.mubr.bf16.mxu0 0
    %1732 = vmatmul.mubr.bf16.gmra.mxu0 %v235
    %v1733 = vpop.f32.mrf.mxu0
    %v1734 = vadd.f32 0.0, %v1733
    %v1735 = vpop.f32.mrf.mxu0
    %v1736 = vpop.f32.mrf.mxu0
    %v1737 = vadd.f32 0.0, %v1736
    %v1738 = vpop.f32.mrf.mxu0
    %1739 = vmatprep.mubr.bf16.mxu0 0
    %1740 = vmatmul.mubr.bf16.gmra.mxu0 %v238
    %v1741 = vpop.f32.mrf.mxu0
    %v1742 = vadd.f32 0.0, %v1741
    %v1743 = vpop.f32.mrf.mxu0
    %v1744 = vpop.f32.mrf.mxu0
    %v1745 = vadd.f32 0.0, %v1744
    %v1746 = vpop.f32.mrf.mxu0
    %1747 = vmatprep.mubr.bf16.mxu0 0
    %1748 = vmatmul.mubr.bf16.gmra.mxu0 %v241
    %v1749 = vpop.f32.mrf.mxu0
    %v1750 = vadd.f32 0.0, %v1749
    %v1751 = vpop.f32.mrf.mxu0
    %v1752 = vpop.f32.mrf.mxu0
    %v1753 = vadd.f32 0.0, %v1752
    %v1754 = vpop.f32.mrf.mxu0
    %1755 = vmatprep.mubr.bf16.mxu0 0
    %1756 = vmatmul.mubr.bf16.gmra.mxu0 %v244
    %v1757 = vpop.f32.mrf.mxu0
    %v1758 = vadd.f32 0.0, %v1757
    %v1759 = vpop.f32.mrf.mxu0
    %v1760 = vpop.f32.mrf.mxu0
    %v1761 = vadd.f32 0.0, %v1760
    %v1762 = vpop.f32.mrf.mxu0
    %1763 = vmatprep.mubr.bf16.mxu0 0
    %1764 = vmatmul.mubr.bf16.gmra.mxu0 %v247
    %v1765 = vpop.f32.mrf.mxu0
    %v1766 = vadd.f32 0.0, %v1765
    %v1767 = vpop.f32.mrf.mxu0
    %v1768 = vpop.f32.mrf.mxu0
    %v1769 = vadd.f32 0.0, %v1768
    %v1770 = vpop.f32.mrf.mxu0
    %1771 = vmatprep.mubr.bf16.mxu0 0
    %1772 = vmatmul.mubr.bf16.gmra.mxu0 %v250
    %v1773 = vpop.f32.mrf.mxu0
    %v1774 = vadd.f32 0.0, %v1773
    %v1775 = vpop.f32.mrf.mxu0
    %v1776 = vpop.f32.mrf.mxu0
    %v1777 = vadd.f32 0.0, %v1776
    %v1778 = vpop.f32.mrf.mxu0
    %1779 = vmatprep.mubr.bf16.mxu0 0
    %1780 = vmatmul.mubr.bf16.gmra.mxu0 %v253
    %v1781 = vpop.f32.mrf.mxu0
    %v1782 = vadd.f32 0.0, %v1781
    %v1783 = vpop.f32.mrf.mxu0
    %v1784 = vpop.f32.mrf.mxu0
    %v1785 = vadd.f32 0.0, %v1784
    %v1786 = vpop.f32.mrf.mxu0
    %1787 = vmatprep.mubr.bf16.mxu0 0
    %1788 = vmatmul.mubr.bf16.gmra.mxu0 %v256
    %v1789 = vpop.f32.mrf.mxu0
    %v1790 = vadd.f32 0.0, %v1789
    %v1791 = vpop.f32.mrf.mxu0
    %v1792 = vpop.f32.mrf.mxu0
    %v1793 = vadd.f32 0.0, %v1792
    %v1794 = vpop.f32.mrf.mxu0
    %1795 = vmatprep.mubr.bf16.mxu0 0
    %1796 = vmatmul.mubr.bf16.gmra.mxu0 %v259
    %v1797 = vpop.f32.mrf.mxu0
    %v1798 = vadd.f32 0.0, %v1797
    %v1799 = vpop.f32.mrf.mxu0
    %v1800 = vpop.f32.mrf.mxu0
    %v1801 = vadd.f32 0.0, %v1800
    %v1802 = vpop.f32.mrf.mxu0
    %1803 = vmatprep.mubr.bf16.mxu0 0
    %1804 = vmatmul.mubr.bf16.gmra.mxu0 %v262
    %v1805 = vpop.f32.mrf.mxu0
    %v1806 = vadd.f32 0.0, %v1805
    %v1807 = vpop.f32.mrf.mxu0
    %v1808 = vpop.f32.mrf.mxu0
    %v1809 = vadd.f32 0.0, %v1808
    %v1810 = vpop.f32.mrf.mxu0
    %1811 = vmatprep.mubr.bf16.mxu0 0
    %1812 = vmatmul.mubr.bf16.gmra.mxu0 %v265
    %v1813 = vpop.f32.mrf.mxu0
    %v1814 = vadd.f32 0.0, %v1813
    %v1815 = vpop.f32.mrf.mxu0
    %v1816 = vpop.f32.mrf.mxu0
    %v1817 = vadd.f32 0.0, %v1816
    %v1818 = vpop.f32.mrf.mxu0
    %1819 = vmatprep.mubr.bf16.mxu0 0
    %1820 = vmatmul.mubr.bf16.gmra.mxu0 %v268
    %v1821 = vpop.f32.mrf.mxu0
    %v1822 = vadd.f32 0.0, %v1821
    %v1823 = vpop.f32.mrf.mxu0
    %v1824 = vpop.f32.mrf.mxu0
    %v1825 = vadd.f32 0.0, %v1824
    %v1826 = vpop.f32.mrf.mxu0
    %1827 = vmatprep.mubr.bf16.mxu0 0
    %1828 = vmatmul.mubr.bf16.gmra.mxu0 %v271
    %v1829 = vpop.f32.mrf.mxu0
    %v1830 = vadd.f32 0.0, %v1829
    %v1831 = vpop.f32.mrf.mxu0
    %v1832 = vpop.f32.mrf.mxu0
    %v1833 = vadd.f32 0.0, %v1832
    %v1834 = vpop.f32.mrf.mxu0
    %1835 = vmatprep.mubr.bf16.mxu0 0
    %1836 = vmatmul.mubr.bf16.gmra.mxu0 %v274
    %v1837 = vpop.f32.mrf.mxu0
    %v1838 = vadd.f32 0.0, %v1837
    %v1839 = vpop.f32.mrf.mxu0
    %v1840 = vpop.f32.mrf.mxu0
    %v1841 = vadd.f32 0.0, %v1840
    %v1842 = vpop.f32.mrf.mxu0
    %1843 = vmatprep.mubr.bf16.mxu0 0
    %1844 = vmatmul.mubr.bf16.gmra.mxu0 %v277
    %v1845 = vpop.f32.mrf.mxu0
    %v1846 = vadd.f32 0.0, %v1845
    %v1847 = vpop.f32.mrf.mxu0
    %v1848 = vpop.f32.mrf.mxu0
    %v1849 = vadd.f32 0.0, %v1848
    %v1850 = vpop.f32.mrf.mxu0
    %1851 = vmatprep.mubr.bf16.mxu0 0
    %1852 = vmatmul.mubr.bf16.gmra.mxu0 %v280
    %v1853 = vpop.f32.mrf.mxu0
    %v1854 = vadd.f32 0.0, %v1853
    %v1855 = vpop.f32.mrf.mxu0
    %v1856 = vpop.f32.mrf.mxu0
    %v1857 = vadd.f32 0.0, %v1856
    %v1858 = vpop.f32.mrf.mxu0
    %1859 = vmatprep.mubr.bf16.mxu0 0
    %1860 = vmatmul.mubr.bf16.gmra.mxu0 %v1106
    %v1861 = vpop.f32.mrf.mxu0
    %v1862 = vadd.f32 0.0, %v1861
    %v1863 = vpop.f32.mrf.mxu0
    %v1864 = vpop.f32.mrf.mxu0
    %v1865 = vadd.f32 0.0, %v1864
    %v1866 = vpop.f32.mrf.mxu0
    %1867 = vmatprep.mubr.bf16.mxu0 0
    %1868 = vmatmul.mubr.bf16.gmra.mxu0 %v1662
    %v1869 = vpop.f32.mrf.mxu0
    %v1870 = vadd.f32 0.0, %v1869
    %v1871 = vpop.f32.mrf.mxu0
    %v1872 = vpop.f32.mrf.mxu0
    %v1873 = vadd.f32 0.0, %v1872
    %v1874 = vpop.f32.mrf.mxu0
    %1875 = vdwg.mxu0
    %v1876 = vadd.f32 %v1598, %v1702
    %v1877 = vadd.f32 %v1599, %v1705
    %v1878 = vadd.f32 %v1600, %v1710
    %v1879 = vadd.f32 %v1601, %v1713
    %v1880 = vadd.f32 %v1602, %v1718
    %v1881 = vadd.f32 %v1603, %v1721
    %v1882 = vadd.f32 %v1604, %v1726
    %v1883 = vadd.f32 %v1605, %v1729
    %v1884 = vadd.f32 %v1606, %v1734
    %v1885 = vadd.f32 %v1607, %v1737
    %v1886 = vadd.f32 %v1608, %v1742
    %v1887 = vadd.f32 %v1609, %v1745
    %v1888 = vadd.f32 %v1610, %v1750
    %v1889 = vadd.f32 %v1611, %v1753
    %v1890 = vadd.f32 %v1612, %v1758
    %v1891 = vadd.f32 %v1613, %v1761
    %v1892 = vadd.f32 %v1614, %v1766
    %v1893 = vadd.f32 %v1615, %v1769
    %v1894 = vadd.f32 %v1616, %v1774
    %v1895 = vadd.f32 %v1617, %v1777
    %v1896 = vadd.f32 %v1618, %v1782
    %v1897 = vadd.f32 %v1619, %v1785
    %v1898 = vadd.f32 %v1620, %v1790
    %v1899 = vadd.f32 %v1621, %v1793
    %v1900 = vadd.f32 %v1622, %v1798
    %v1901 = vadd.f32 %v1623, %v1801
    %v1902 = vadd.f32 %v1624, %v1806
    %v1903 = vadd.f32 %v1625, %v1809
    %v1904 = vadd.f32 %v1626, %v1814
    %v1905 = vadd.f32 %v1627, %v1817
    %v1906 = vadd.f32 %v1628, %v1822
    %v1907 = vadd.f32 %v1629, %v1825
    %v1908 = vadd.f32 %v1630, %v1830
    %v1909 = vadd.f32 %v1631, %v1833
    %v1910 = vadd.f32 %v1632, %v1838
    %v1911 = vadd.f32 %v1633, %v1841
    %v1912 = vadd.f32 %v1634, %v1846
    %v1913 = vadd.f32 %v1635, %v1849
    %v1914 = vadd.f32 %v1636, %v1854
    %v1915 = vadd.f32 %v1637, %v1857
    %v1916 = vadd.f32 %v1638, %v1862
    %v1917 = vadd.f32 %v1639, %v1865
    %v1918 = vadd.f32 %v1640, %v1870
    %v1919 = vadd.f32 %v1641, %v1873
    %s1920 = scalar_lea.vmem %s1, 96
    %v1921 = vld [vmem:[%s1920] sm:$0xf]
    %v1922 = vld [vmem:[%s1920 + $0x4] sm:$0xf]
    %v1923 = vld [vmem:[%s1920 + $0x8] sm:$0xf]
    %v1924 = vld [vmem:[%s1920 + $0xc] sm:$0x3]
    %v1926 = vunpack.c.l.b16 %v84
    %v1927 = vpack.c.b16 %v1926, %v1648
    %v1932 = vunpack.c.l.b16 %v1921
    %v1933 = vunpack.c.l.b16 %v1922
    %v1934 = vunpack.c.l.b16 %v1923
    %v1935 = vunpack.c.l.b16 %v1924
    %v1936 = vpack.c.b16 %v1933, %v1932
    %v1937 = vpack.c.b16 %v1935, %v1934
    %v1940 = vsel %vm215, %v1927, 0
    %v1943 = vsel %vm282, %v1937, 0
    %1945 = vmatprep.subr.bf16.mxu0 0
    %1946 = vmatpush1.bf16.msra.mxu0 0
    %1947 = vmatprep.subr.bf16.mxu0 0
    %1948 = vmatpush1.bf16.msra.mxu0 0
    %1949 = vmatprep.subr.bf16.mxu0 0
    %1950 = vmatpush1.bf16.msra.mxu0 0
    %1951 = vmatprep.subr.bf16.mxu0 0
    %1952 = vmatpush1.bf16.msra.mxu0 0
    %1953 = vmatprep.subr.bf16.mxu0 0
    %1954 = vmatpush1.bf16.msra.mxu0 0
    %1955 = vmatprep.subr.bf16.mxu0 0
    %1956 = vmatpush1.bf16.msra.mxu0 0
    %1957 = vmatprep.subr.bf16.mxu0 0
    %1958 = vmatpush1.bf16.msra.mxu0 %v1943
    %1959 = vmatprep.subr.bf16.mxu0 0
    %1960 = vmatpush1.bf16.msra.mxu0 %v1936
    %1961 = vmatprep.subr.bf16.mxu0 0
    %1962 = vmatpush2.bf16.msra.mxu0 0
    %1963 = vmatprep.subr.bf16.mxu0 0
    %1964 = vmatpush2.bf16.msra.mxu0 0
    %1965 = vmatprep.subr.bf16.mxu0 0
    %1966 = vmatpush2.bf16.msra.mxu0 0
    %1967 = vmatprep.subr.bf16.mxu0 0
    %1968 = vmatpush2.bf16.msra.mxu0 0
    %1969 = vmatprep.subr.bf16.mxu0 0
    %1970 = vmatpush2.bf16.msra.mxu0 0
    %1971 = vmatprep.subr.bf16.mxu0 0
    %1972 = vmatpush2.bf16.msra.mxu0 0
    %1973 = vmatprep.subr.bf16.mxu0 0
    %1974 = vmatpush2.bf16.msra.mxu0 0
    %1975 = vmatprep.subr.bf16.mxu0 0
    %1976 = vmatpush2.bf16.msra.mxu0 0
    %1977 = vmatprep.mubr.bf16.mxu0 0
    %1978 = vmatmul.mubr.bf16.gmra.mxu0 %v540
    %v1979 = vpop.f32.mrf.mxu0
    %v1980 = vadd.f32 0.0, %v1979
    %v1981 = vpop.f32.mrf.mxu0
    %v1982 = vpop.f32.mrf.mxu0
    %v1983 = vadd.f32 0.0, %v1982
    %v1984 = vpop.f32.mrf.mxu0
    %1985 = vmatprep.mubr.bf16.mxu0 0
    %1986 = vmatmul.mubr.bf16.gmra.mxu0 %v543
    %v1987 = vpop.f32.mrf.mxu0
    %v1988 = vadd.f32 0.0, %v1987
    %v1989 = vpop.f32.mrf.mxu0
    %v1990 = vpop.f32.mrf.mxu0
    %v1991 = vadd.f32 0.0, %v1990
    %v1992 = vpop.f32.mrf.mxu0
    %1993 = vmatprep.mubr.bf16.mxu0 0
    %1994 = vmatmul.mubr.bf16.gmra.mxu0 %v546
    %v1995 = vpop.f32.mrf.mxu0
    %v1996 = vadd.f32 0.0, %v1995
    %v1997 = vpop.f32.mrf.mxu0
    %v1998 = vpop.f32.mrf.mxu0
    %v1999 = vadd.f32 0.0, %v1998
    %v2000 = vpop.f32.mrf.mxu0
    %2001 = vmatprep.mubr.bf16.mxu0 0
    %2002 = vmatmul.mubr.bf16.gmra.mxu0 %v549
    %v2003 = vpop.f32.mrf.mxu0
    %v2004 = vadd.f32 0.0, %v2003
    %v2005 = vpop.f32.mrf.mxu0
    %v2006 = vpop.f32.mrf.mxu0
    %v2007 = vadd.f32 0.0, %v2006
    %v2008 = vpop.f32.mrf.mxu0
    %2009 = vmatprep.mubr.bf16.mxu0 0
    %2010 = vmatmul.mubr.bf16.gmra.mxu0 %v552
    %v2011 = vpop.f32.mrf.mxu0
    %v2012 = vadd.f32 0.0, %v2011
    %v2013 = vpop.f32.mrf.mxu0
    %v2014 = vpop.f32.mrf.mxu0
    %v2015 = vadd.f32 0.0, %v2014
    %v2016 = vpop.f32.mrf.mxu0
    %2017 = vmatprep.mubr.bf16.mxu0 0
    %2018 = vmatmul.mubr.bf16.gmra.mxu0 %v555
    %v2019 = vpop.f32.mrf.mxu0
    %v2020 = vadd.f32 0.0, %v2019
    %v2021 = vpop.f32.mrf.mxu0
    %v2022 = vpop.f32.mrf.mxu0
    %v2023 = vadd.f32 0.0, %v2022
    %v2024 = vpop.f32.mrf.mxu0
    %2025 = vmatprep.mubr.bf16.mxu0 0
    %2026 = vmatmul.mubr.bf16.gmra.mxu0 %v558
    %v2027 = vpop.f32.mrf.mxu0
    %v2028 = vadd.f32 0.0, %v2027
    %v2029 = vpop.f32.mrf.mxu0
    %v2030 = vpop.f32.mrf.mxu0
    %v2031 = vadd.f32 0.0, %v2030
    %v2032 = vpop.f32.mrf.mxu0
    %2033 = vmatprep.mubr.bf16.mxu0 0
    %2034 = vmatmul.mubr.bf16.gmra.mxu0 %v561
    %v2035 = vpop.f32.mrf.mxu0
    %v2036 = vadd.f32 0.0, %v2035
    %v2037 = vpop.f32.mrf.mxu0
    %v2038 = vpop.f32.mrf.mxu0
    %v2039 = vadd.f32 0.0, %v2038
    %v2040 = vpop.f32.mrf.mxu0
    %2041 = vmatprep.mubr.bf16.mxu0 0
    %2042 = vmatmul.mubr.bf16.gmra.mxu0 %v564
    %v2043 = vpop.f32.mrf.mxu0
    %v2044 = vadd.f32 0.0, %v2043
    %v2045 = vpop.f32.mrf.mxu0
    %v2046 = vpop.f32.mrf.mxu0
    %v2047 = vadd.f32 0.0, %v2046
    %v2048 = vpop.f32.mrf.mxu0
    %2049 = vmatprep.mubr.bf16.mxu0 0
    %2050 = vmatmul.mubr.bf16.gmra.mxu0 %v567
    %v2051 = vpop.f32.mrf.mxu0
    %v2052 = vadd.f32 0.0, %v2051
    %v2053 = vpop.f32.mrf.mxu0
    %v2054 = vpop.f32.mrf.mxu0
    %v2055 = vadd.f32 0.0, %v2054
    %v2056 = vpop.f32.mrf.mxu0
    %2057 = vmatprep.mubr.bf16.mxu0 0
    %2058 = vmatmul.mubr.bf16.gmra.mxu0 %v570
    %v2059 = vpop.f32.mrf.mxu0
    %v2060 = vadd.f32 0.0, %v2059
    %v2061 = vpop.f32.mrf.mxu0
    %v2062 = vpop.f32.mrf.mxu0
    %v2063 = vadd.f32 0.0, %v2062
    %v2064 = vpop.f32.mrf.mxu0
    %2065 = vmatprep.mubr.bf16.mxu0 0
    %2066 = vmatmul.mubr.bf16.gmra.mxu0 %v573
    %v2067 = vpop.f32.mrf.mxu0
    %v2068 = vadd.f32 0.0, %v2067
    %v2069 = vpop.f32.mrf.mxu0
    %v2070 = vpop.f32.mrf.mxu0
    %v2071 = vadd.f32 0.0, %v2070
    %v2072 = vpop.f32.mrf.mxu0
    %2073 = vmatprep.mubr.bf16.mxu0 0
    %2074 = vmatmul.mubr.bf16.gmra.mxu0 %v576
    %v2075 = vpop.f32.mrf.mxu0
    %v2076 = vadd.f32 0.0, %v2075
    %v2077 = vpop.f32.mrf.mxu0
    %v2078 = vpop.f32.mrf.mxu0
    %v2079 = vadd.f32 0.0, %v2078
    %v2080 = vpop.f32.mrf.mxu0
    %2081 = vmatprep.mubr.bf16.mxu0 0
    %2082 = vmatmul.mubr.bf16.gmra.mxu0 %v579
    %v2083 = vpop.f32.mrf.mxu0
    %v2084 = vadd.f32 0.0, %v2083
    %v2085 = vpop.f32.mrf.mxu0
    %v2086 = vpop.f32.mrf.mxu0
    %v2087 = vadd.f32 0.0, %v2086
    %v2088 = vpop.f32.mrf.mxu0
    %2089 = vmatprep.mubr.bf16.mxu0 0
    %2090 = vmatmul.mubr.bf16.gmra.mxu0 %v582
    %v2091 = vpop.f32.mrf.mxu0
    %v2092 = vadd.f32 0.0, %v2091
    %v2093 = vpop.f32.mrf.mxu0
    %v2094 = vpop.f32.mrf.mxu0
    %v2095 = vadd.f32 0.0, %v2094
    %v2096 = vpop.f32.mrf.mxu0
    %2097 = vmatprep.mubr.bf16.mxu0 0
    %2098 = vmatmul.mubr.bf16.gmra.mxu0 %v585
    %v2099 = vpop.f32.mrf.mxu0
    %v2100 = vadd.f32 0.0, %v2099
    %v2101 = vpop.f32.mrf.mxu0
    %v2102 = vpop.f32.mrf.mxu0
    %v2103 = vadd.f32 0.0, %v2102
    %v2104 = vpop.f32.mrf.mxu0
    %2105 = vmatprep.mubr.bf16.mxu0 0
    %2106 = vmatmul.mubr.bf16.gmra.mxu0 %v588
    %v2107 = vpop.f32.mrf.mxu0
    %v2108 = vadd.f32 0.0, %v2107
    %v2109 = vpop.f32.mrf.mxu0
    %v2110 = vpop.f32.mrf.mxu0
    %v2111 = vadd.f32 0.0, %v2110
    %v2112 = vpop.f32.mrf.mxu0
    %2113 = vmatprep.mubr.bf16.mxu0 0
    %2114 = vmatmul.mubr.bf16.gmra.mxu0 %v591
    %v2115 = vpop.f32.mrf.mxu0
    %v2116 = vadd.f32 0.0, %v2115
    %v2117 = vpop.f32.mrf.mxu0
    %v2118 = vpop.f32.mrf.mxu0
    %v2119 = vadd.f32 0.0, %v2118
    %v2120 = vpop.f32.mrf.mxu0
    %2121 = vmatprep.mubr.bf16.mxu0 0
    %2122 = vmatmul.mubr.bf16.gmra.mxu0 %v594
    %v2123 = vpop.f32.mrf.mxu0
    %v2124 = vadd.f32 0.0, %v2123
    %v2125 = vpop.f32.mrf.mxu0
    %v2126 = vpop.f32.mrf.mxu0
    %v2127 = vadd.f32 0.0, %v2126
    %v2128 = vpop.f32.mrf.mxu0
    %2129 = vmatprep.mubr.bf16.mxu0 0
    %2130 = vmatmul.mubr.bf16.gmra.mxu0 %v828
    %v2131 = vpop.f32.mrf.mxu0
    %v2132 = vadd.f32 0.0, %v2131
    %v2133 = vpop.f32.mrf.mxu0
    %v2134 = vpop.f32.mrf.mxu0
    %v2135 = vadd.f32 0.0, %v2134
    %v2136 = vpop.f32.mrf.mxu0
    %2137 = vmatprep.mubr.bf16.mxu0 0
    %2138 = vmatmul.mubr.bf16.gmra.mxu0 %v1384
    %v2139 = vpop.f32.mrf.mxu0
    %v2140 = vadd.f32 0.0, %v2139
    %v2141 = vpop.f32.mrf.mxu0
    %v2142 = vpop.f32.mrf.mxu0
    %v2143 = vadd.f32 0.0, %v2142
    %v2144 = vpop.f32.mrf.mxu0
    %2145 = vmatprep.mubr.bf16.mxu0 0
    %2146 = vmatmul.mubr.bf16.gmra.mxu0 %v1940
    %v2147 = vpop.f32.mrf.mxu0
    %v2148 = vadd.f32 0.0, %v2147
    %v2149 = vpop.f32.mrf.mxu0
    %v2150 = vpop.f32.mrf.mxu0
    %v2151 = vadd.f32 0.0, %v2150
    %v2152 = vpop.f32.mrf.mxu0
    %2153 = vdwg.mxu0
    %v2154 = vadd.f32 %v1876, %v1980
    %v2155 = vadd.f32 %v1877, %v1983
    %v2156 = vadd.f32 %v1878, %v1988
    %v2157 = vadd.f32 %v1879, %v1991
    %v2158 = vadd.f32 %v1880, %v1996
    %v2159 = vadd.f32 %v1881, %v1999
    %v2160 = vadd.f32 %v1882, %v2004
    %v2161 = vadd.f32 %v1883, %v2007
    %v2162 = vadd.f32 %v1884, %v2012
    %v2163 = vadd.f32 %v1885, %v2015
    %v2164 = vadd.f32 %v1886, %v2020
    %v2165 = vadd.f32 %v1887, %v2023
    %v2166 = vadd.f32 %v1888, %v2028
    %v2167 = vadd.f32 %v1889, %v2031
    %v2168 = vadd.f32 %v1890, %v2036
    %v2169 = vadd.f32 %v1891, %v2039
    %v2170 = vadd.f32 %v1892, %v2044
    %v2171 = vadd.f32 %v1893, %v2047
    %v2172 = vadd.f32 %v1894, %v2052
    %v2173 = vadd.f32 %v1895, %v2055
    %v2174 = vadd.f32 %v1896, %v2060
    %v2175 = vadd.f32 %v1897, %v2063
    %v2176 = vadd.f32 %v1898, %v2068
    %v2177 = vadd.f32 %v1899, %v2071
    %v2178 = vadd.f32 %v1900, %v2076
    %v2179 = vadd.f32 %v1901, %v2079
    %v2180 = vadd.f32 %v1902, %v2084
    %v2181 = vadd.f32 %v1903, %v2087
    %v2182 = vadd.f32 %v1904, %v2092
    %v2183 = vadd.f32 %v1905, %v2095
    %v2184 = vadd.f32 %v1906, %v2100
    %v2185 = vadd.f32 %v1907, %v2103
    %v2186 = vadd.f32 %v1908, %v2108
    %v2187 = vadd.f32 %v1909, %v2111
    %v2188 = vadd.f32 %v1910, %v2116
    %v2189 = vadd.f32 %v1911, %v2119
    %v2190 = vadd.f32 %v1912, %v2124
    %v2191 = vadd.f32 %v1913, %v2127
    %v2192 = vadd.f32 %v1914, %v2132
    %v2193 = vadd.f32 %v1915, %v2135
    %v2194 = vadd.f32 %v1916, %v2140
    %v2195 = vadd.f32 %v1917, %v2143
    %v2196 = vadd.f32 %v1918, %v2148
    %v2197 = vadd.f32 %v1919, %v2151
    %v2198 = vmax.f32 %v2154, %v2155
    %v2199 = vmax.f32 %v2158, %v2159
    %v2200 = vmax.f32 %v2162, %v2163
    %v2201 = vmax.f32 %v2166, %v2167
    %v2202 = vmax.f32 %v2170, %v2171
    %v2203 = vmax.f32 %v2174, %v2175
    %v2204 = vmax.f32 %v2178, %v2179
    %v2205 = vmax.f32 %v2182, %v2183
    %v2206 = vmax.f32 %v2186, %v2187
    %v2207 = vmax.f32 %v2190, %v2191
    %v2208 = vmax.f32 %v2194, %v2195
    %v2209 = vmax.f32 %v2156, %v2157
    %v2210 = vmax.f32 %v2160, %v2161
    %v2211 = vmax.f32 %v2164, %v2165
    %v2212 = vmax.f32 %v2168, %v2169
    %v2213 = vmax.f32 %v2172, %v2173
    %v2214 = vmax.f32 %v2176, %v2177
    %v2215 = vmax.f32 %v2180, %v2181
    %v2216 = vmax.f32 %v2184, %v2185
    %v2217 = vmax.f32 %v2188, %v2189
    %v2218 = vmax.f32 %v2192, %v2193
    %v2219 = vmax.f32 %v2196, %v2197
    %v2220 = vmax.f32 %v2198, %v2209
    %v2221 = vmax.f32 %v2199, %v2210
    %v2222 = vmax.f32 %v2200, %v2211
    %v2223 = vmax.f32 %v2201, %v2212
    %v2224 = vmax.f32 %v2202, %v2213
    %v2225 = vmax.f32 %v2203, %v2214
    %v2226 = vmax.f32 %v2204, %v2215
    %v2227 = vmax.f32 %v2205, %v2216
    %v2228 = vmax.f32 %v2206, %v2217
    %v2229 = vmax.f32 %v2207, %v2218
    %v2230 = vmax.f32 %v2208, %v2219
    %v2231 = vld [vmem:[%s4] sm:$0x1]
    %s2232 = scalar_lea.vmem %s4, 1
    %v2233 = vld [vmem:[%s2232] ss:$4 sm:$0x7]
    %v2234 = vld [vmem:[%s4 + $0x2] sm:$0x1]
    %v2235 = vlaneseq
    %v2236 = vshrl.u32 %v2235, 7
    %v2237 = vsub.s32 0, %v2236
    %v2238 = vrot.slane %v2231, %v2237
    %v2239 = vadd.f32 %v2220, %v2238
    %v2240 = vmax.f32 %v2239, 0.0
    %v2241 = vpack.c.bf16 %v2240, %v2240
    %v2242 = vld [vmem:[#allocation2] sm:$0xff]
    %v2243 = vld [vmem:[#allocation2 + $0x8] sm:$0xf]
    %v2244 = vld [vmem:[#allocation2 + $0xc] sm:$0xff]
    %v2245 = vld [vmem:[#allocation2 + $0x14] sm:$0xf]
    %v2246 = vld [vmem:[#allocation2 + $0x18] sm:$0xff]
    %v2247 = vld [vmem:[#allocation2 + $0x20] sm:$0xf]
    %v2248 = vld [vmem:[#allocation2 + $0x24] sm:$0x33]
    %v2249 = vld [vmem:[#allocation2 + $0x2c] sm:$0x3]
    %v2250 = vadd.f32 %v2221, %v2238
    %v2251 = vmax.f32 %v2250, 0.0
    %v2252 = vpack.c.bf16 %v2251, %v2251
    %s2253 = scalar_lea.vmem [#allocation2], 48
    %v2254 = vld [vmem:[%s2253] sm:$0xff]
    %v2255 = vld [vmem:[%s2253 + $0x8] sm:$0xf]
    %v2256 = vld [vmem:[%s2253 + $0xc] sm:$0xff]
    %v2257 = vld [vmem:[%s2253 + $0x14] sm:$0xf]
    %v2258 = vld [vmem:[%s2253 + $0x18] sm:$0xff]
    %v2259 = vld [vmem:[%s2253 + $0x20] sm:$0xf]
    %v2260 = vld [vmem:[%s2253 + $0x24] sm:$0x33]
    %v2261 = vld [vmem:[%s2253 + $0x2c] sm:$0x3]
    %v2270 = vunpack.c.l.b16 %v2254
    %v2271 = vunpack.c.h.b16 %v2254
    %v2272 = vunpack.c.l.b16 %v2255
    %v2273 = vunpack.c.l.b16 %v2256
    %v2274 = vunpack.c.h.b16 %v2256
    %v2275 = vunpack.c.l.b16 %v2257
    %v2276 = vunpack.c.l.b16 %v2258
    %v2277 = vunpack.c.h.b16 %v2258
    %v2278 = vunpack.c.l.b16 %v2259
    %v2279 = vunpack.c.l.b16 %v2260
    %v2280 = vunpack.c.h.b16 %v2260
    %v2281 = vunpack.c.l.b16 %v2261
    %v2282 = vpack.c.b16 %v2273, %v2270
    %v2283 = vpack.c.b16 %v2274, %v2271
    %v2284 = vpack.c.b16 %v2275, %v2272
    %v2285 = vpack.c.b16 %v2279, %v2276
    %v2286 = vpack.c.b16 %v2280, %v2277
    %v2287 = vpack.c.b16 %v2281, %v2278
    %v2292 = vsel %vm215, %v2252, 0
    %v2295 = vsel %vm282, %v2285, 0
    %v2298 = vsel %vm282, %v2286, 0
    %v2301 = vsel %vm282, %v2287, 0
    %2303 = vmatprep.subr.bf16.mxu0 0
    %2304 = vmatpush1.bf16.msra.mxu0 0
    %2305 = vmatprep.subr.bf16.mxu0 0
    %2306 = vmatpush1.bf16.msra.mxu0 0
    %2307 = vmatprep.subr.bf16.mxu0 0
    %2308 = vmatpush1.bf16.msra.mxu0 0
    %2309 = vmatprep.subr.bf16.mxu0 0
    %2310 = vmatpush1.bf16.msra.mxu0 0
    %2311 = vmatprep.subr.bf16.mxu0 0
    %2312 = vmatpush1.bf16.msra.mxu0 0
    %2313 = vmatprep.subr.bf16.mxu0 0
    %2314 = vmatpush1.bf16.msra.mxu0 0
    %2315 = vmatprep.subr.bf16.mxu0 %v2298
    %2316 = vmatpush1.bf16.msra.mxu0 %v2295
    %2317 = vmatprep.subr.bf16.mxu0 %v2283
    %2318 = vmatpush1.bf16.msra.mxu0 %v2282
    %2319 = vmatprep.subr.bf16.mxu0 0
    %2320 = vmatpush2.bf16.msra.mxu0 0
    %2321 = vmatprep.subr.bf16.mxu0 0
    %2322 = vmatpush2.bf16.msra.mxu0 0
    %2323 = vmatprep.subr.bf16.mxu0 0
    %2324 = vmatpush2.bf16.msra.mxu0 0
    %2325 = vmatprep.subr.bf16.mxu0 0
    %2326 = vmatpush2.bf16.msra.mxu0 0
    %2327 = vmatprep.subr.bf16.mxu0 0
    %2328 = vmatpush2.bf16.msra.mxu0 0
    %2329 = vmatprep.subr.bf16.mxu0 0
    %2330 = vmatpush2.bf16.msra.mxu0 0
    %2331 = vmatprep.subr.bf16.mxu0 0
    %2332 = vmatpush2.bf16.msra.mxu0 0
    %2333 = vmatprep.subr.bf16.mxu0 0
    %2334 = vmatpush2.bf16.msra.mxu0 0
    %2335 = vmatprep.mubr.bf16.mxu0 0
    %2336 = vmatmul.mubr.bf16.gmra.mxu0 %v2292
    %v2337 = vpop.f32.mrf.mxu0
    %v2338 = vadd.f32 0.0, %v2337
    %v2339 = vpop.f32.mrf.mxu0
    %v2340 = vadd.f32 0.0, %v2339
    %v2341 = vpop.f32.mrf.mxu0
    %v2342 = vpop.f32.mrf.mxu0
    %2343 = vdwg.mxu0
    %2344 = vmatprep.subr.bf16.mxu0 0
    %2345 = vmatpush1.bf16.msra.mxu0 0
    %2346 = vmatprep.subr.bf16.mxu0 0
    %2347 = vmatpush1.bf16.msra.mxu0 0
    %2348 = vmatprep.subr.bf16.mxu0 0
    %2349 = vmatpush1.bf16.msra.mxu0 0
    %2350 = vmatprep.subr.bf16.mxu0 0
    %2351 = vmatpush1.bf16.msra.mxu0 0
    %2352 = vmatprep.subr.bf16.mxu0 0
    %2353 = vmatpush1.bf16.msra.mxu0 0
    %2354 = vmatprep.subr.bf16.mxu0 0
    %2355 = vmatpush1.bf16.msra.mxu0 0
    %2356 = vmatprep.subr.bf16.mxu0 0
    %2357 = vmatpush1.bf16.msra.mxu0 %v2301
    %2358 = vmatprep.subr.bf16.mxu0 0
    %2359 = vmatpush1.bf16.msra.mxu0 %v2284
    %2360 = vmatprep.subr.bf16.mxu0 0
    %2361 = vmatpush2.bf16.msra.mxu0 0
    %2362 = vmatprep.subr.bf16.mxu0 0
    %2363 = vmatpush2.bf16.msra.mxu0 0
    %2364 = vmatprep.subr.bf16.mxu0 0
    %2365 = vmatpush2.bf16.msra.mxu0 0
    %2366 = vmatprep.subr.bf16.mxu0 0
    %2367 = vmatpush2.bf16.msra.mxu0 0
    %2368 = vmatprep.subr.bf16.mxu0 0
    %2369 = vmatpush2.bf16.msra.mxu0 0
    %2370 = vmatprep.subr.bf16.mxu0 0
    %2371 = vmatpush2.bf16.msra.mxu0 0
    %2372 = vmatprep.subr.bf16.mxu0 0
    %2373 = vmatpush2.bf16.msra.mxu0 0
    %2374 = vmatprep.subr.bf16.mxu0 0
    %2375 = vmatpush2.bf16.msra.mxu0 0
    %2376 = vmatprep.mubr.bf16.mxu0 0
    %2377 = vmatmul.mubr.bf16.gmra.mxu0 %v2292
    %v2378 = vpop.f32.mrf.mxu0
    %v2379 = vadd.f32 0.0, %v2378
    %v2380 = vpop.f32.mrf.mxu0
    %v2381 = vpop.f32.mrf.mxu0
    %v2382 = vpop.f32.mrf.mxu0
    %2383 = vdwg.mxu0
    %v2392 = vunpack.c.l.b16 %v2242
    %v2393 = vunpack.c.h.b16 %v2242
    %v2394 = vunpack.c.l.b16 %v2243
    %v2395 = vunpack.c.l.b16 %v2244
    %v2396 = vunpack.c.h.b16 %v2244
    %v2397 = vunpack.c.l.b16 %v2245
    %v2398 = vunpack.c.l.b16 %v2246
    %v2399 = vunpack.c.h.b16 %v2246
    %v2400 = vunpack.c.l.b16 %v2247
    %v2401 = vunpack.c.l.b16 %v2248
    %v2402 = vunpack.c.h.b16 %v2248
    %v2403 = vunpack.c.l.b16 %v2249
    %v2404 = vpack.c.b16 %v2395, %v2392
    %v2405 = vpack.c.b16 %v2396, %v2393
    %v2406 = vpack.c.b16 %v2397, %v2394
    %v2407 = vpack.c.b16 %v2401, %v2398
    %v2408 = vpack.c.b16 %v2402, %v2399
    %v2409 = vpack.c.b16 %v2403, %v2400
    %v2414 = vsel %vm215, %v2241, 0
    %v2417 = vsel %vm282, %v2407, 0
    %v2420 = vsel %vm282, %v2408, 0
    %v2423 = vsel %vm282, %v2409, 0
    %2425 = vmatprep.subr.bf16.mxu0 0
    %2426 = vmatpush1.bf16.msra.mxu0 0
    %2427 = vmatprep.subr.bf16.mxu0 0
    %2428 = vmatpush1.bf16.msra.mxu0 0
    %2429 = vmatprep.subr.bf16.mxu0 0
    %2430 = vmatpush1.bf16.msra.mxu0 0
    %2431 = vmatprep.subr.bf16.mxu0 0
    %2432 = vmatpush1.bf16.msra.mxu0 0
    %2433 = vmatprep.subr.bf16.mxu0 0
    %2434 = vmatpush1.bf16.msra.mxu0 0
    %2435 = vmatprep.subr.bf16.mxu0 0
    %2436 = vmatpush1.bf16.msra.mxu0 0
    %2437 = vmatprep.subr.bf16.mxu0 %v2420
    %2438 = vmatpush1.bf16.msra.mxu0 %v2417
    %2439 = vmatprep.subr.bf16.mxu0 %v2405
    %2440 = vmatpush1.bf16.msra.mxu0 %v2404
    %2441 = vmatprep.subr.bf16.mxu0 0
    %2442 = vmatpush2.bf16.msra.mxu0 0
    %2443 = vmatprep.subr.bf16.mxu0 0
    %2444 = vmatpush2.bf16.msra.mxu0 0
    %2445 = vmatprep.subr.bf16.mxu0 0
    %2446 = vmatpush2.bf16.msra.mxu0 0
    %2447 = vmatprep.subr.bf16.mxu0 0
    %2448 = vmatpush2.bf16.msra.mxu0 0
    %2449 = vmatprep.subr.bf16.mxu0 0
    %2450 = vmatpush2.bf16.msra.mxu0 0
    %2451 = vmatprep.subr.bf16.mxu0 0
    %2452 = vmatpush2.bf16.msra.mxu0 0
    %2453 = vmatprep.subr.bf16.mxu0 0
    %2454 = vmatpush2.bf16.msra.mxu0 0
    %2455 = vmatprep.subr.bf16.mxu0 0
    %2456 = vmatpush2.bf16.msra.mxu0 0
    %2457 = vmatprep.mubr.bf16.mxu0 0
    %2458 = vmatmul.mubr.bf16.gmra.mxu0 %v2414
    %v2459 = vpop.f32.mrf.mxu0
    %v2460 = vadd.f32 %v2338, %v2459
    %v2461 = vpop.f32.mrf.mxu0
    %v2462 = vadd.f32 %v2340, %v2461
    %v2463 = vpop.f32.mrf.mxu0
    %v2464 = vpop.f32.mrf.mxu0
    %2465 = vdwg.mxu0
    %2466 = vmatprep.subr.bf16.mxu0 0
    %2467 = vmatpush1.bf16.msra.mxu0 0
    %2468 = vmatprep.subr.bf16.mxu0 0
    %2469 = vmatpush1.bf16.msra.mxu0 0
    %2470 = vmatprep.subr.bf16.mxu0 0
    %2471 = vmatpush1.bf16.msra.mxu0 0
    %2472 = vmatprep.subr.bf16.mxu0 0
    %2473 = vmatpush1.bf16.msra.mxu0 0
    %2474 = vmatprep.subr.bf16.mxu0 0
    %2475 = vmatpush1.bf16.msra.mxu0 0
    %2476 = vmatprep.subr.bf16.mxu0 0
    %2477 = vmatpush1.bf16.msra.mxu0 0
    %2478 = vmatprep.subr.bf16.mxu0 0
    %2479 = vmatpush1.bf16.msra.mxu0 %v2423
    %2480 = vmatprep.subr.bf16.mxu0 0
    %2481 = vmatpush1.bf16.msra.mxu0 %v2406
    %2482 = vmatprep.subr.bf16.mxu0 0
    %2483 = vmatpush2.bf16.msra.mxu0 0
    %2484 = vmatprep.subr.bf16.mxu0 0
    %2485 = vmatpush2.bf16.msra.mxu0 0
    %2486 = vmatprep.subr.bf16.mxu0 0
    %2487 = vmatpush2.bf16.msra.mxu0 0
    %2488 = vmatprep.subr.bf16.mxu0 0
    %2489 = vmatpush2.bf16.msra.mxu0 0
    %2490 = vmatprep.subr.bf16.mxu0 0
    %2491 = vmatpush2.bf16.msra.mxu0 0
    %2492 = vmatprep.subr.bf16.mxu0 0
    %2493 = vmatpush2.bf16.msra.mxu0 0
    %2494 = vmatprep.subr.bf16.mxu0 0
    %2495 = vmatpush2.bf16.msra.mxu0 0
    %2496 = vmatprep.subr.bf16.mxu0 0
    %2497 = vmatpush2.bf16.msra.mxu0 0
    %2498 = vmatprep.mubr.bf16.mxu0 0
    %2499 = vmatmul.mubr.bf16.gmra.mxu0 %v2414
    %v2500 = vpop.f32.mrf.mxu0
    %v2501 = vadd.f32 %v2379, %v2500
    %v2502 = vpop.f32.mrf.mxu0
    %v2503 = vpop.f32.mrf.mxu0
    %v2504 = vpop.f32.mrf.mxu0
    %2505 = vdwg.mxu0
    %v2506 = vadd.f32 %v2222, %v2238
    %v2507 = vmax.f32 %v2506, 0.0
    %v2508 = vpack.c.bf16 %v2507, %v2507
    %s2509 = scalar_lea.vmem [#allocation2], 96
    %v2510 = vld [vmem:[%s2509] sm:$0xff]
    %v2511 = vld [vmem:[%s2509 + $0x8] sm:$0xf]
    %v2512 = vld [vmem:[%s2509 + $0xc] sm:$0xff]
    %v2513 = vld [vmem:[%s2509 + $0x14] sm:$0xf]
    %v2514 = vld [vmem:[%s2509 + $0x18] sm:$0xff]
    %v2515 = vld [vmem:[%s2509 + $0x20] sm:$0xf]
    %v2516 = vld [vmem:[%s2509 + $0x24] sm:$0x33]
    %v2517 = vld [vmem:[%s2509 + $0x2c] sm:$0x3]
    %v2526 = vunpack.c.l.b16 %v2510
    %v2527 = vunpack.c.h.b16 %v2510
    %v2528 = vunpack.c.l.b16 %v2511
    %v2529 = vunpack.c.l.b16 %v2512
    %v2530 = vunpack.c.h.b16 %v2512
    %v2531 = vunpack.c.l.b16 %v2513
    %v2532 = vunpack.c.l.b16 %v2514
    %v2533 = vunpack.c.h.b16 %v2514
    %v2534 = vunpack.c.l.b16 %v2515
    %v2535 = vunpack.c.l.b16 %v2516
    %v2536 = vunpack.c.h.b16 %v2516
    %v2537 = vunpack.c.l.b16 %v2517
    %v2538 = vpack.c.b16 %v2529, %v2526
    %v2539 = vpack.c.b16 %v2530, %v2527
    %v2540 = vpack.c.b16 %v2531, %v2528
    %v2541 = vpack.c.b16 %v2535, %v2532
    %v2542 = vpack.c.b16 %v2536, %v2533
    %v2543 = vpack.c.b16 %v2537, %v2534
    %v2548 = vsel %vm215, %v2508, 0
    %v2551 = vsel %vm282, %v2541, 0
    %v2554 = vsel %vm282, %v2542, 0
    %v2557 = vsel %vm282, %v2543, 0
    %2559 = vmatprep.subr.bf16.mxu0 0
    %2560 = vmatpush1.bf16.msra.mxu0 0
    %2561 = vmatprep.subr.bf16.mxu0 0
    %2562 = vmatpush1.bf16.msra.mxu0 0
    %2563 = vmatprep.subr.bf16.mxu0 0
    %2564 = vmatpush1.bf16.msra.mxu0 0
    %2565 = vmatprep.subr.bf16.mxu0 0
    %2566 = vmatpush1.bf16.msra.mxu0 0
    %2567 = vmatprep.subr.bf16.mxu0 0
    %2568 = vmatpush1.bf16.msra.mxu0 0
    %2569 = vmatprep.subr.bf16.mxu0 0
    %2570 = vmatpush1.bf16.msra.mxu0 0
    %2571 = vmatprep.subr.bf16.mxu0 %v2554
    %2572 = vmatpush1.bf16.msra.mxu0 %v2551
    %2573 = vmatprep.subr.bf16.mxu0 %v2539
    %2574 = vmatpush1.bf16.msra.mxu0 %v2538
    %2575 = vmatprep.subr.bf16.mxu0 0
    %2576 = vmatpush2.bf16.msra.mxu0 0
    %2577 = vmatprep.subr.bf16.mxu0 0
    %2578 = vmatpush2.bf16.msra.mxu0 0
    %2579 = vmatprep.subr.bf16.mxu0 0
    %2580 = vmatpush2.bf16.msra.mxu0 0
    %2581 = vmatprep.subr.bf16.mxu0 0
    %2582 = vmatpush2.bf16.msra.mxu0 0
    %2583 = vmatprep.subr.bf16.mxu0 0
    %2584 = vmatpush2.bf16.msra.mxu0 0
    %2585 = vmatprep.subr.bf16.mxu0 0
    %2586 = vmatpush2.bf16.msra.mxu0 0
    %2587 = vmatprep.subr.bf16.mxu0 0
    %2588 = vmatpush2.bf16.msra.mxu0 0
    %2589 = vmatprep.subr.bf16.mxu0 0
    %2590 = vmatpush2.bf16.msra.mxu0 0
    %2591 = vmatprep.mubr.bf16.mxu0 0
    %2592 = vmatmul.mubr.bf16.gmra.mxu0 %v2548
    %v2593 = vpop.f32.mrf.mxu0
    %v2594 = vadd.f32 0.0, %v2593
    %v2595 = vpop.f32.mrf.mxu0
    %v2596 = vadd.f32 0.0, %v2595
    %v2597 = vpop.f32.mrf.mxu0
    %v2598 = vpop.f32.mrf.mxu0
    %2599 = vdwg.mxu0
    %2600 = vmatprep.subr.bf16.mxu0 0
    %2601 = vmatpush1.bf16.msra.mxu0 0
    %2602 = vmatprep.subr.bf16.mxu0 0
    %2603 = vmatpush1.bf16.msra.mxu0 0
    %2604 = vmatprep.subr.bf16.mxu0 0
    %2605 = vmatpush1.bf16.msra.mxu0 0
    %2606 = vmatprep.subr.bf16.mxu0 0
    %2607 = vmatpush1.bf16.msra.mxu0 0
    %2608 = vmatprep.subr.bf16.mxu0 0
    %2609 = vmatpush1.bf16.msra.mxu0 0
    %2610 = vmatprep.subr.bf16.mxu0 0
    %2611 = vmatpush1.bf16.msra.mxu0 0
    %2612 = vmatprep.subr.bf16.mxu0 0
    %2613 = vmatpush1.bf16.msra.mxu0 %v2557
    %2614 = vmatprep.subr.bf16.mxu0 0
    %2615 = vmatpush1.bf16.msra.mxu0 %v2540
    %2616 = vmatprep.subr.bf16.mxu0 0
    %2617 = vmatpush2.bf16.msra.mxu0 0
    %2618 = vmatprep.subr.bf16.mxu0 0
    %2619 = vmatpush2.bf16.msra.mxu0 0
    %2620 = vmatprep.subr.bf16.mxu0 0
    %2621 = vmatpush2.bf16.msra.mxu0 0
    %2622 = vmatprep.subr.bf16.mxu0 0
    %2623 = vmatpush2.bf16.msra.mxu0 0
    %2624 = vmatprep.subr.bf16.mxu0 0
    %2625 = vmatpush2.bf16.msra.mxu0 0
    %2626 = vmatprep.subr.bf16.mxu0 0
    %2627 = vmatpush2.bf16.msra.mxu0 0
    %2628 = vmatprep.subr.bf16.mxu0 0
    %2629 = vmatpush2.bf16.msra.mxu0 0
    %2630 = vmatprep.subr.bf16.mxu0 0
    %2631 = vmatpush2.bf16.msra.mxu0 0
    %2632 = vmatprep.mubr.bf16.mxu0 0
    %2633 = vmatmul.mubr.bf16.gmra.mxu0 %v2548
    %v2634 = vpop.f32.mrf.mxu0
    %v2635 = vadd.f32 0.0, %v2634
    %v2636 = vpop.f32.mrf.mxu0
    %v2637 = vpop.f32.mrf.mxu0
    %v2638 = vpop.f32.mrf.mxu0
    %2639 = vdwg.mxu0
    %v2640 = vadd.f32 %v2460, %v2594
    %v2641 = vadd.f32 %v2462, %v2596
    %v2642 = vadd.f32 %v2501, %v2635
    %v2643 = vadd.f32 %v2223, %v2238
    %v2644 = vmax.f32 %v2643, 0.0
    %v2645 = vpack.c.bf16 %v2644, %v2644
    %s2646 = scalar_lea.vmem [#allocation2], 144
    %v2647 = vld [vmem:[%s2646] sm:$0xff]
    %v2648 = vld [vmem:[%s2646 + $0x8] sm:$0xf]
    %v2649 = vld [vmem:[%s2646 + $0xc] sm:$0xff]
    %v2650 = vld [vmem:[%s2646 + $0x14] sm:$0xf]
    %v2651 = vld [vmem:[%s2646 + $0x18] sm:$0xff]
    %v2652 = vld [vmem:[%s2646 + $0x20] sm:$0xf]
    %v2653 = vld [vmem:[%s2646 + $0x24] sm:$0x33]
    %v2654 = vld [vmem:[%s2646 + $0x2c] sm:$0x3]
    %v2663 = vunpack.c.l.b16 %v2647
    %v2664 = vunpack.c.h.b16 %v2647
    %v2665 = vunpack.c.l.b16 %v2648
    %v2666 = vunpack.c.l.b16 %v2649
    %v2667 = vunpack.c.h.b16 %v2649
    %v2668 = vunpack.c.l.b16 %v2650
    %v2669 = vunpack.c.l.b16 %v2651
    %v2670 = vunpack.c.h.b16 %v2651
    %v2671 = vunpack.c.l.b16 %v2652
    %v2672 = vunpack.c.l.b16 %v2653
    %v2673 = vunpack.c.h.b16 %v2653
    %v2674 = vunpack.c.l.b16 %v2654
    %v2675 = vpack.c.b16 %v2666, %v2663
    %v2676 = vpack.c.b16 %v2667, %v2664
    %v2677 = vpack.c.b16 %v2668, %v2665
    %v2678 = vpack.c.b16 %v2672, %v2669
    %v2679 = vpack.c.b16 %v2673, %v2670
    %v2680 = vpack.c.b16 %v2674, %v2671
    %v2685 = vsel %vm215, %v2645, 0
    %v2688 = vsel %vm282, %v2678, 0
    %v2691 = vsel %vm282, %v2679, 0
    %v2694 = vsel %vm282, %v2680, 0
    %2696 = vmatprep.subr.bf16.mxu0 0
    %2697 = vmatpush1.bf16.msra.mxu0 0
    %2698 = vmatprep.subr.bf16.mxu0 0
    %2699 = vmatpush1.bf16.msra.mxu0 0
    %2700 = vmatprep.subr.bf16.mxu0 0
    %2701 = vmatpush1.bf16.msra.mxu0 0
    %2702 = vmatprep.subr.bf16.mxu0 0
    %2703 = vmatpush1.bf16.msra.mxu0 0
    %2704 = vmatprep.subr.bf16.mxu0 0
    %2705 = vmatpush1.bf16.msra.mxu0 0
    %2706 = vmatprep.subr.bf16.mxu0 0
    %2707 = vmatpush1.bf16.msra.mxu0 0
    %2708 = vmatprep.subr.bf16.mxu0 %v2691
    %2709 = vmatpush1.bf16.msra.mxu0 %v2688
    %2710 = vmatprep.subr.bf16.mxu0 %v2676
    %2711 = vmatpush1.bf16.msra.mxu0 %v2675
    %2712 = vmatprep.subr.bf16.mxu0 0
    %2713 = vmatpush2.bf16.msra.mxu0 0
    %2714 = vmatprep.subr.bf16.mxu0 0
    %2715 = vmatpush2.bf16.msra.mxu0 0
    %2716 = vmatprep.subr.bf16.mxu0 0
    %2717 = vmatpush2.bf16.msra.mxu0 0
    %2718 = vmatprep.subr.bf16.mxu0 0
    %2719 = vmatpush2.bf16.msra.mxu0 0
    %2720 = vmatprep.subr.bf16.mxu0 0
    %2721 = vmatpush2.bf16.msra.mxu0 0
    %2722 = vmatprep.subr.bf16.mxu0 0
    %2723 = vmatpush2.bf16.msra.mxu0 0
    %2724 = vmatprep.subr.bf16.mxu0 0
    %2725 = vmatpush2.bf16.msra.mxu0 0
    %2726 = vmatprep.subr.bf16.mxu0 0
    %2727 = vmatpush2.bf16.msra.mxu0 0
    %2728 = vmatprep.mubr.bf16.mxu0 0
    %2729 = vmatmul.mubr.bf16.gmra.mxu0 %v2685
    %v2730 = vpop.f32.mrf.mxu0
    %v2731 = vadd.f32 0.0, %v2730
    %v2732 = vpop.f32.mrf.mxu0
    %v2733 = vadd.f32 0.0, %v2732
    %v2734 = vpop.f32.mrf.mxu0
    %v2735 = vpop.f32.mrf.mxu0
    %2736 = vdwg.mxu0
    %2737 = vmatprep.subr.bf16.mxu0 0
    %2738 = vmatpush1.bf16.msra.mxu0 0
    %2739 = vmatprep.subr.bf16.mxu0 0
    %2740 = vmatpush1.bf16.msra.mxu0 0
    %2741 = vmatprep.subr.bf16.mxu0 0
    %2742 = vmatpush1.bf16.msra.mxu0 0
    %2743 = vmatprep.subr.bf16.mxu0 0
    %2744 = vmatpush1.bf16.msra.mxu0 0
    %2745 = vmatprep.subr.bf16.mxu0 0
    %2746 = vmatpush1.bf16.msra.mxu0 0
    %2747 = vmatprep.subr.bf16.mxu0 0
    %2748 = vmatpush1.bf16.msra.mxu0 0
    %2749 = vmatprep.subr.bf16.mxu0 0
    %2750 = vmatpush1.bf16.msra.mxu0 %v2694
    %2751 = vmatprep.subr.bf16.mxu0 0
    %2752 = vmatpush1.bf16.msra.mxu0 %v2677
    %2753 = vmatprep.subr.bf16.mxu0 0
    %2754 = vmatpush2.bf16.msra.mxu0 0
    %2755 = vmatprep.subr.bf16.mxu0 0
    %2756 = vmatpush2.bf16.msra.mxu0 0
    %2757 = vmatprep.subr.bf16.mxu0 0
    %2758 = vmatpush2.bf16.msra.mxu0 0
    %2759 = vmatprep.subr.bf16.mxu0 0
    %2760 = vmatpush2.bf16.msra.mxu0 0
    %2761 = vmatprep.subr.bf16.mxu0 0
    %2762 = vmatpush2.bf16.msra.mxu0 0
    %2763 = vmatprep.subr.bf16.mxu0 0
    %2764 = vmatpush2.bf16.msra.mxu0 0
    %2765 = vmatprep.subr.bf16.mxu0 0
    %2766 = vmatpush2.bf16.msra.mxu0 0
    %2767 = vmatprep.subr.bf16.mxu0 0
    %2768 = vmatpush2.bf16.msra.mxu0 0
    %2769 = vmatprep.mubr.bf16.mxu0 0
    %2770 = vmatmul.mubr.bf16.gmra.mxu0 %v2685
    %v2771 = vpop.f32.mrf.mxu0
    %v2772 = vadd.f32 0.0, %v2771
    %v2773 = vpop.f32.mrf.mxu0
    %v2774 = vpop.f32.mrf.mxu0
    %v2775 = vpop.f32.mrf.mxu0
    %2776 = vdwg.mxu0
    %v2777 = vadd.f32 %v2640, %v2731
    %v2778 = vadd.f32 %v2641, %v2733
    %v2779 = vadd.f32 %v2642, %v2772
    %v2780 = vadd.f32 %v2224, %v2238
    %v2781 = vmax.f32 %v2780, 0.0
    %v2782 = vpack.c.bf16 %v2781, %v2781
    %s2783 = scalar_lea.vmem [#allocation2], 192
    %v2784 = vld [vmem:[%s2783] sm:$0xff]
    %v2785 = vld [vmem:[%s2783 + $0x8] sm:$0xf]
    %v2786 = vld [vmem:[%s2783 + $0xc] sm:$0xff]
    %v2787 = vld [vmem:[%s2783 + $0x14] sm:$0xf]
    %v2788 = vld [vmem:[%s2783 + $0x18] sm:$0xff]
    %v2789 = vld [vmem:[%s2783 + $0x20] sm:$0xf]
    %v2790 = vld [vmem:[%s2783 + $0x24] sm:$0x33]
    %v2791 = vld [vmem:[%s2783 + $0x2c] sm:$0x3]
    %v2800 = vunpack.c.l.b16 %v2784
    %v2801 = vunpack.c.h.b16 %v2784
    %v2802 = vunpack.c.l.b16 %v2785
    %v2803 = vunpack.c.l.b16 %v2786
    %v2804 = vunpack.c.h.b16 %v2786
    %v2805 = vunpack.c.l.b16 %v2787
    %v2806 = vunpack.c.l.b16 %v2788
    %v2807 = vunpack.c.h.b16 %v2788
    %v2808 = vunpack.c.l.b16 %v2789
    %v2809 = vunpack.c.l.b16 %v2790
    %v2810 = vunpack.c.h.b16 %v2790
    %v2811 = vunpack.c.l.b16 %v2791
    %v2812 = vpack.c.b16 %v2803, %v2800
    %v2813 = vpack.c.b16 %v2804, %v2801
    %v2814 = vpack.c.b16 %v2805, %v2802
    %v2815 = vpack.c.b16 %v2809, %v2806
    %v2816 = vpack.c.b16 %v2810, %v2807
    %v2817 = vpack.c.b16 %v2811, %v2808
    %v2822 = vsel %vm215, %v2782, 0
    %v2825 = vsel %vm282, %v2815, 0
    %v2828 = vsel %vm282, %v2816, 0
    %v2831 = vsel %vm282, %v2817, 0
    %2833 = vmatprep.subr.bf16.mxu0 0
    %2834 = vmatpush1.bf16.msra.mxu0 0
    %2835 = vmatprep.subr.bf16.mxu0 0
    %2836 = vmatpush1.bf16.msra.mxu0 0
    %2837 = vmatprep.subr.bf16.mxu0 0
    %2838 = vmatpush1.bf16.msra.mxu0 0
    %2839 = vmatprep.subr.bf16.mxu0 0
    %2840 = vmatpush1.bf16.msra.mxu0 0
    %2841 = vmatprep.subr.bf16.mxu0 0
    %2842 = vmatpush1.bf16.msra.mxu0 0
    %2843 = vmatprep.subr.bf16.mxu0 0
    %2844 = vmatpush1.bf16.msra.mxu0 0
    %2845 = vmatprep.subr.bf16.mxu0 %v2828
    %2846 = vmatpush1.bf16.msra.mxu0 %v2825
    %2847 = vmatprep.subr.bf16.mxu0 %v2813
    %2848 = vmatpush1.bf16.msra.mxu0 %v2812
    %2849 = vmatprep.subr.bf16.mxu0 0
    %2850 = vmatpush2.bf16.msra.mxu0 0
    %2851 = vmatprep.subr.bf16.mxu0 0
    %2852 = vmatpush2.bf16.msra.mxu0 0
    %2853 = vmatprep.subr.bf16.mxu0 0
    %2854 = vmatpush2.bf16.msra.mxu0 0
    %2855 = vmatprep.subr.bf16.mxu0 0
    %2856 = vmatpush2.bf16.msra.mxu0 0
    %2857 = vmatprep.subr.bf16.mxu0 0
    %2858 = vmatpush2.bf16.msra.mxu0 0
    %2859 = vmatprep.subr.bf16.mxu0 0
    %2860 = vmatpush2.bf16.msra.mxu0 0
    %2861 = vmatprep.subr.bf16.mxu0 0
    %2862 = vmatpush2.bf16.msra.mxu0 0
    %2863 = vmatprep.subr.bf16.mxu0 0
    %2864 = vmatpush2.bf16.msra.mxu0 0
    %2865 = vmatprep.mubr.bf16.mxu0 0
    %2866 = vmatmul.mubr.bf16.gmra.mxu0 %v2822
    %v2867 = vpop.f32.mrf.mxu0
    %v2868 = vadd.f32 0.0, %v2867
    %v2869 = vpop.f32.mrf.mxu0
    %v2870 = vadd.f32 0.0, %v2869
    %v2871 = vpop.f32.mrf.mxu0
    %v2872 = vpop.f32.mrf.mxu0
    %2873 = vdwg.mxu0
    %2874 = vmatprep.subr.bf16.mxu0 0
    %2875 = vmatpush1.bf16.msra.mxu0 0
    %2876 = vmatprep.subr.bf16.mxu0 0
    %2877 = vmatpush1.bf16.msra.mxu0 0
    %2878 = vmatprep.subr.bf16.mxu0 0
    %2879 = vmatpush1.bf16.msra.mxu0 0
    %2880 = vmatprep.subr.bf16.mxu0 0
    %2881 = vmatpush1.bf16.msra.mxu0 0
    %2882 = vmatprep.subr.bf16.mxu0 0
    %2883 = vmatpush1.bf16.msra.mxu0 0
    %2884 = vmatprep.subr.bf16.mxu0 0
    %2885 = vmatpush1.bf16.msra.mxu0 0
    %2886 = vmatprep.subr.bf16.mxu0 0
    %2887 = vmatpush1.bf16.msra.mxu0 %v2831
    %2888 = vmatprep.subr.bf16.mxu0 0
    %2889 = vmatpush1.bf16.msra.mxu0 %v2814
    %2890 = vmatprep.subr.bf16.mxu0 0
    %2891 = vmatpush2.bf16.msra.mxu0 0
    %2892 = vmatprep.subr.bf16.mxu0 0
    %2893 = vmatpush2.bf16.msra.mxu0 0
    %2894 = vmatprep.subr.bf16.mxu0 0
    %2895 = vmatpush2.bf16.msra.mxu0 0
    %2896 = vmatprep.subr.bf16.mxu0 0
    %2897 = vmatpush2.bf16.msra.mxu0 0
    %2898 = vmatprep.subr.bf16.mxu0 0
    %2899 = vmatpush2.bf16.msra.mxu0 0
    %2900 = vmatprep.subr.bf16.mxu0 0
    %2901 = vmatpush2.bf16.msra.mxu0 0
    %2902 = vmatprep.subr.bf16.mxu0 0
    %2903 = vmatpush2.bf16.msra.mxu0 0
    %2904 = vmatprep.subr.bf16.mxu0 0
    %2905 = vmatpush2.bf16.msra.mxu0 0
    %2906 = vmatprep.mubr.bf16.mxu0 0
    %2907 = vmatmul.mubr.bf16.gmra.mxu0 %v2822
    %v2908 = vpop.f32.mrf.mxu0
    %v2909 = vadd.f32 0.0, %v2908
    %v2910 = vpop.f32.mrf.mxu0
    %v2911 = vpop.f32.mrf.mxu0
    %v2912 = vpop.f32.mrf.mxu0
    %2913 = vdwg.mxu0
    %v2914 = vadd.f32 %v2777, %v2868
    %v2915 = vadd.f32 %v2778, %v2870
    %v2916 = vadd.f32 %v2779, %v2909
    %v2917 = vadd.f32 %v2225, %v2238
    %v2918 = vmax.f32 %v2917, 0.0
    %v2919 = vpack.c.bf16 %v2918, %v2918
    %s2920 = scalar_lea.vmem [#allocation2], 240
    %v2921 = vld [vmem:[%s2920] sm:$0xff]
    %v2922 = vld [vmem:[%s2920 + $0x8] sm:$0xf]
    %v2923 = vld [vmem:[%s2920 + $0xc] sm:$0xff]
    %v2924 = vld [vmem:[%s2920 + $0x14] sm:$0xf]
    %v2925 = vld [vmem:[%s2920 + $0x18] sm:$0xff]
    %v2926 = vld [vmem:[%s2920 + $0x20] sm:$0xf]
    %v2927 = vld [vmem:[%s2920 + $0x24] sm:$0x33]
    %v2928 = vld [vmem:[%s2920 + $0x2c] sm:$0x3]
    %v2937 = vunpack.c.l.b16 %v2921
    %v2938 = vunpack.c.h.b16 %v2921
    %v2939 = vunpack.c.l.b16 %v2922
    %v2940 = vunpack.c.l.b16 %v2923
    %v2941 = vunpack.c.h.b16 %v2923
    %v2942 = vunpack.c.l.b16 %v2924
    %v2943 = vunpack.c.l.b16 %v2925
    %v2944 = vunpack.c.h.b16 %v2925
    %v2945 = vunpack.c.l.b16 %v2926
    %v2946 = vunpack.c.l.b16 %v2927
    %v2947 = vunpack.c.h.b16 %v2927
    %v2948 = vunpack.c.l.b16 %v2928
    %v2949 = vpack.c.b16 %v2940, %v2937
    %v2950 = vpack.c.b16 %v2941, %v2938
    %v2951 = vpack.c.b16 %v2942, %v2939
    %v2952 = vpack.c.b16 %v2946, %v2943
    %v2953 = vpack.c.b16 %v2947, %v2944
    %v2954 = vpack.c.b16 %v2948, %v2945
    %v2959 = vsel %vm215, %v2919, 0
    %v2962 = vsel %vm282, %v2952, 0
    %v2965 = vsel %vm282, %v2953, 0
    %v2968 = vsel %vm282, %v2954, 0
    %2970 = vmatprep.subr.bf16.mxu0 0
    %2971 = vmatpush1.bf16.msra.mxu0 0
    %2972 = vmatprep.subr.bf16.mxu0 0
    %2973 = vmatpush1.bf16.msra.mxu0 0
    %2974 = vmatprep.subr.bf16.mxu0 0
    %2975 = vmatpush1.bf16.msra.mxu0 0
    %2976 = vmatprep.subr.bf16.mxu0 0
    %2977 = vmatpush1.bf16.msra.mxu0 0
    %2978 = vmatprep.subr.bf16.mxu0 0
    %2979 = vmatpush1.bf16.msra.mxu0 0
    %2980 = vmatprep.subr.bf16.mxu0 0
    %2981 = vmatpush1.bf16.msra.mxu0 0
    %2982 = vmatprep.subr.bf16.mxu0 %v2965
    %2983 = vmatpush1.bf16.msra.mxu0 %v2962
    %2984 = vmatprep.subr.bf16.mxu0 %v2950
    %2985 = vmatpush1.bf16.msra.mxu0 %v2949
    %2986 = vmatprep.subr.bf16.mxu0 0
    %2987 = vmatpush2.bf16.msra.mxu0 0
    %2988 = vmatprep.subr.bf16.mxu0 0
    %2989 = vmatpush2.bf16.msra.mxu0 0
    %2990 = vmatprep.subr.bf16.mxu0 0
    %2991 = vmatpush2.bf16.msra.mxu0 0
    %2992 = vmatprep.subr.bf16.mxu0 0
    %2993 = vmatpush2.bf16.msra.mxu0 0
    %2994 = vmatprep.subr.bf16.mxu0 0
    %2995 = vmatpush2.bf16.msra.mxu0 0
    %2996 = vmatprep.subr.bf16.mxu0 0
    %2997 = vmatpush2.bf16.msra.mxu0 0
    %2998 = vmatprep.subr.bf16.mxu0 0
    %2999 = vmatpush2.bf16.msra.mxu0 0
    %3000 = vmatprep.subr.bf16.mxu0 0
    %3001 = vmatpush2.bf16.msra.mxu0 0
    %3002 = vmatprep.mubr.bf16.mxu0 0
    %3003 = vmatmul.mubr.bf16.gmra.mxu0 %v2959
    %v3004 = vpop.f32.mrf.mxu0
    %v3005 = vadd.f32 0.0, %v3004
    %v3006 = vpop.f32.mrf.mxu0
    %v3007 = vadd.f32 0.0, %v3006
    %v3008 = vpop.f32.mrf.mxu0
    %v3009 = vpop.f32.mrf.mxu0
    %3010 = vdwg.mxu0
    %3011 = vmatprep.subr.bf16.mxu0 0
    %3012 = vmatpush1.bf16.msra.mxu0 0
    %3013 = vmatprep.subr.bf16.mxu0 0
    %3014 = vmatpush1.bf16.msra.mxu0 0
    %3015 = vmatprep.subr.bf16.mxu0 0
    %3016 = vmatpush1.bf16.msra.mxu0 0
    %3017 = vmatprep.subr.bf16.mxu0 0
    %3018 = vmatpush1.bf16.msra.mxu0 0
    %3019 = vmatprep.subr.bf16.mxu0 0
    %3020 = vmatpush1.bf16.msra.mxu0 0
    %3021 = vmatprep.subr.bf16.mxu0 0
    %3022 = vmatpush1.bf16.msra.mxu0 0
    %3023 = vmatprep.subr.bf16.mxu0 0
    %3024 = vmatpush1.bf16.msra.mxu0 %v2968
    %3025 = vmatprep.subr.bf16.mxu0 0
    %3026 = vmatpush1.bf16.msra.mxu0 %v2951
    %3027 = vmatprep.subr.bf16.mxu0 0
    %3028 = vmatpush2.bf16.msra.mxu0 0
    %3029 = vmatprep.subr.bf16.mxu0 0
    %3030 = vmatpush2.bf16.msra.mxu0 0
    %3031 = vmatprep.subr.bf16.mxu0 0
    %3032 = vmatpush2.bf16.msra.mxu0 0
    %3033 = vmatprep.subr.bf16.mxu0 0
    %3034 = vmatpush2.bf16.msra.mxu0 0
    %3035 = vmatprep.subr.bf16.mxu0 0
    %3036 = vmatpush2.bf16.msra.mxu0 0
    %3037 = vmatprep.subr.bf16.mxu0 0
    %3038 = vmatpush2.bf16.msra.mxu0 0
    %3039 = vmatprep.subr.bf16.mxu0 0
    %3040 = vmatpush2.bf16.msra.mxu0 0
    %3041 = vmatprep.subr.bf16.mxu0 0
    %3042 = vmatpush2.bf16.msra.mxu0 0
    %3043 = vmatprep.mubr.bf16.mxu0 0
    %3044 = vmatmul.mubr.bf16.gmra.mxu0 %v2959
    %v3045 = vpop.f32.mrf.mxu0
    %v3046 = vadd.f32 0.0, %v3045
    %v3047 = vpop.f32.mrf.mxu0
    %v3048 = vpop.f32.mrf.mxu0
    %v3049 = vpop.f32.mrf.mxu0
    %3050 = vdwg.mxu0
    %v3051 = vadd.f32 %v2914, %v3005
    %v3052 = vadd.f32 %v2915, %v3007
    %v3053 = vadd.f32 %v2916, %v3046
    %v3054 = vadd.f32 %v2226, %v2238
    %v3055 = vmax.f32 %v3054, 0.0
    %v3056 = vpack.c.bf16 %v3055, %v3055
    %s3057 = scalar_lea.vmem [#allocation2], 288
    %v3058 = vld [vmem:[%s3057] sm:$0xff]
    %v3059 = vld [vmem:[%s3057 + $0x8] sm:$0xf]
    %v3060 = vld [vmem:[%s3057 + $0xc] sm:$0xff]
    %v3061 = vld [vmem:[%s3057 + $0x14] sm:$0xf]
    %v3062 = vld [vmem:[%s3057 + $0x18] sm:$0xff]
    %v3063 = vld [vmem:[%s3057 + $0x20] sm:$0xf]
    %v3064 = vld [vmem:[%s3057 + $0x24] sm:$0x33]
    %v3065 = vld [vmem:[%s3057 + $0x2c] sm:$0x3]
    %v3074 = vunpack.c.l.b16 %v3058
    %v3075 = vunpack.c.h.b16 %v3058
    %v3076 = vunpack.c.l.b16 %v3059
    %v3077 = vunpack.c.l.b16 %v3060
    %v3078 = vunpack.c.h.b16 %v3060
    %v3079 = vunpack.c.l.b16 %v3061
    %v3080 = vunpack.c.l.b16 %v3062
    %v3081 = vunpack.c.h.b16 %v3062
    %v3082 = vunpack.c.l.b16 %v3063
    %v3083 = vunpack.c.l.b16 %v3064
    %v3084 = vunpack.c.h.b16 %v3064
    %v3085 = vunpack.c.l.b16 %v3065
    %v3086 = vpack.c.b16 %v3077, %v3074
    %v3087 = vpack.c.b16 %v3078, %v3075
    %v3088 = vpack.c.b16 %v3079, %v3076
    %v3089 = vpack.c.b16 %v3083, %v3080
    %v3090 = vpack.c.b16 %v3084, %v3081
    %v3091 = vpack.c.b16 %v3085, %v3082
    %v3096 = vsel %vm215, %v3056, 0
    %v3099 = vsel %vm282, %v3089, 0
    %v3102 = vsel %vm282, %v3090, 0
    %v3105 = vsel %vm282, %v3091, 0
    %3107 = vmatprep.subr.bf16.mxu0 0
    %3108 = vmatpush1.bf16.msra.mxu0 0
    %3109 = vmatprep.subr.bf16.mxu0 0
    %3110 = vmatpush1.bf16.msra.mxu0 0
    %3111 = vmatprep.subr.bf16.mxu0 0
    %3112 = vmatpush1.bf16.msra.mxu0 0
    %3113 = vmatprep.subr.bf16.mxu0 0
    %3114 = vmatpush1.bf16.msra.mxu0 0
    %3115 = vmatprep.subr.bf16.mxu0 0
    %3116 = vmatpush1.bf16.msra.mxu0 0
    %3117 = vmatprep.subr.bf16.mxu0 0
    %3118 = vmatpush1.bf16.msra.mxu0 0
    %3119 = vmatprep.subr.bf16.mxu0 %v3102
    %3120 = vmatpush1.bf16.msra.mxu0 %v3099
    %3121 = vmatprep.subr.bf16.mxu0 %v3087
    %3122 = vmatpush1.bf16.msra.mxu0 %v3086
    %3123 = vmatprep.subr.bf16.mxu0 0
    %3124 = vmatpush2.bf16.msra.mxu0 0
    %3125 = vmatprep.subr.bf16.mxu0 0
    %3126 = vmatpush2.bf16.msra.mxu0 0
    %3127 = vmatprep.subr.bf16.mxu0 0
    %3128 = vmatpush2.bf16.msra.mxu0 0
    %3129 = vmatprep.subr.bf16.mxu0 0
    %3130 = vmatpush2.bf16.msra.mxu0 0
    %3131 = vmatprep.subr.bf16.mxu0 0
    %3132 = vmatpush2.bf16.msra.mxu0 0
    %3133 = vmatprep.subr.bf16.mxu0 0
    %3134 = vmatpush2.bf16.msra.mxu0 0
    %3135 = vmatprep.subr.bf16.mxu0 0
    %3136 = vmatpush2.bf16.msra.mxu0 0
    %3137 = vmatprep.subr.bf16.mxu0 0
    %3138 = vmatpush2.bf16.msra.mxu0 0
    %3139 = vmatprep.mubr.bf16.mxu0 0
    %3140 = vmatmul.mubr.bf16.gmra.mxu0 %v3096
    %v3141 = vpop.f32.mrf.mxu0
    %v3142 = vadd.f32 0.0, %v3141
    %v3143 = vpop.f32.mrf.mxu0
    %v3144 = vadd.f32 0.0, %v3143
    %v3145 = vpop.f32.mrf.mxu0
    %v3146 = vpop.f32.mrf.mxu0
    %3147 = vdwg.mxu0
    %3148 = vmatprep.subr.bf16.mxu0 0
    %3149 = vmatpush1.bf16.msra.mxu0 0
    %3150 = vmatprep.subr.bf16.mxu0 0
    %3151 = vmatpush1.bf16.msra.mxu0 0
    %3152 = vmatprep.subr.bf16.mxu0 0
    %3153 = vmatpush1.bf16.msra.mxu0 0
    %3154 = vmatprep.subr.bf16.mxu0 0
    %3155 = vmatpush1.bf16.msra.mxu0 0
    %3156 = vmatprep.subr.bf16.mxu0 0
    %3157 = vmatpush1.bf16.msra.mxu0 0
    %3158 = vmatprep.subr.bf16.mxu0 0
    %3159 = vmatpush1.bf16.msra.mxu0 0
    %3160 = vmatprep.subr.bf16.mxu0 0
    %3161 = vmatpush1.bf16.msra.mxu0 %v3105
    %3162 = vmatprep.subr.bf16.mxu0 0
    %3163 = vmatpush1.bf16.msra.mxu0 %v3088
    %3164 = vmatprep.subr.bf16.mxu0 0
    %3165 = vmatpush2.bf16.msra.mxu0 0
    %3166 = vmatprep.subr.bf16.mxu0 0
    %3167 = vmatpush2.bf16.msra.mxu0 0
    %3168 = vmatprep.subr.bf16.mxu0 0
    %3169 = vmatpush2.bf16.msra.mxu0 0
    %3170 = vmatprep.subr.bf16.mxu0 0
    %3171 = vmatpush2.bf16.msra.mxu0 0
    %3172 = vmatprep.subr.bf16.mxu0 0
    %3173 = vmatpush2.bf16.msra.mxu0 0
    %3174 = vmatprep.subr.bf16.mxu0 0
    %3175 = vmatpush2.bf16.msra.mxu0 0
    %3176 = vmatprep.subr.bf16.mxu0 0
    %3177 = vmatpush2.bf16.msra.mxu0 0
    %3178 = vmatprep.subr.bf16.mxu0 0
    %3179 = vmatpush2.bf16.msra.mxu0 0
    %3180 = vmatprep.mubr.bf16.mxu0 0
    %3181 = vmatmul.mubr.bf16.gmra.mxu0 %v3096
    %v3182 = vpop.f32.mrf.mxu0
    %v3183 = vadd.f32 0.0, %v3182
    %v3184 = vpop.f32.mrf.mxu0
    %v3185 = vpop.f32.mrf.mxu0
    %v3186 = vpop.f32.mrf.mxu0
    %3187 = vdwg.mxu0
    %v3188 = vadd.f32 %v3051, %v3142
    %v3189 = vadd.f32 %v3052, %v3144
    %v3190 = vadd.f32 %v3053, %v3183
    %v3191 = vadd.f32 %v2227, %v2238
    %v3192 = vmax.f32 %v3191, 0.0
    %v3193 = vpack.c.bf16 %v3192, %v3192
    %s3194 = scalar_lea.vmem [#allocation2], 336
    %v3195 = vld [vmem:[%s3194] sm:$0xff]
    %v3196 = vld [vmem:[%s3194 + $0x8] sm:$0xf]
    %v3197 = vld [vmem:[%s3194 + $0xc] sm:$0xff]
    %v3198 = vld [vmem:[%s3194 + $0x14] sm:$0xf]
    %v3199 = vld [vmem:[%s3194 + $0x18] sm:$0xff]
    %v3200 = vld [vmem:[%s3194 + $0x20] sm:$0xf]
    %v3201 = vld [vmem:[%s3194 + $0x24] sm:$0x33]
    %v3202 = vld [vmem:[%s3194 + $0x2c] sm:$0x3]
    %v3211 = vunpack.c.l.b16 %v3195
    %v3212 = vunpack.c.h.b16 %v3195
    %v3213 = vunpack.c.l.b16 %v3196
    %v3214 = vunpack.c.l.b16 %v3197
    %v3215 = vunpack.c.h.b16 %v3197
    %v3216 = vunpack.c.l.b16 %v3198
    %v3217 = vunpack.c.l.b16 %v3199
    %v3218 = vunpack.c.h.b16 %v3199
    %v3219 = vunpack.c.l.b16 %v3200
    %v3220 = vunpack.c.l.b16 %v3201
    %v3221 = vunpack.c.h.b16 %v3201
    %v3222 = vunpack.c.l.b16 %v3202
    %v3223 = vpack.c.b16 %v3214, %v3211
    %v3224 = vpack.c.b16 %v3215, %v3212
    %v3225 = vpack.c.b16 %v3216, %v3213
    %v3226 = vpack.c.b16 %v3220, %v3217
    %v3227 = vpack.c.b16 %v3221, %v3218
    %v3228 = vpack.c.b16 %v3222, %v3219
    %v3233 = vsel %vm215, %v3193, 0
    %v3236 = vsel %vm282, %v3226, 0
    %v3239 = vsel %vm282, %v3227, 0
    %v3242 = vsel %vm282, %v3228, 0
    %3244 = vmatprep.subr.bf16.mxu0 0
    %3245 = vmatpush1.bf16.msra.mxu0 0
    %3246 = vmatprep.subr.bf16.mxu0 0
    %3247 = vmatpush1.bf16.msra.mxu0 0
    %3248 = vmatprep.subr.bf16.mxu0 0
    %3249 = vmatpush1.bf16.msra.mxu0 0
    %3250 = vmatprep.subr.bf16.mxu0 0
    %3251 = vmatpush1.bf16.msra.mxu0 0
    %3252 = vmatprep.subr.bf16.mxu0 0
    %3253 = vmatpush1.bf16.msra.mxu0 0
    %3254 = vmatprep.subr.bf16.mxu0 0
    %3255 = vmatpush1.bf16.msra.mxu0 0
    %3256 = vmatprep.subr.bf16.mxu0 %v3239
    %3257 = vmatpush1.bf16.msra.mxu0 %v3236
    %3258 = vmatprep.subr.bf16.mxu0 %v3224
    %3259 = vmatpush1.bf16.msra.mxu0 %v3223
    %3260 = vmatprep.subr.bf16.mxu0 0
    %3261 = vmatpush2.bf16.msra.mxu0 0
    %3262 = vmatprep.subr.bf16.mxu0 0
    %3263 = vmatpush2.bf16.msra.mxu0 0
    %3264 = vmatprep.subr.bf16.mxu0 0
    %3265 = vmatpush2.bf16.msra.mxu0 0
    %3266 = vmatprep.subr.bf16.mxu0 0
    %3267 = vmatpush2.bf16.msra.mxu0 0
    %3268 = vmatprep.subr.bf16.mxu0 0
    %3269 = vmatpush2.bf16.msra.mxu0 0
    %3270 = vmatprep.subr.bf16.mxu0 0
    %3271 = vmatpush2.bf16.msra.mxu0 0
    %3272 = vmatprep.subr.bf16.mxu0 0
    %3273 = vmatpush2.bf16.msra.mxu0 0
    %3274 = vmatprep.subr.bf16.mxu0 0
    %3275 = vmatpush2.bf16.msra.mxu0 0
    %3276 = vmatprep.mubr.bf16.mxu0 0
    %3277 = vmatmul.mubr.bf16.gmra.mxu0 %v3233
    %v3278 = vpop.f32.mrf.mxu0
    %v3279 = vadd.f32 0.0, %v3278
    %v3280 = vpop.f32.mrf.mxu0
    %v3281 = vadd.f32 0.0, %v3280
    %v3282 = vpop.f32.mrf.mxu0
    %v3283 = vpop.f32.mrf.mxu0
    %3284 = vdwg.mxu0
    %3285 = vmatprep.subr.bf16.mxu0 0
    %3286 = vmatpush1.bf16.msra.mxu0 0
    %3287 = vmatprep.subr.bf16.mxu0 0
    %3288 = vmatpush1.bf16.msra.mxu0 0
    %3289 = vmatprep.subr.bf16.mxu0 0
    %3290 = vmatpush1.bf16.msra.mxu0 0
    %3291 = vmatprep.subr.bf16.mxu0 0
    %3292 = vmatpush1.bf16.msra.mxu0 0
    %3293 = vmatprep.subr.bf16.mxu0 0
    %3294 = vmatpush1.bf16.msra.mxu0 0
    %3295 = vmatprep.subr.bf16.mxu0 0
    %3296 = vmatpush1.bf16.msra.mxu0 0
    %3297 = vmatprep.subr.bf16.mxu0 0
    %3298 = vmatpush1.bf16.msra.mxu0 %v3242
    %3299 = vmatprep.subr.bf16.mxu0 0
    %3300 = vmatpush1.bf16.msra.mxu0 %v3225
    %3301 = vmatprep.subr.bf16.mxu0 0
    %3302 = vmatpush2.bf16.msra.mxu0 0
    %3303 = vmatprep.subr.bf16.mxu0 0
    %3304 = vmatpush2.bf16.msra.mxu0 0
    %3305 = vmatprep.subr.bf16.mxu0 0
    %3306 = vmatpush2.bf16.msra.mxu0 0
    %3307 = vmatprep.subr.bf16.mxu0 0
    %3308 = vmatpush2.bf16.msra.mxu0 0
    %3309 = vmatprep.subr.bf16.mxu0 0
    %3310 = vmatpush2.bf16.msra.mxu0 0
    %3311 = vmatprep.subr.bf16.mxu0 0
    %3312 = vmatpush2.bf16.msra.mxu0 0
    %3313 = vmatprep.subr.bf16.mxu0 0
    %3314 = vmatpush2.bf16.msra.mxu0 0
    %3315 = vmatprep.subr.bf16.mxu0 0
    %3316 = vmatpush2.bf16.msra.mxu0 0
    %3317 = vmatprep.mubr.bf16.mxu0 0
    %3318 = vmatmul.mubr.bf16.gmra.mxu0 %v3233
    %v3319 = vpop.f32.mrf.mxu0
    %v3320 = vadd.f32 0.0, %v3319
    %v3321 = vpop.f32.mrf.mxu0
    %v3322 = vpop.f32.mrf.mxu0
    %v3323 = vpop.f32.mrf.mxu0
    %3324 = vdwg.mxu0
    %v3325 = vadd.f32 %v3188, %v3279
    %v3326 = vadd.f32 %v3189, %v3281
    %v3327 = vadd.f32 %v3190, %v3320
    %v3328 = vadd.f32 %v2228, %v2238
    %v3329 = vmax.f32 %v3328, 0.0
    %v3330 = vpack.c.bf16 %v3329, %v3329
    %s3331 = scalar_lea.vmem [#allocation2], 384
    %v3332 = vld [vmem:[%s3331] sm:$0xff]
    %v3333 = vld [vmem:[%s3331 + $0x8] sm:$0xf]
    %v3334 = vld [vmem:[%s3331 + $0xc] sm:$0xff]
    %v3335 = vld [vmem:[%s3331 + $0x14] sm:$0xf]
    %v3336 = vld [vmem:[%s3331 + $0x18] sm:$0xff]
    %v3337 = vld [vmem:[%s3331 + $0x20] sm:$0xf]
    %v3338 = vld [vmem:[%s3331 + $0x24] sm:$0x33]
    %v3339 = vld [vmem:[%s3331 + $0x2c] sm:$0x3]
    %v3348 = vunpack.c.l.b16 %v3332
    %v3349 = vunpack.c.h.b16 %v3332
    %v3350 = vunpack.c.l.b16 %v3333
    %v3351 = vunpack.c.l.b16 %v3334
    %v3352 = vunpack.c.h.b16 %v3334
    %v3353 = vunpack.c.l.b16 %v3335
    %v3354 = vunpack.c.l.b16 %v3336
    %v3355 = vunpack.c.h.b16 %v3336
    %v3356 = vunpack.c.l.b16 %v3337
    %v3357 = vunpack.c.l.b16 %v3338
    %v3358 = vunpack.c.h.b16 %v3338
    %v3359 = vunpack.c.l.b16 %v3339
    %v3360 = vpack.c.b16 %v3351, %v3348
    %v3361 = vpack.c.b16 %v3352, %v3349
    %v3362 = vpack.c.b16 %v3353, %v3350
    %v3363 = vpack.c.b16 %v3357, %v3354
    %v3364 = vpack.c.b16 %v3358, %v3355
    %v3365 = vpack.c.b16 %v3359, %v3356
    %v3370 = vsel %vm215, %v3330, 0
    %v3373 = vsel %vm282, %v3363, 0
    %v3376 = vsel %vm282, %v3364, 0
    %v3379 = vsel %vm282, %v3365, 0
    %3381 = vmatprep.subr.bf16.mxu0 0
    %3382 = vmatpush1.bf16.msra.mxu0 0
    %3383 = vmatprep.subr.bf16.mxu0 0
    %3384 = vmatpush1.bf16.msra.mxu0 0
    %3385 = vmatprep.subr.bf16.mxu0 0
    %3386 = vmatpush1.bf16.msra.mxu0 0
    %3387 = vmatprep.subr.bf16.mxu0 0
    %3388 = vmatpush1.bf16.msra.mxu0 0
    %3389 = vmatprep.subr.bf16.mxu0 0
    %3390 = vmatpush1.bf16.msra.mxu0 0
    %3391 = vmatprep.subr.bf16.mxu0 0
    %3392 = vmatpush1.bf16.msra.mxu0 0
    %3393 = vmatprep.subr.bf16.mxu0 %v3376
    %3394 = vmatpush1.bf16.msra.mxu0 %v3373
    %3395 = vmatprep.subr.bf16.mxu0 %v3361
    %3396 = vmatpush1.bf16.msra.mxu0 %v3360
    %3397 = vmatprep.subr.bf16.mxu0 0
    %3398 = vmatpush2.bf16.msra.mxu0 0
    %3399 = vmatprep.subr.bf16.mxu0 0
    %3400 = vmatpush2.bf16.msra.mxu0 0
    %3401 = vmatprep.subr.bf16.mxu0 0
    %3402 = vmatpush2.bf16.msra.mxu0 0
    %3403 = vmatprep.subr.bf16.mxu0 0
    %3404 = vmatpush2.bf16.msra.mxu0 0
    %3405 = vmatprep.subr.bf16.mxu0 0
    %3406 = vmatpush2.bf16.msra.mxu0 0
    %3407 = vmatprep.subr.bf16.mxu0 0
    %3408 = vmatpush2.bf16.msra.mxu0 0
    %3409 = vmatprep.subr.bf16.mxu0 0
    %3410 = vmatpush2.bf16.msra.mxu0 0
    %3411 = vmatprep.subr.bf16.mxu0 0
    %3412 = vmatpush2.bf16.msra.mxu0 0
    %3413 = vmatprep.mubr.bf16.mxu0 0
    %3414 = vmatmul.mubr.bf16.gmra.mxu0 %v3370
    %v3415 = vpop.f32.mrf.mxu0
    %v3416 = vadd.f32 0.0, %v3415
    %v3417 = vpop.f32.mrf.mxu0
    %v3418 = vadd.f32 0.0, %v3417
    %v3419 = vpop.f32.mrf.mxu0
    %v3420 = vpop.f32.mrf.mxu0
    %3421 = vdwg.mxu0
    %3422 = vmatprep.subr.bf16.mxu0 0
    %3423 = vmatpush1.bf16.msra.mxu0 0
    %3424 = vmatprep.subr.bf16.mxu0 0
    %3425 = vmatpush1.bf16.msra.mxu0 0
    %3426 = vmatprep.subr.bf16.mxu0 0
    %3427 = vmatpush1.bf16.msra.mxu0 0
    %3428 = vmatprep.subr.bf16.mxu0 0
    %3429 = vmatpush1.bf16.msra.mxu0 0
    %3430 = vmatprep.subr.bf16.mxu0 0
    %3431 = vmatpush1.bf16.msra.mxu0 0
    %3432 = vmatprep.subr.bf16.mxu0 0
    %3433 = vmatpush1.bf16.msra.mxu0 0
    %3434 = vmatprep.subr.bf16.mxu0 0
    %3435 = vmatpush1.bf16.msra.mxu0 %v3379
    %3436 = vmatprep.subr.bf16.mxu0 0
    %3437 = vmatpush1.bf16.msra.mxu0 %v3362
    %3438 = vmatprep.subr.bf16.mxu0 0
    %3439 = vmatpush2.bf16.msra.mxu0 0
    %3440 = vmatprep.subr.bf16.mxu0 0
    %3441 = vmatpush2.bf16.msra.mxu0 0
    %3442 = vmatprep.subr.bf16.mxu0 0
    %3443 = vmatpush2.bf16.msra.mxu0 0
    %3444 = vmatprep.subr.bf16.mxu0 0
    %3445 = vmatpush2.bf16.msra.mxu0 0
    %3446 = vmatprep.subr.bf16.mxu0 0
    %3447 = vmatpush2.bf16.msra.mxu0 0
    %3448 = vmatprep.subr.bf16.mxu0 0
    %3449 = vmatpush2.bf16.msra.mxu0 0
    %3450 = vmatprep.subr.bf16.mxu0 0
    %3451 = vmatpush2.bf16.msra.mxu0 0
    %3452 = vmatprep.subr.bf16.mxu0 0
    %3453 = vmatpush2.bf16.msra.mxu0 0
    %3454 = vmatprep.mubr.bf16.mxu0 0
    %3455 = vmatmul.mubr.bf16.gmra.mxu0 %v3370
    %v3456 = vpop.f32.mrf.mxu0
    %v3457 = vadd.f32 0.0, %v3456
    %v3458 = vpop.f32.mrf.mxu0
    %v3459 = vpop.f32.mrf.mxu0
    %v3460 = vpop.f32.mrf.mxu0
    %3461 = vdwg.mxu0
    %v3462 = vadd.f32 %v3325, %v3416
    %v3463 = vadd.f32 %v3326, %v3418
    %v3464 = vadd.f32 %v3327, %v3457
    %v3465 = vadd.f32 %v2229, %v2238
    %v3466 = vmax.f32 %v3465, 0.0
    %v3467 = vpack.c.bf16 %v3466, %v3466
    %s3468 = scalar_lea.vmem [#allocation2], 432
    %v3469 = vld [vmem:[%s3468] sm:$0xff]
    %v3470 = vld [vmem:[%s3468 + $0x8] sm:$0xf]
    %v3471 = vld [vmem:[%s3468 + $0xc] sm:$0xff]
    %v3472 = vld [vmem:[%s3468 + $0x14] sm:$0xf]
    %v3473 = vld [vmem:[%s3468 + $0x18] sm:$0xff]
    %v3474 = vld [vmem:[%s3468 + $0x20] sm:$0xf]
    %v3475 = vld [vmem:[%s3468 + $0x24] sm:$0x33]
    %v3476 = vld [vmem:[%s3468 + $0x2c] sm:$0x3]
    %v3485 = vunpack.c.l.b16 %v3469
    %v3486 = vunpack.c.h.b16 %v3469
    %v3487 = vunpack.c.l.b16 %v3470
    %v3488 = vunpack.c.l.b16 %v3471
    %v3489 = vunpack.c.h.b16 %v3471
    %v3490 = vunpack.c.l.b16 %v3472
    %v3491 = vunpack.c.l.b16 %v3473
    %v3492 = vunpack.c.h.b16 %v3473
    %v3493 = vunpack.c.l.b16 %v3474
    %v3494 = vunpack.c.l.b16 %v3475
    %v3495 = vunpack.c.h.b16 %v3475
    %v3496 = vunpack.c.l.b16 %v3476
    %v3497 = vpack.c.b16 %v3488, %v3485
    %v3498 = vpack.c.b16 %v3489, %v3486
    %v3499 = vpack.c.b16 %v3490, %v3487
    %v3500 = vpack.c.b16 %v3494, %v3491
    %v3501 = vpack.c.b16 %v3495, %v3492
    %v3502 = vpack.c.b16 %v3496, %v3493
    %v3507 = vsel %vm215, %v3467, 0
    %v3510 = vsel %vm282, %v3500, 0
    %v3513 = vsel %vm282, %v3501, 0
    %v3516 = vsel %vm282, %v3502, 0
    %3518 = vmatprep.subr.bf16.mxu0 0
    %3519 = vmatpush1.bf16.msra.mxu0 0
    %3520 = vmatprep.subr.bf16.mxu0 0
    %3521 = vmatpush1.bf16.msra.mxu0 0
    %3522 = vmatprep.subr.bf16.mxu0 0
    %3523 = vmatpush1.bf16.msra.mxu0 0
    %3524 = vmatprep.subr.bf16.mxu0 0
    %3525 = vmatpush1.bf16.msra.mxu0 0
    %3526 = vmatprep.subr.bf16.mxu0 0
    %3527 = vmatpush1.bf16.msra.mxu0 0
    %3528 = vmatprep.subr.bf16.mxu0 0
    %3529 = vmatpush1.bf16.msra.mxu0 0
    %3530 = vmatprep.subr.bf16.mxu0 %v3513
    %3531 = vmatpush1.bf16.msra.mxu0 %v3510
    %3532 = vmatprep.subr.bf16.mxu0 %v3498
    %3533 = vmatpush1.bf16.msra.mxu0 %v3497
    %3534 = vmatprep.subr.bf16.mxu0 0
    %3535 = vmatpush2.bf16.msra.mxu0 0
    %3536 = vmatprep.subr.bf16.mxu0 0
    %3537 = vmatpush2.bf16.msra.mxu0 0
    %3538 = vmatprep.subr.bf16.mxu0 0
    %3539 = vmatpush2.bf16.msra.mxu0 0
    %3540 = vmatprep.subr.bf16.mxu0 0
    %3541 = vmatpush2.bf16.msra.mxu0 0
    %3542 = vmatprep.subr.bf16.mxu0 0
    %3543 = vmatpush2.bf16.msra.mxu0 0
    %3544 = vmatprep.subr.bf16.mxu0 0
    %3545 = vmatpush2.bf16.msra.mxu0 0
    %3546 = vmatprep.subr.bf16.mxu0 0
    %3547 = vmatpush2.bf16.msra.mxu0 0
    %3548 = vmatprep.subr.bf16.mxu0 0
    %3549 = vmatpush2.bf16.msra.mxu0 0
    %3550 = vmatprep.mubr.bf16.mxu0 0
    %3551 = vmatmul.mubr.bf16.gmra.mxu0 %v3507
    %v3552 = vpop.f32.mrf.mxu0
    %v3553 = vadd.f32 0.0, %v3552
    %v3554 = vpop.f32.mrf.mxu0
    %v3555 = vadd.f32 0.0, %v3554
    %v3556 = vpop.f32.mrf.mxu0
    %v3557 = vpop.f32.mrf.mxu0
    %3558 = vdwg.mxu0
    %3559 = vmatprep.subr.bf16.mxu0 0
    %3560 = vmatpush1.bf16.msra.mxu0 0
    %3561 = vmatprep.subr.bf16.mxu0 0
    %3562 = vmatpush1.bf16.msra.mxu0 0
    %3563 = vmatprep.subr.bf16.mxu0 0
    %3564 = vmatpush1.bf16.msra.mxu0 0
    %3565 = vmatprep.subr.bf16.mxu0 0
    %3566 = vmatpush1.bf16.msra.mxu0 0
    %3567 = vmatprep.subr.bf16.mxu0 0
    %3568 = vmatpush1.bf16.msra.mxu0 0
    %3569 = vmatprep.subr.bf16.mxu0 0
    %3570 = vmatpush1.bf16.msra.mxu0 0
    %3571 = vmatprep.subr.bf16.mxu0 0
    %3572 = vmatpush1.bf16.msra.mxu0 %v3516
    %3573 = vmatprep.subr.bf16.mxu0 0
    %3574 = vmatpush1.bf16.msra.mxu0 %v3499
    %3575 = vmatprep.subr.bf16.mxu0 0
    %3576 = vmatpush2.bf16.msra.mxu0 0
    %3577 = vmatprep.subr.bf16.mxu0 0
    %3578 = vmatpush2.bf16.msra.mxu0 0
    %3579 = vmatprep.subr.bf16.mxu0 0
    %3580 = vmatpush2.bf16.msra.mxu0 0
    %3581 = vmatprep.subr.bf16.mxu0 0
    %3582 = vmatpush2.bf16.msra.mxu0 0
    %3583 = vmatprep.subr.bf16.mxu0 0
    %3584 = vmatpush2.bf16.msra.mxu0 0
    %3585 = vmatprep.subr.bf16.mxu0 0
    %3586 = vmatpush2.bf16.msra.mxu0 0
    %3587 = vmatprep.subr.bf16.mxu0 0
    %3588 = vmatpush2.bf16.msra.mxu0 0
    %3589 = vmatprep.subr.bf16.mxu0 0
    %3590 = vmatpush2.bf16.msra.mxu0 0
    %3591 = vmatprep.mubr.bf16.mxu0 0
    %3592 = vmatmul.mubr.bf16.gmra.mxu0 %v3507
    %v3593 = vpop.f32.mrf.mxu0
    %v3594 = vadd.f32 0.0, %v3593
    %v3595 = vpop.f32.mrf.mxu0
    %v3596 = vpop.f32.mrf.mxu0
    %v3597 = vpop.f32.mrf.mxu0
    %3598 = vdwg.mxu0
    %v3599 = vadd.f32 %v3462, %v3553
    %v3600 = vadd.f32 %v3463, %v3555
    %v3601 = vadd.f32 %v3464, %v3594
    %v3602 = vadd.f32 %v2230, %v2238
    %v3603 = vmax.f32 %v3602, 0.0
    %v3604 = vpack.c.bf16 %v3603, %v3603
    %s3605 = scalar_lea.vmem [#allocation2], 480
    %v3606 = vld [vmem:[%s3605] sm:$0xff]
    %v3607 = vld [vmem:[%s3605 + $0x8] sm:$0xf]
    %v3608 = vld [vmem:[%s3605 + $0xc] sm:$0xff]
    %v3609 = vld [vmem:[%s3605 + $0x14] sm:$0xf]
    %v3610 = vld [vmem:[%s3605 + $0x18] sm:$0xff]
    %v3611 = vld [vmem:[%s3605 + $0x20] sm:$0xf]
    %v3612 = vld [vmem:[%s3605 + $0x24] sm:$0x33]
    %v3613 = vld [vmem:[%s3605 + $0x2c] sm:$0x3]
    %v3622 = vunpack.c.l.b16 %v3606
    %v3623 = vunpack.c.h.b16 %v3606
    %v3624 = vunpack.c.l.b16 %v3607
    %v3625 = vunpack.c.l.b16 %v3608
    %v3626 = vunpack.c.h.b16 %v3608
    %v3627 = vunpack.c.l.b16 %v3609
    %v3628 = vunpack.c.l.b16 %v3610
    %v3629 = vunpack.c.h.b16 %v3610
    %v3630 = vunpack.c.l.b16 %v3611
    %v3631 = vunpack.c.l.b16 %v3612
    %v3632 = vunpack.c.h.b16 %v3612
    %v3633 = vunpack.c.l.b16 %v3613
    %v3634 = vpack.c.b16 %v3625, %v3622
    %v3635 = vpack.c.b16 %v3626, %v3623
    %v3636 = vpack.c.b16 %v3627, %v3624
    %v3637 = vpack.c.b16 %v3631, %v3628
    %v3638 = vpack.c.b16 %v3632, %v3629
    %v3639 = vpack.c.b16 %v3633, %v3630
    %v3644 = vsel %vm215, %v3604, 0
    %v3647 = vsel %vm282, %v3637, 0
    %v3650 = vsel %vm282, %v3638, 0
    %v3653 = vsel %vm282, %v3639, 0
    %3655 = vmatprep.subr.bf16.mxu0 0
    %3656 = vmatpush1.bf16.msra.mxu0 0
    %3657 = vmatprep.subr.bf16.mxu0 0
    %3658 = vmatpush1.bf16.msra.mxu0 0
    %3659 = vmatprep.subr.bf16.mxu0 0
    %3660 = vmatpush1.bf16.msra.mxu0 0
    %3661 = vmatprep.subr.bf16.mxu0 0
    %3662 = vmatpush1.bf16.msra.mxu0 0
    %3663 = vmatprep.subr.bf16.mxu0 0
    %3664 = vmatpush1.bf16.msra.mxu0 0
    %3665 = vmatprep.subr.bf16.mxu0 0
    %3666 = vmatpush1.bf16.msra.mxu0 0
    %3667 = vmatprep.subr.bf16.mxu0 %v3650
    %3668 = vmatpush1.bf16.msra.mxu0 %v3647
    %3669 = vmatprep.subr.bf16.mxu0 %v3635
    %3670 = vmatpush1.bf16.msra.mxu0 %v3634
    %3671 = vmatprep.subr.bf16.mxu0 0
    %3672 = vmatpush2.bf16.msra.mxu0 0
    %3673 = vmatprep.subr.bf16.mxu0 0
    %3674 = vmatpush2.bf16.msra.mxu0 0
    %3675 = vmatprep.subr.bf16.mxu0 0
    %3676 = vmatpush2.bf16.msra.mxu0 0
    %3677 = vmatprep.subr.bf16.mxu0 0
    %3678 = vmatpush2.bf16.msra.mxu0 0
    %3679 = vmatprep.subr.bf16.mxu0 0
    %3680 = vmatpush2.bf16.msra.mxu0 0
    %3681 = vmatprep.subr.bf16.mxu0 0
    %3682 = vmatpush2.bf16.msra.mxu0 0
    %3683 = vmatprep.subr.bf16.mxu0 0
    %3684 = vmatpush2.bf16.msra.mxu0 0
    %3685 = vmatprep.subr.bf16.mxu0 0
    %3686 = vmatpush2.bf16.msra.mxu0 0
    %3687 = vmatprep.mubr.bf16.mxu0 0
    %3688 = vmatmul.mubr.bf16.gmra.mxu0 %v3644
    %v3689 = vpop.f32.mrf.mxu0
    %v3690 = vadd.f32 0.0, %v3689
    %v3691 = vpop.f32.mrf.mxu0
    %v3692 = vadd.f32 0.0, %v3691
    %v3693 = vpop.f32.mrf.mxu0
    %v3694 = vpop.f32.mrf.mxu0
    %3695 = vdwg.mxu0
    %3696 = vmatprep.subr.bf16.mxu0 0
    %3697 = vmatpush1.bf16.msra.mxu0 0
    %3698 = vmatprep.subr.bf16.mxu0 0
    %3699 = vmatpush1.bf16.msra.mxu0 0
    %3700 = vmatprep.subr.bf16.mxu0 0
    %3701 = vmatpush1.bf16.msra.mxu0 0
    %3702 = vmatprep.subr.bf16.mxu0 0
    %3703 = vmatpush1.bf16.msra.mxu0 0
    %3704 = vmatprep.subr.bf16.mxu0 0
    %3705 = vmatpush1.bf16.msra.mxu0 0
    %3706 = vmatprep.subr.bf16.mxu0 0
    %3707 = vmatpush1.bf16.msra.mxu0 0
    %3708 = vmatprep.subr.bf16.mxu0 0
    %3709 = vmatpush1.bf16.msra.mxu0 %v3653
    %3710 = vmatprep.subr.bf16.mxu0 0
    %3711 = vmatpush1.bf16.msra.mxu0 %v3636
    %3712 = vmatprep.subr.bf16.mxu0 0
    %3713 = vmatpush2.bf16.msra.mxu0 0
    %3714 = vmatprep.subr.bf16.mxu0 0
    %3715 = vmatpush2.bf16.msra.mxu0 0
    %3716 = vmatprep.subr.bf16.mxu0 0
    %3717 = vmatpush2.bf16.msra.mxu0 0
    %3718 = vmatprep.subr.bf16.mxu0 0
    %3719 = vmatpush2.bf16.msra.mxu0 0
    %3720 = vmatprep.subr.bf16.mxu0 0
    %3721 = vmatpush2.bf16.msra.mxu0 0
    %3722 = vmatprep.subr.bf16.mxu0 0
    %3723 = vmatpush2.bf16.msra.mxu0 0
    %3724 = vmatprep.subr.bf16.mxu0 0
    %3725 = vmatpush2.bf16.msra.mxu0 0
    %3726 = vmatprep.subr.bf16.mxu0 0
    %3727 = vmatpush2.bf16.msra.mxu0 0
    %3728 = vmatprep.mubr.bf16.mxu0 0
    %3729 = vmatmul.mubr.bf16.gmra.mxu0 %v3644
    %v3730 = vpop.f32.mrf.mxu0
    %v3731 = vadd.f32 0.0, %v3730
    %v3732 = vpop.f32.mrf.mxu0
    %v3733 = vpop.f32.mrf.mxu0
    %v3734 = vpop.f32.mrf.mxu0
    %3735 = vdwg.mxu0
    %v3736 = vadd.f32 %v3599, %v3690
    %v3737 = vadd.f32 %v3600, %v3692
    %v3738 = vadd.f32 %v3601, %v3731
    %v3740 = vlaneseq
    %v3741 = vshrl.u32 %v3740, 7
    %v3742 = vsub.s32 0, %v3741
    %v3743 = vrot.slane %v2233, %v3742
    %v3744 = vlaneseq
    %v3745 = vshrl.u32 %v3744, 7
    %v3746 = vsub.s32 1, %v3745
    %v3747 = vrot.slane %v2233, %v3746
    %v3748 = vlaneseq
    %v3749 = vshrl.u32 %v3748, 7
    %v3750 = vsub.s32 2, %v3749
    %v3751 = vrot.slane %v2233, %v3750
    %v3755 = vadd.f32 %v3736, %v3743
    %v3756 = vadd.f32 %v3737, %v3747
    %v3757 = vadd.f32 %v3738, %v3751
    %v3758 = vmax.f32 %v3755, 0.0
    %v3759 = vmax.f32 %v3756, 0.0
    %v3760 = vmax.f32 %v3757, 0.0
    %v3761 = vpack.c.bf16 %v3758, %v3758
    %v3762 = vpack.c.bf16 %v3759, %v3759
    %v3763 = vpack.c.bf16 %v3760, %v3760
    %v3764 = vld [vmem:[%s3] sm:$0xf]
    %v3765 = vld [vmem:[%s3 + $0x4] sm:$0xf]
    %v3766 = vld [vmem:[%s3 + $0x8] sm:$0xf]
    %v3767 = vld [vmem:[%s3 + $0xc] sm:$0xf]
    %v3768 = vld [vmem:[%s3 + $0x10] sm:$0xf]
    %v3769 = vld [vmem:[%s3 + $0x14] sm:$0xf]
    %v3770 = vld [vmem:[%s3 + $0x18] sm:$0xf]
    %v3771 = vld [vmem:[%s3 + $0x1c] sm:$0xf]
    %v3772 = vld [vmem:[%s3 + $0x20] sm:$0xf]
    %v3773 = vld [vmem:[%s3 + $0x24] sm:$0xf]
    %v3774 = vld [vmem:[%s3 + $0x28] sm:$0xf]
    %v3775 = vld [vmem:[%s3 + $0x2c] sm:$0xf]
    %v3776 = vld [vmem:[%s3 + $0x30] sm:$0xf]
    %v3777 = vld [vmem:[%s3 + $0x34] sm:$0xf]
    %v3778 = vld [vmem:[%s3 + $0x38] sm:$0xf]
    %v3779 = vld [vmem:[%s3 + $0x3c] sm:$0xf]
    %v3780 = vld [vmem:[%s3 + $0x40] sm:$0xf]
    %v3781 = vld [vmem:[%s3 + $0x44] sm:$0xf]
    %v3782 = vld [vmem:[%s3 + $0x48] sm:$0xf]
    %v3783 = vld [vmem:[%s3 + $0x4c] sm:$0xf]
    %v3784 = vld [vmem:[%s3 + $0x50] sm:$0xf]
    %v3785 = vld [vmem:[%s3 + $0x54] sm:$0xf]
    %v3786 = vld [vmem:[%s3 + $0x58] sm:$0xf]
    %v3787 = vld [vmem:[%s3 + $0x5c] sm:$0xf]
    %v3788 = vld [vmem:[%s3 + $0x60] sm:$0xf]
    %v3789 = vld [vmem:[%s3 + $0x64] sm:$0xf]
    %v3790 = vld [vmem:[%s3 + $0x68] sm:$0xf]
    %v3791 = vld [vmem:[%s3 + $0x6c] sm:$0xf]
    %v3792 = vld [vmem:[%s3 + $0x70] sm:$0xf]
    %v3793 = vld [vmem:[%s3 + $0x74] sm:$0xf]
    %v3794 = vld [vmem:[%s3 + $0x78] sm:$0xf]
    %v3795 = vld [vmem:[%s3 + $0x7c] sm:$0xf]
    %v3796 = vld [vmem:[%s3 + $0x80] sm:$0xf]
    %v3797 = vld [vmem:[%s3 + $0x84] sm:$0xf]
    %v3798 = vld [vmem:[%s3 + $0x88] sm:$0xf]
    %v3799 = vld [vmem:[%s3 + $0x8c] sm:$0xf]
    %v3800 = vld [vmem:[%s3 + $0x90] sm:$0xf]
    %v3801 = vld [vmem:[%s3 + $0x94] sm:$0xf]
    %v3802 = vld [vmem:[%s3 + $0x98] sm:$0x3]
    %v3803 = vlaneseq
    %v3804 = vshrl.u32 %v3803, 7
    %v3805 = vsub.s32 0, %v3804
    %v3806 = vrot.slane %v2234, %v3805
    %v3846 = vunpack.c.l.b16 %v3764
    %v3847 = vunpack.c.l.b16 %v3765
    %v3848 = vunpack.c.l.b16 %v3766
    %v3849 = vunpack.c.l.b16 %v3767
    %v3850 = vunpack.c.l.b16 %v3768
    %v3851 = vunpack.c.l.b16 %v3769
    %v3852 = vunpack.c.l.b16 %v3770
    %v3853 = vunpack.c.l.b16 %v3771
    %v3854 = vunpack.c.l.b16 %v3772
    %v3855 = vunpack.c.l.b16 %v3773
    %v3856 = vunpack.c.l.b16 %v3774
    %v3857 = vunpack.c.l.b16 %v3775
    %v3858 = vunpack.c.l.b16 %v3776
    %v3859 = vunpack.c.l.b16 %v3777
    %v3860 = vunpack.c.l.b16 %v3778
    %v3861 = vunpack.c.l.b16 %v3779
    %v3862 = vunpack.c.l.b16 %v3780
    %v3863 = vunpack.c.l.b16 %v3781
    %v3864 = vunpack.c.l.b16 %v3782
    %v3865 = vunpack.c.l.b16 %v3783
    %v3866 = vunpack.c.l.b16 %v3784
    %v3867 = vunpack.c.l.b16 %v3785
    %v3868 = vunpack.c.l.b16 %v3786
    %v3869 = vunpack.c.l.b16 %v3787
    %v3870 = vunpack.c.l.b16 %v3788
    %v3871 = vunpack.c.l.b16 %v3789
    %v3872 = vunpack.c.l.b16 %v3790
    %v3873 = vunpack.c.l.b16 %v3791
    %v3874 = vunpack.c.l.b16 %v3792
    %v3875 = vunpack.c.l.b16 %v3793
    %v3876 = vunpack.c.l.b16 %v3794
    %v3877 = vunpack.c.l.b16 %v3795
    %v3878 = vunpack.c.l.b16 %v3796
    %v3879 = vunpack.c.l.b16 %v3797
    %v3880 = vunpack.c.l.b16 %v3798
    %v3881 = vunpack.c.l.b16 %v3799
    %v3882 = vunpack.c.l.b16 %v3800
    %v3883 = vunpack.c.l.b16 %v3801
    %v3884 = vunpack.c.l.b16 %v3802
    %v3885 = vpack.c.b16 %v3847, %v3846
    %v3886 = vpack.c.b16 %v3849, %v3848
    %v3887 = vpack.c.b16 %v3851, %v3850
    %v3888 = vpack.c.b16 %v3853, %v3852
    %v3889 = vpack.c.b16 %v3855, %v3854
    %v3890 = vpack.c.b16 %v3857, %v3856
    %v3891 = vpack.c.b16 %v3859, %v3858
    %v3892 = vpack.c.b16 %v3861, %v3860
    %v3893 = vpack.c.b16 %v3863, %v3862
    %v3894 = vpack.c.b16 %v3865, %v3864
    %v3895 = vpack.c.b16 %v3867, %v3866
    %v3896 = vpack.c.b16 %v3869, %v3868
    %v3897 = vpack.c.b16 %v3871, %v3870
    %v3898 = vpack.c.b16 %v3873, %v3872
    %v3899 = vpack.c.b16 %v3875, %v3874
    %v3900 = vpack.c.b16 %v3877, %v3876
    %v3901 = vpack.c.b16 %v3879, %v3878
    %v3902 = vpack.c.b16 %v3881, %v3880
    %v3903 = vpack.c.b16 %v3883, %v3882
    %v3904 = vpack.c.b16 %v3884, %v3884
    %vm3924 = vcmask 424960
    %v3926 = vsel %vm3924, %v3763, 0
    %vm3928 = vcmask 1041408
    %v3930 = vsel %vm3928, %v3904, 0
    %3932 = vmatprep.subr.bf16.mxu0 0
    %3933 = vmatpush1.bf16.msra.mxu0 %v3892
    %3934 = vmatprep.subr.bf16.mxu0 0
    %3935 = vmatpush1.bf16.msra.mxu0 %v3891
    %3936 = vmatprep.subr.bf16.mxu0 0
    %3937 = vmatpush1.bf16.msra.mxu0 %v3890
    %3938 = vmatprep.subr.bf16.mxu0 0
    %3939 = vmatpush1.bf16.msra.mxu0 %v3889
    %3940 = vmatprep.subr.bf16.mxu0 0
    %3941 = vmatpush1.bf16.msra.mxu0 %v3888
    %3942 = vmatprep.subr.bf16.mxu0 0
    %3943 = vmatpush1.bf16.msra.mxu0 %v3887
    %3944 = vmatprep.subr.bf16.mxu0 0
    %3945 = vmatpush1.bf16.msra.mxu0 %v3886
    %3946 = vmatprep.subr.bf16.mxu0 0
    %3947 = vmatpush1.bf16.msra.mxu0 %v3885
    %3948 = vmatprep.subr.bf16.mxu0 0
    %3949 = vmatpush2.bf16.msra.mxu0 %v3900
    %3950 = vmatprep.subr.bf16.mxu0 0
    %3951 = vmatpush2.bf16.msra.mxu0 %v3899
    %3952 = vmatprep.subr.bf16.mxu0 0
    %3953 = vmatpush2.bf16.msra.mxu0 %v3898
    %3954 = vmatprep.subr.bf16.mxu0 0
    %3955 = vmatpush2.bf16.msra.mxu0 %v3897
    %3956 = vmatprep.subr.bf16.mxu0 0
    %3957 = vmatpush2.bf16.msra.mxu0 %v3896
    %3958 = vmatprep.subr.bf16.mxu0 0
    %3959 = vmatpush2.bf16.msra.mxu0 %v3895
    %3960 = vmatprep.subr.bf16.mxu0 0
    %3961 = vmatpush2.bf16.msra.mxu0 %v3894
    %3962 = vmatprep.subr.bf16.mxu0 0
    %3963 = vmatpush2.bf16.msra.mxu0 %v3893
    %3964 = vmatprep.mubr.bf16.mxu0 %v3762
    %3965 = vmatmul.mubr.bf16.gmra.mxu0 %v3761
    %v3966 = vpop.f32.mrf.mxu0
    %v3967 = vadd.f32 %v3806, %v3966
    %v3968 = vpop.f32.mrf.mxu0
    %v3969 = vpop.f32.mrf.mxu0
    %v3970 = vpop.f32.mrf.mxu0
    %3971 = vdwg.mxu0
    %3972 = vmatprep.subr.bf16.mxu0 0
    %3973 = vmatpush1.bf16.msra.mxu0 0
    %3974 = vmatprep.subr.bf16.mxu0 0
    %3975 = vmatpush1.bf16.msra.mxu0 0
    %3976 = vmatprep.subr.bf16.mxu0 0
    %3977 = vmatpush1.bf16.msra.mxu0 0
    %3978 = vmatprep.subr.bf16.mxu0 0
    %3979 = vmatpush1.bf16.msra.mxu0 0
    %3980 = vmatprep.subr.bf16.mxu0 0
    %3981 = vmatpush1.bf16.msra.mxu0 %v3930
    %3982 = vmatprep.subr.bf16.mxu0 0
    %3983 = vmatpush1.bf16.msra.mxu0 %v3903
    %3984 = vmatprep.subr.bf16.mxu0 0
    %3985 = vmatpush1.bf16.msra.mxu0 %v3902
    %3986 = vmatprep.subr.bf16.mxu0 0
    %3987 = vmatpush1.bf16.msra.mxu0 %v3901
    %3988 = vmatprep.subr.bf16.mxu0 0
    %3989 = vmatpush2.bf16.msra.mxu0 0
    %3990 = vmatprep.subr.bf16.mxu0 0
    %3991 = vmatpush2.bf16.msra.mxu0 0
    %3992 = vmatprep.subr.bf16.mxu0 0
    %3993 = vmatpush2.bf16.msra.mxu0 0
    %3994 = vmatprep.subr.bf16.mxu0 0
    %3995 = vmatpush2.bf16.msra.mxu0 0
    %3996 = vmatprep.subr.bf16.mxu0 0
    %3997 = vmatpush2.bf16.msra.mxu0 0
    %3998 = vmatprep.subr.bf16.mxu0 0
    %3999 = vmatpush2.bf16.msra.mxu0 0
    %4000 = vmatprep.subr.bf16.mxu0 0
    %4001 = vmatpush2.bf16.msra.mxu0 0
    %4002 = vmatprep.subr.bf16.mxu0 0
    %4003 = vmatpush2.bf16.msra.mxu0 0
    %4004 = vmatprep.mubr.bf16.mxu0 0
    %4005 = vmatmul.mubr.bf16.gmra.mxu0 %v3926
    %v4006 = vpop.f32.mrf.mxu0
    %v4007 = vadd.f32 %v3967, %v4006
    %v4008 = vpop.f32.mrf.mxu0
    %v4009 = vpop.f32.mrf.mxu0
    %v4010 = vpop.f32.mrf.mxu0
    %4011 = vdwg.mxu0
    %4012 = vst [vmem:[%s5] sm:$0xff] %v4007
    // Predicated region
    $region26: #{convnet2_forward.1} parent=1 // pred_check
      _
    $region27: #{convnet2_forward.1} parent=1 // pred_check_branch
      %4014 = sbr.rel (0) target = $region29
    $region28: #{convnet2_forward.1} parent=1 // pred_region
      _
    $region29: #{convnet2_forward.1} parent=1 // pred_fallthru
      _
    // Predicated region
    $region30: #{convnet2_forward.1} parent=1 // pred_check
      _
    $region31: #{convnet2_forward.1} parent=1 // pred_check_branch
      %4016 = sbr.rel (0) target = $region33
    $region32: #{convnet2_forward.1} parent=1 // pred_region
      _
    $region33: #{convnet2_forward.1} parent=1 // pred_fallthru
      _
    %4017 = vsyncpa [#allocation3], 1

</llo_original>
